<compile_context>
chip_gen: v5e
topology: v5e:2x2
jax: 0.10.0
libtpu: 0.0.40
codegen_flags: <defaults>
</compile_context>

<pallas_src>
from functools import partial

import numpy as np
import jax
import jax.numpy as jnp
from jax.experimental import pallas as pl
from jax.experimental.pallas import tpu as pltpu

EMB_POS = 10                      # embedding_dim_pos
EMB_DIR = 4                       # embedding_dim_direction
HIDDEN = 128                      # hidden_dim
IN_POS = (EMB_POS + 1) * 3        # 33
IN_DIR = (EMB_DIR + 1) * 3        # 15

# Order in which parameters are passed to the kernel.
PARAM_ORDER = ("w1", "b1", "w2", "b2", "w3", "b3", "w4", "b4",
               "w5h", "w5x", "b5", "w6", "b6", "w7", "b7",
               "w8h", "b8h", "w8s", "b8s",
               "w9h", "w9d", "b9", "w10", "b10")
# Weights that feed the MXU (cast to bf16 once in the wrapper).
MXU_WEIGHTS = frozenset(
    ("w1", "w2", "w3", "w4", "w5h", "w5x", "w6", "w7", "w8h", "w9h", "w9d", "w10"))


# --------------------------------------------------------------------------
# B-spline encoding (plain-JAX glue, faithful to the torch implementation)
# --------------------------------------------------------------------------
# TODO(synk): the B-spline basis construction (Python loops over knots) has no
# clean Pallas equivalent; it stays in plain JAX outside the kernel.
def bspline_basis(x, degree, knots):
    # x: (B,) jnp array, knots: numpy float32 array (static values)
    n = knots.shape[0] - degree - 1
    cols = []
    for i in range(n + degree):
        cols.append(((x >= knots[i]) & (x < knots[i + 1])).astype(jnp.float32))
    N = jnp.stack(cols, axis=1)
    # N[:, -1][x == knots[-1]] = 1.0
    N = N.at[:, -1].set(jnp.where(x == knots[-1], 1.0, N[:, -1]))
    for p in range(1, degree + 1):
        new_cols = []
        for i in range(n + degree - p):
            denom1 = float(knots[i + p] - knots[i])
            denom2 = float(knots[i + p + 1] - knots[i + 1])
            term1 = jnp.zeros_like(x)
            term2 = jnp.zeros_like(x)
            if denom1 > 0:
                term1 = (x - knots[i]) / denom1 * N[:, i]
            if denom2 > 0:
                term2 = (knots[i + p + 1] - x) / denom2 * N[:, i + 1]
            new_cols.append(term1 + term2)
        N = jnp.stack(new_cols, axis=1)
    return N


def bspline_encoding(x, L):
    degree = 3
    n = L
    x_norm = (x + 1.0) / 2.0
    knots = np.concatenate(
        [np.zeros(degree), np.linspace(0.0, 1.0, n - degree + 1), np.ones(degree)]
    ).astype(np.float32)
    feats = []
    for i in range(3):
        xi = x_norm[:, i]
        N = bspline_basis(xi, degree, knots)
        feats.append(jnp.concatenate([xi[:, None], N], axis=1))
    return jnp.concatenate(feats, axis=1)      # (B, (L+1)*3)


# --------------------------------------------------------------------------
# Pallas kernel: the whole NeRF MLP for one batch tile (feature-major layout)
# --------------------------------------------------------------------------
def nerf_mlp_kernel(x_ref, d_ref,
                    w1, b1, w2, b2, w3, b3, w4, b4,
                    w5h, w5x, b5, w6, b6, w7, b7,
                    w8h, b8h, w8s, b8s,
                    w9h, w9d, b9, w10, b10,
                    out_ref):
    relu = jax.nn.relu
    bf16 = jnp.bfloat16

    def mm(w_ref, a):
        # bf16 operands on the MXU, f32 accumulation.
        return jnp.dot(w_ref[...], a.astype(bf16), preferred_element_type=jnp.float32)

    xb = x_ref[...].astype(bf16)                          # (33, TB)
    db = d_ref[...].astype(bf16)                          # (15, TB)

    # block1
    h = relu(mm(w1, xb) + b1[...])
    h = relu(mm(w2, h) + b2[...])
    h = relu(mm(w3, h) + b3[...])
    h = relu(mm(w4, h) + b4[...])

    # block2 ; Linear on cat((h, emb_x)) expressed as split matmuls
    h2 = relu(mm(w5h, h) + mm(w5x, xb) + b5[...])
    h2 = relu(mm(w6, h2) + b6[...])
    h2 = relu(mm(w7, h2) + b7[...])
    h3 = mm(w8h, h2) + b8h[...]                           # tmp[:, :-1]  -> (128, TB)
    # sigma = relu(tmp[:, -1]): a 1-wide output row -- keep it off the MXU
    # (VPU multiply + sublane reduce; those units have slack here).
    sig = relu(jnp.sum(h2 * w8s[...], axis=0, keepdims=True) + b8s[...])   # (1, TB)

    # block3 ; Linear on cat((h3, emb_d)) expressed as split matmuls
    h4 = relu(mm(w9h, h3) + mm(w9d, db) + b9[...])        # (64, TB)

    # block4
    c = jax.nn.sigmoid(mm(w10, h4) + b10[...])            # (3, TB)

    # Merged lane-dense output: rows 0..2 = rgb, row 3 = sigma.
    out_ref[pl.ds(0, 3), :] = c
    out_ref[pl.ds(3, 1), :] = sig


# --------------------------------------------------------------------------
# Parameters (deterministic, synthetic; Linear weights stored [out, in])
# --------------------------------------------------------------------------
def make_params(key):
    def linear(k, out_f, in_f):
        k1, k2 = jax.random.split(k)
        bound = 1.0 / np.sqrt(in_f)
        w = jax.random.uniform(k1, (out_f, in_f), jnp.float32, -bound, bound)
        b = jax.random.uniform(k2, (out_f, 1), jnp.float32, -bound, bound)
        return w, b

    ks = jax.random.split(key, 10)
    w1, b1 = linear(ks[0], HIDDEN, IN_POS)
    w2, b2 = linear(ks[1], HIDDEN, HIDDEN)
    w3, b3 = linear(ks[2], HIDDEN, HIDDEN)
    w4, b4 = linear(ks[3], HIDDEN, HIDDEN)
    # block2 first layer: Linear(HIDDEN + IN_POS, HIDDEN), split along inputs
    w5, b5 = linear(ks[4], HIDDEN, HIDDEN + IN_POS)
    w5h, w5x = w5[:, :HIDDEN], w5[:, HIDDEN:]
    w6, b6 = linear(ks[5], HIDDEN, HIDDEN)
    w7, b7 = linear(ks[6], HIDDEN, HIDDEN)
    # block2 last layer: Linear(HIDDEN, HIDDEN + 1), split along outputs
    w8, b8 = linear(ks[7], HIDDEN + 1, HIDDEN)
    w8h, b8h = w8[:HIDDEN, :], b8[:HIDDEN, :]
    w8s = w8[HIDDEN:, :].T           # (128, 1) column for the VPU sigma path
    b8s = b8[HIDDEN:, :]             # (1, 1)
    # block3: Linear(HIDDEN + IN_DIR, HIDDEN // 2), split along inputs
    w9, b9 = linear(ks[8], HIDDEN // 2, HIDDEN + IN_DIR)
    w9h, w9d = w9[:, :HIDDEN], w9[:, HIDDEN:]
    # block4: Linear(HIDDEN // 2, 3)
    w10, b10 = linear(ks[9], 3, HIDDEN // 2)
    return dict(w1=w1, b1=b1, w2=w2, b2=b2, w3=w3, b3=b3, w4=w4, b4=b4,
                w5h=w5h, w5x=w5x, b5=b5, w6=w6, b6=b6, w7=w7, b7=b7,
                w8h=w8h, b8h=b8h, w8s=w8s, b8s=b8s,
                w9h=w9h, w9d=w9d, b9=b9, w10=w10, b10=b10)


# --------------------------------------------------------------------------
# Wrapper
# --------------------------------------------------------------------------
@partial(jax.jit, static_argnames=("tb",))
def nerf_forward(o, d, params, *, tb=512):
    B = o.shape[0]
    # Feature-major encodings: (features, B) so batch rides the 128 lanes.
    ex_t = bspline_encoding(o, EMB_POS).T                 # (33, B)
    ed_t = bspline_encoding(d, EMB_DIR).T                 # (15, B)

    # Pad the batch to a multiple of the tile (padded rays are sliced off).
    Bp = ((B + tb - 1) // tb) * tb
    if Bp != B:
        ex_t = jnp.pad(ex_t, ((0, 0), (0, Bp - B)))
        ed_t = jnp.pad(ed_t, ((0, 0), (0, Bp - B)))

    # Cast MXU weights to bf16 once; biases and the VPU sigma row stay f32.
    kparams = [params[k].astype(jnp.bfloat16) if k in MXU_WEIGHTS else params[k]
               for k in PARAM_ORDER]

    # Weights use constant index maps -> fetched once, not re-DMA'd per step.
    weight_specs = [pl.BlockSpec(params[k].shape, lambda i: (0, 0))
                    for k in PARAM_ORDER]
    in_specs = ([pl.BlockSpec((IN_POS, tb), lambda i: (0, i)),
                 pl.BlockSpec((IN_DIR, tb), lambda i: (0, i))]
                + weight_specs)
    out_specs = pl.BlockSpec((4, tb), lambda i: (0, i))   # lane-dense output

    out = pl.pallas_call(
        nerf_mlp_kernel,
        out_shape=jax.ShapeDtypeStruct((4, Bp), jnp.float32),
        grid=(Bp // tb,),
        in_specs=in_specs,
        out_specs=out_specs,
        compiler_params=pltpu.CompilerParams(
            dimension_semantics=("parallel",),
            vmem_limit_bytes=32 * 1024 * 1024),
    )(ex_t, ed_t, *kparams)

    c = out[:3, :B].T                                     # (B, 3)
    sigma = out[3, :B]                                    # (B,)
    return c, sigma


# --------------------------------------------------------------------------
# Pure-JAX reference (row-major orientation, same bf16-at-the-MXU math)
# --------------------------------------------------------------------------
def nerf_forward_ref(o, d, p):
    relu = jax.nn.relu
    bf = lambda a: a.astype(jnp.bfloat16)

    def dot(x, w):                                        # x (B,in), w (out,in)
        return jnp.dot(bf(x), bf(w).T, preferred_element_type=jnp.float32)

    def lin(x, w, b):
        return dot(x, w) + b[:, 0]

    ex = bspline_encoding(o, EMB_POS)                     # (B, 33)
    ed = bspline_encoding(d, EMB_DIR)                     # (B, 15)
    h = relu(lin(ex, p["w1"], p["b1"]))
    h = relu(lin(h, p["w2"], p["b2"]))
    h = relu(lin(h, p["w3"], p["b3"]))
    h = relu(lin(h, p["w4"], p["b4"]))
    h2 = relu(dot(h, p["w5h"]) + dot(ex, p["w5x"]) + p["b5"][:, 0])
    h2 = relu(lin(h2, p["w6"], p["b6"]))
    h2 = relu(lin(h2, p["w7"], p["b7"]))
    h3 = lin(h2, p["w8h"], p["b8h"])
    sigma = relu(jnp.sum(h2 * p["w8s"][:, 0][None, :], axis=1) + p["b8s"][0, 0])
    h4 = relu(dot(h3, p["w9h"]) + dot(ed, p["w9d"]) + p["b9"][:, 0])
    c = jax.nn.sigmoid(lin(h4, p["w10"], p["b10"]))
    return c, sigma


if __name__ == "__main__":
    key = jax.random.PRNGKey(0)
    kp, ko, kd = jax.random.split(key, 3)
    params = make_params(kp)

    # 1024 rays, tile 512 -> 2 "parallel" grid steps (keeps both v7x TCs busy).
    B = 1024
    o = jax.random.uniform(ko, (B, 3), jnp.float32, -1.0, 1.0)   # positions
    d = jax.random.uniform(kd, (B, 3), jnp.float32, -1.0, 1.0)   # directions

    c, sigma = nerf_forward(o, d, params, tb=512)
    jax.block_until_ready((c, sigma))

    c_ref, sigma_ref = nerf_forward_ref(o, d, params)
    np.testing.assert_allclose(np.asarray(c), np.asarray(c_ref), rtol=2e-3, atol=2e-3)
    np.testing.assert_allclose(np.asarray(sigma), np.asarray(sigma_ref),
                               rtol=2e-3, atol=2e-3)
    assert c.shape == (B, 3) and sigma.shape == (B,)

    print("KERNEL_OK")
</pallas_src>

<mosaic_0001>
module attributes {stable_mosaic.version = 11 : i64} {
  func.func @nerf_mlp_kernel(%arg0: i32, %arg1: memref<33x512xf32, #tpu.memory_space<vmem>>, %arg2: memref<15x512xf32, #tpu.memory_space<vmem>>, %arg3: memref<128x33xbf16, #tpu.memory_space<vmem>>, %arg4: memref<128x1xf32, #tpu.memory_space<vmem>>, %arg5: memref<128x128xbf16, #tpu.memory_space<vmem>>, %arg6: memref<128x1xf32, #tpu.memory_space<vmem>>, %arg7: memref<128x128xbf16, #tpu.memory_space<vmem>>, %arg8: memref<128x1xf32, #tpu.memory_space<vmem>>, %arg9: memref<128x128xbf16, #tpu.memory_space<vmem>>, %arg10: memref<128x1xf32, #tpu.memory_space<vmem>>, %arg11: memref<128x128xbf16, #tpu.memory_space<vmem>>, %arg12: memref<128x33xbf16, #tpu.memory_space<vmem>>, %arg13: memref<128x1xf32, #tpu.memory_space<vmem>>, %arg14: memref<128x128xbf16, #tpu.memory_space<vmem>>, %arg15: memref<128x1xf32, #tpu.memory_space<vmem>>, %arg16: memref<128x128xbf16, #tpu.memory_space<vmem>>, %arg17: memref<128x1xf32, #tpu.memory_space<vmem>>, %arg18: memref<128x128xbf16, #tpu.memory_space<vmem>>, %arg19: memref<128x1xf32, #tpu.memory_space<vmem>>, %arg20: memref<128x1xf32, #tpu.memory_space<vmem>>, %arg21: memref<1x1xf32, #tpu.memory_space<vmem>>, %arg22: memref<64x128xbf16, #tpu.memory_space<vmem>>, %arg23: memref<64x15xbf16, #tpu.memory_space<vmem>>, %arg24: memref<64x1xf32, #tpu.memory_space<vmem>>, %arg25: memref<3x64xbf16, #tpu.memory_space<vmem>>, %arg26: memref<3x1xf32, #tpu.memory_space<vmem>>, %arg27: memref<4x512xf32, #tpu.memory_space<vmem>>) attributes {dimension_semantics = [#tpu.dimension_semantics<parallel>], iteration_bounds = array<i64: 2>, scalar_prefetch = 0 : i64, scratch_operands = 0 : i64, tpu.core_type = #tpu.core_type<tc>, window_params = [{transform_indices = @transform_0, window_bounds = array<i64: 33, 512>}, {transform_indices = @transform_1, window_bounds = array<i64: 15, 512>}, {pipeline_mode = #tpu.pipeline_mode<synchronous>, transform_indices = @transform_2, window_bounds = array<i64: 128, 33>}, {pipeline_mode = #tpu.pipeline_mode<synchronous>, transform_indices = @transform_3, window_bounds = array<i64: 128, 1>}, {pipeline_mode = #tpu.pipeline_mode<synchronous>, transform_indices = @transform_4, window_bounds = array<i64: 128, 128>}, {pipeline_mode = #tpu.pipeline_mode<synchronous>, transform_indices = @transform_5, window_bounds = array<i64: 128, 1>}, {pipeline_mode = #tpu.pipeline_mode<synchronous>, transform_indices = @transform_6, window_bounds = array<i64: 128, 128>}, {pipeline_mode = #tpu.pipeline_mode<synchronous>, transform_indices = @transform_7, window_bounds = array<i64: 128, 1>}, {pipeline_mode = #tpu.pipeline_mode<synchronous>, transform_indices = @transform_8, window_bounds = array<i64: 128, 128>}, {pipeline_mode = #tpu.pipeline_mode<synchronous>, transform_indices = @transform_9, window_bounds = array<i64: 128, 1>}, {pipeline_mode = #tpu.pipeline_mode<synchronous>, transform_indices = @transform_10, window_bounds = array<i64: 128, 128>}, {pipeline_mode = #tpu.pipeline_mode<synchronous>, transform_indices = @transform_11, window_bounds = array<i64: 128, 33>}, {pipeline_mode = #tpu.pipeline_mode<synchronous>, transform_indices = @transform_12, window_bounds = array<i64: 128, 1>}, {pipeline_mode = #tpu.pipeline_mode<synchronous>, transform_indices = @transform_13, window_bounds = array<i64: 128, 128>}, {pipeline_mode = #tpu.pipeline_mode<synchronous>, transform_indices = @transform_14, window_bounds = array<i64: 128, 1>}, {pipeline_mode = #tpu.pipeline_mode<synchronous>, transform_indices = @transform_15, window_bounds = array<i64: 128, 128>}, {pipeline_mode = #tpu.pipeline_mode<synchronous>, transform_indices = @transform_16, window_bounds = array<i64: 128, 1>}, {pipeline_mode = #tpu.pipeline_mode<synchronous>, transform_indices = @transform_17, window_bounds = array<i64: 128, 128>}, {pipeline_mode = #tpu.pipeline_mode<synchronous>, transform_indices = @transform_18, window_bounds = array<i64: 128, 1>}, {pipeline_mode = #tpu.pipeline_mode<synchronous>, transform_indices = @transform_19, window_bounds = array<i64: 128, 1>}, {pipeline_mode = #tpu.pipeline_mode<synchronous>, transform_indices = @transform_20, window_bounds = array<i64: 1, 1>}, {pipeline_mode = #tpu.pipeline_mode<synchronous>, transform_indices = @transform_21, window_bounds = array<i64: 64, 128>}, {pipeline_mode = #tpu.pipeline_mode<synchronous>, transform_indices = @transform_22, window_bounds = array<i64: 64, 15>}, {pipeline_mode = #tpu.pipeline_mode<synchronous>, transform_indices = @transform_23, window_bounds = array<i64: 64, 1>}, {pipeline_mode = #tpu.pipeline_mode<synchronous>, transform_indices = @transform_24, window_bounds = array<i64: 3, 64>}, {pipeline_mode = #tpu.pipeline_mode<synchronous>, transform_indices = @transform_25, window_bounds = array<i64: 3, 1>}, {transform_indices = @transform_26, window_bounds = array<i64: 4, 512>}]} {
    %c0 = arith.constant 0 : index
    %c0_0 = arith.constant 0 : index
    %0 = vector.load %arg1[%c0, %c0_0] : memref<33x512xf32, #tpu.memory_space<vmem>>, vector<33x512xf32>
    %1 = arith.truncf %0 : vector<33x512xf32> to vector<33x512xbf16>
    %c0_1 = arith.constant 0 : index
    %c0_2 = arith.constant 0 : index
    %2 = vector.load %arg2[%c0_1, %c0_2] : memref<15x512xf32, #tpu.memory_space<vmem>>, vector<15x512xf32>
    %3 = arith.truncf %2 : vector<15x512xf32> to vector<15x512xbf16>
    %c0_3 = arith.constant 0 : index
    %c0_4 = arith.constant 0 : index
    %4 = vector.load %arg3[%c0_3, %c0_4] : memref<128x33xbf16, #tpu.memory_space<vmem>>, vector<128x33xbf16>
    %cst = arith.constant dense<0.000000e+00> : vector<128x512xf32>
    %5 = tpu.matmul %4, %1, %cst {dimension_numbers = #tpu.dot_dimension_numbers<[1], [0], [0], [1], [0, 0, 1, 1], [], []>} : vector<128x33xbf16>, vector<33x512xbf16>, vector<128x512xf32> -> vector<128x512xf32>
    %c0_5 = arith.constant 0 : index
    %c0_6 = arith.constant 0 : index
    %6 = vector.load %arg4[%c0_5, %c0_6] : memref<128x1xf32, #tpu.memory_space<vmem>>, vector<128x1xf32>
    %7 = vector.broadcast %6 : vector<128x1xf32> to vector<128x512xf32>
    %8 = arith.addf %5, %7 : vector<128x512xf32>
    %cst_7 = arith.constant 0.000000e+00 : f32
    %9 = vector.broadcast %cst_7 : f32 to vector<128x512xf32>
    %10 = arith.maximumf %8, %9 : vector<128x512xf32>
    %c0_8 = arith.constant 0 : index
    %c0_9 = arith.constant 0 : index
    %11 = vector.load %arg5[%c0_8, %c0_9] : memref<128x128xbf16, #tpu.memory_space<vmem>>, vector<128x128xbf16>
    %12 = arith.truncf %10 : vector<128x512xf32> to vector<128x512xbf16>
    %cst_10 = arith.constant dense<0.000000e+00> : vector<128x512xf32>
    %13 = tpu.matmul %11, %12, %cst_10 {dimension_numbers = #tpu.dot_dimension_numbers<[1], [0], [0], [1], [0, 0, 1, 1], [], []>} : vector<128x128xbf16>, vector<128x512xbf16>, vector<128x512xf32> -> vector<128x512xf32>
    %c0_11 = arith.constant 0 : index
    %c0_12 = arith.constant 0 : index
    %14 = vector.load %arg6[%c0_11, %c0_12] : memref<128x1xf32, #tpu.memory_space<vmem>>, vector<128x1xf32>
    %15 = vector.broadcast %14 : vector<128x1xf32> to vector<128x512xf32>
    %16 = arith.addf %13, %15 : vector<128x512xf32>
    %cst_13 = arith.constant 0.000000e+00 : f32
    %17 = vector.broadcast %cst_13 : f32 to vector<128x512xf32>
    %18 = arith.maximumf %16, %17 : vector<128x512xf32>
    %c0_14 = arith.constant 0 : index
    %c0_15 = arith.constant 0 : index
    %19 = vector.load %arg7[%c0_14, %c0_15] : memref<128x128xbf16, #tpu.memory_space<vmem>>, vector<128x128xbf16>
    %20 = arith.truncf %18 : vector<128x512xf32> to vector<128x512xbf16>
    %cst_16 = arith.constant dense<0.000000e+00> : vector<128x512xf32>
    %21 = tpu.matmul %19, %20, %cst_16 {dimension_numbers = #tpu.dot_dimension_numbers<[1], [0], [0], [1], [0, 0, 1, 1], [], []>} : vector<128x128xbf16>, vector<128x512xbf16>, vector<128x512xf32> -> vector<128x512xf32>
    %c0_17 = arith.constant 0 : index
    %c0_18 = arith.constant 0 : index
    %22 = vector.load %arg8[%c0_17, %c0_18] : memref<128x1xf32, #tpu.memory_space<vmem>>, vector<128x1xf32>
    %23 = vector.broadcast %22 : vector<128x1xf32> to vector<128x512xf32>
    %24 = arith.addf %21, %23 : vector<128x512xf32>
    %cst_19 = arith.constant 0.000000e+00 : f32
    %25 = vector.broadcast %cst_19 : f32 to vector<128x512xf32>
    %26 = arith.maximumf %24, %25 : vector<128x512xf32>
    %c0_20 = arith.constant 0 : index
    %c0_21 = arith.constant 0 : index
    %27 = vector.load %arg9[%c0_20, %c0_21] : memref<128x128xbf16, #tpu.memory_space<vmem>>, vector<128x128xbf16>
    %28 = arith.truncf %26 : vector<128x512xf32> to vector<128x512xbf16>
    %cst_22 = arith.constant dense<0.000000e+00> : vector<128x512xf32>
    %29 = tpu.matmul %27, %28, %cst_22 {dimension_numbers = #tpu.dot_dimension_numbers<[1], [0], [0], [1], [0, 0, 1, 1], [], []>} : vector<128x128xbf16>, vector<128x512xbf16>, vector<128x512xf32> -> vector<128x512xf32>
    %c0_23 = arith.constant 0 : index
    %c0_24 = arith.constant 0 : index
    %30 = vector.load %arg10[%c0_23, %c0_24] : memref<128x1xf32, #tpu.memory_space<vmem>>, vector<128x1xf32>
    %31 = vector.broadcast %30 : vector<128x1xf32> to vector<128x512xf32>
    %32 = arith.addf %29, %31 : vector<128x512xf32>
    %cst_25 = arith.constant 0.000000e+00 : f32
    %33 = vector.broadcast %cst_25 : f32 to vector<128x512xf32>
    %34 = arith.maximumf %32, %33 : vector<128x512xf32>
    %c0_26 = arith.constant 0 : index
    %c0_27 = arith.constant 0 : index
    %35 = vector.load %arg11[%c0_26, %c0_27] : memref<128x128xbf16, #tpu.memory_space<vmem>>, vector<128x128xbf16>
    %36 = arith.truncf %34 : vector<128x512xf32> to vector<128x512xbf16>
    %cst_28 = arith.constant dense<0.000000e+00> : vector<128x512xf32>
    %37 = tpu.matmul %35, %36, %cst_28 {dimension_numbers = #tpu.dot_dimension_numbers<[1], [0], [0], [1], [0, 0, 1, 1], [], []>} : vector<128x128xbf16>, vector<128x512xbf16>, vector<128x512xf32> -> vector<128x512xf32>
    %c0_29 = arith.constant 0 : index
    %c0_30 = arith.constant 0 : index
    %38 = vector.load %arg12[%c0_29, %c0_30] : memref<128x33xbf16, #tpu.memory_space<vmem>>, vector<128x33xbf16>
    %cst_31 = arith.constant dense<0.000000e+00> : vector<128x512xf32>
    %39 = tpu.matmul %38, %1, %cst_31 {dimension_numbers = #tpu.dot_dimension_numbers<[1], [0], [0], [1], [0, 0, 1, 1], [], []>} : vector<128x33xbf16>, vector<33x512xbf16>, vector<128x512xf32> -> vector<128x512xf32>
    %40 = arith.addf %37, %39 : vector<128x512xf32>
    %c0_32 = arith.constant 0 : index
    %c0_33 = arith.constant 0 : index
    %41 = vector.load %arg13[%c0_32, %c0_33] : memref<128x1xf32, #tpu.memory_space<vmem>>, vector<128x1xf32>
    %42 = vector.broadcast %41 : vector<128x1xf32> to vector<128x512xf32>
    %43 = arith.addf %40, %42 : vector<128x512xf32>
    %cst_34 = arith.constant 0.000000e+00 : f32
    %44 = vector.broadcast %cst_34 : f32 to vector<128x512xf32>
    %45 = arith.maximumf %43, %44 : vector<128x512xf32>
    %c0_35 = arith.constant 0 : index
    %c0_36 = arith.constant 0 : index
    %46 = vector.load %arg14[%c0_35, %c0_36] : memref<128x128xbf16, #tpu.memory_space<vmem>>, vector<128x128xbf16>
    %47 = arith.truncf %45 : vector<128x512xf32> to vector<128x512xbf16>
    %cst_37 = arith.constant dense<0.000000e+00> : vector<128x512xf32>
    %48 = tpu.matmul %46, %47, %cst_37 {dimension_numbers = #tpu.dot_dimension_numbers<[1], [0], [0], [1], [0, 0, 1, 1], [], []>} : vector<128x128xbf16>, vector<128x512xbf16>, vector<128x512xf32> -> vector<128x512xf32>
    %c0_38 = arith.constant 0 : index
    %c0_39 = arith.constant 0 : index
    %49 = vector.load %arg15[%c0_38, %c0_39] : memref<128x1xf32, #tpu.memory_space<vmem>>, vector<128x1xf32>
    %50 = vector.broadcast %49 : vector<128x1xf32> to vector<128x512xf32>
    %51 = arith.addf %48, %50 : vector<128x512xf32>
    %cst_40 = arith.constant 0.000000e+00 : f32
    %52 = vector.broadcast %cst_40 : f32 to vector<128x512xf32>
    %53 = arith.maximumf %51, %52 : vector<128x512xf32>
    %c0_41 = arith.constant 0 : index
    %c0_42 = arith.constant 0 : index
    %54 = vector.load %arg16[%c0_41, %c0_42] : memref<128x128xbf16, #tpu.memory_space<vmem>>, vector<128x128xbf16>
    %55 = arith.truncf %53 : vector<128x512xf32> to vector<128x512xbf16>
    %cst_43 = arith.constant dense<0.000000e+00> : vector<128x512xf32>
    %56 = tpu.matmul %54, %55, %cst_43 {dimension_numbers = #tpu.dot_dimension_numbers<[1], [0], [0], [1], [0, 0, 1, 1], [], []>} : vector<128x128xbf16>, vector<128x512xbf16>, vector<128x512xf32> -> vector<128x512xf32>
    %c0_44 = arith.constant 0 : index
    %c0_45 = arith.constant 0 : index
    %57 = vector.load %arg17[%c0_44, %c0_45] : memref<128x1xf32, #tpu.memory_space<vmem>>, vector<128x1xf32>
    %58 = vector.broadcast %57 : vector<128x1xf32> to vector<128x512xf32>
    %59 = arith.addf %56, %58 : vector<128x512xf32>
    %cst_46 = arith.constant 0.000000e+00 : f32
    %60 = vector.broadcast %cst_46 : f32 to vector<128x512xf32>
    %61 = arith.maximumf %59, %60 : vector<128x512xf32>
    %c0_47 = arith.constant 0 : index
    %c0_48 = arith.constant 0 : index
    %62 = vector.load %arg18[%c0_47, %c0_48] : memref<128x128xbf16, #tpu.memory_space<vmem>>, vector<128x128xbf16>
    %63 = arith.truncf %61 : vector<128x512xf32> to vector<128x512xbf16>
    %cst_49 = arith.constant dense<0.000000e+00> : vector<128x512xf32>
    %64 = tpu.matmul %62, %63, %cst_49 {dimension_numbers = #tpu.dot_dimension_numbers<[1], [0], [0], [1], [0, 0, 1, 1], [], []>} : vector<128x128xbf16>, vector<128x512xbf16>, vector<128x512xf32> -> vector<128x512xf32>
    %c0_50 = arith.constant 0 : index
    %c0_51 = arith.constant 0 : index
    %65 = vector.load %arg19[%c0_50, %c0_51] : memref<128x1xf32, #tpu.memory_space<vmem>>, vector<128x1xf32>
    %66 = vector.broadcast %65 : vector<128x1xf32> to vector<128x512xf32>
    %67 = arith.addf %64, %66 : vector<128x512xf32>
    %c0_52 = arith.constant 0 : index
    %c0_53 = arith.constant 0 : index
    %68 = vector.load %arg20[%c0_52, %c0_53] : memref<128x1xf32, #tpu.memory_space<vmem>>, vector<128x1xf32>
    %69 = vector.broadcast %68 : vector<128x1xf32> to vector<128x512xf32>
    %70 = arith.mulf %61, %69 : vector<128x512xf32>
    %cst_54 = arith.constant dense<0.000000e+00> : vector<512xf32>
    %71 = vector.multi_reduction <add>, %70, %cst_54 [0] : vector<128x512xf32> to vector<512xf32>
    %72 = vector.shape_cast %71 : vector<512xf32> to vector<1x512xf32>
    %c0_55 = arith.constant 0 : index
    %c0_56 = arith.constant 0 : index
    %73 = vector.load %arg21[%c0_55, %c0_56] : memref<1x1xf32, #tpu.memory_space<vmem>>, vector<1x1xf32>
    %74 = vector.broadcast %73 : vector<1x1xf32> to vector<1x512xf32>
    %75 = arith.addf %72, %74 : vector<1x512xf32>
    %cst_57 = arith.constant 0.000000e+00 : f32
    %76 = vector.broadcast %cst_57 : f32 to vector<1x512xf32>
    %77 = arith.maximumf %75, %76 : vector<1x512xf32>
    %c0_58 = arith.constant 0 : index
    %c0_59 = arith.constant 0 : index
    %78 = vector.load %arg22[%c0_58, %c0_59] : memref<64x128xbf16, #tpu.memory_space<vmem>>, vector<64x128xbf16>
    %79 = arith.truncf %67 : vector<128x512xf32> to vector<128x512xbf16>
    %cst_60 = arith.constant dense<0.000000e+00> : vector<64x512xf32>
    %80 = tpu.matmul %78, %79, %cst_60 {dimension_numbers = #tpu.dot_dimension_numbers<[1], [0], [0], [1], [0, 0, 1, 1], [], []>} : vector<64x128xbf16>, vector<128x512xbf16>, vector<64x512xf32> -> vector<64x512xf32>
    %c0_61 = arith.constant 0 : index
    %c0_62 = arith.constant 0 : index
    %81 = vector.load %arg23[%c0_61, %c0_62] : memref<64x15xbf16, #tpu.memory_space<vmem>>, vector<64x15xbf16>
    %cst_63 = arith.constant dense<0.000000e+00> : vector<64x512xf32>
    %82 = tpu.matmul %81, %3, %cst_63 {dimension_numbers = #tpu.dot_dimension_numbers<[1], [0], [0], [1], [0, 0, 1, 1], [], []>} : vector<64x15xbf16>, vector<15x512xbf16>, vector<64x512xf32> -> vector<64x512xf32>
    %83 = arith.addf %80, %82 : vector<64x512xf32>
    %c0_64 = arith.constant 0 : index
    %c0_65 = arith.constant 0 : index
    %84 = vector.load %arg24[%c0_64, %c0_65] : memref<64x1xf32, #tpu.memory_space<vmem>>, vector<64x1xf32>
    %85 = vector.broadcast %84 : vector<64x1xf32> to vector<64x512xf32>
    %86 = arith.addf %83, %85 : vector<64x512xf32>
    %cst_66 = arith.constant 0.000000e+00 : f32
    %87 = vector.broadcast %cst_66 : f32 to vector<64x512xf32>
    %88 = arith.maximumf %86, %87 : vector<64x512xf32>
    %c0_67 = arith.constant 0 : index
    %c0_68 = arith.constant 0 : index
    %89 = vector.load %arg25[%c0_67, %c0_68] : memref<3x64xbf16, #tpu.memory_space<vmem>>, vector<3x64xbf16>
    %90 = arith.truncf %88 : vector<64x512xf32> to vector<64x512xbf16>
    %cst_69 = arith.constant dense<0.000000e+00> : vector<3x512xf32>
    %91 = tpu.matmul %89, %90, %cst_69 {dimension_numbers = #tpu.dot_dimension_numbers<[1], [0], [0], [1], [0, 0, 1, 1], [], []>} : vector<3x64xbf16>, vector<64x512xbf16>, vector<3x512xf32> -> vector<3x512xf32>
    %c0_70 = arith.constant 0 : index
    %c0_71 = arith.constant 0 : index
    %92 = vector.load %arg26[%c0_70, %c0_71] : memref<3x1xf32, #tpu.memory_space<vmem>>, vector<3x1xf32>
    %93 = vector.broadcast %92 : vector<3x1xf32> to vector<3x512xf32>
    %94 = arith.addf %91, %93 : vector<3x512xf32>
    %95 = arith.negf %94 : vector<3x512xf32>
    %96 = math.exp %95 : vector<3x512xf32>
    %cst_72 = arith.constant 1.000000e+00 : f32
    %97 = vector.broadcast %cst_72 : f32 to vector<3x512xf32>
    %98 = arith.addf %97, %96 : vector<3x512xf32>
    %99 = arith.divf %97, %98 : vector<3x512xf32>
    %c0_73 = arith.constant 0 : index
    %c0_74 = arith.constant 0 : index
    %100 = vector.load %arg27[%c0_73, %c0_74] : memref<4x512xf32, #tpu.memory_space<vmem>>, vector<3x512xf32>
    tpu.vector_store %arg27[%c0_73, %c0_74], %99 {strides = array<i32>} : memref<4x512xf32, #tpu.memory_space<vmem>>, vector<3x512xf32>,
    %c3 = arith.constant 3 : index
    %c0_75 = arith.constant 0 : index
    %101 = vector.load %arg27[%c3, %c0_75] : memref<4x512xf32, #tpu.memory_space<vmem>>, vector<1x512xf32>
    tpu.vector_store %arg27[%c3, %c0_75], %77 {strides = array<i32>} : memref<4x512xf32, #tpu.memory_space<vmem>>, vector<1x512xf32>,
    return
  }
  func.func @transform_0(%arg0: i32) -> (i32, i32) {
    %c0_i32 = arith.constant 0 : i32
    %c0_i32_0 = arith.constant 0 : i32
    return %c0_i32, %arg0 : i32, i32
  }
  func.func @transform_1(%arg0: i32) -> (i32, i32) {
    %c0_i32 = arith.constant 0 : i32
    %c0_i32_0 = arith.constant 0 : i32
    return %c0_i32, %arg0 : i32, i32
  }
  func.func @transform_2(%arg0: i32) -> (i32, i32) {
    %c0_i32 = arith.constant 0 : i32
    %c0_i32_0 = arith.constant 0 : i32
    %c0_i32_1 = arith.constant 0 : i32
    return %c0_i32, %c0_i32_0 : i32, i32
  }
  func.func @transform_3(%arg0: i32) -> (i32, i32) {
    %c0_i32 = arith.constant 0 : i32
    %c0_i32_0 = arith.constant 0 : i32
    %c0_i32_1 = arith.constant 0 : i32
    return %c0_i32, %c0_i32_0 : i32, i32
  }
  func.func @transform_4(%arg0: i32) -> (i32, i32) {
    %c0_i32 = arith.constant 0 : i32
    %c0_i32_0 = arith.constant 0 : i32
    %c0_i32_1 = arith.constant 0 : i32
    return %c0_i32, %c0_i32_0 : i32, i32
  }
  func.func @transform_5(%arg0: i32) -> (i32, i32) {
    %c0_i32 = arith.constant 0 : i32
    %c0_i32_0 = arith.constant 0 : i32
    %c0_i32_1 = arith.constant 0 : i32
    return %c0_i32, %c0_i32_0 : i32, i32
  }
  func.func @transform_6(%arg0: i32) -> (i32, i32) {
    %c0_i32 = arith.constant 0 : i32
    %c0_i32_0 = arith.constant 0 : i32
    %c0_i32_1 = arith.constant 0 : i32
    return %c0_i32, %c0_i32_0 : i32, i32
  }
  func.func @transform_7(%arg0: i32) -> (i32, i32) {
    %c0_i32 = arith.constant 0 : i32
    %c0_i32_0 = arith.constant 0 : i32
    %c0_i32_1 = arith.constant 0 : i32
    return %c0_i32, %c0_i32_0 : i32, i32
  }
  func.func @transform_8(%arg0: i32) -> (i32, i32) {
    %c0_i32 = arith.constant 0 : i32
    %c0_i32_0 = arith.constant 0 : i32
    %c0_i32_1 = arith.constant 0 : i32
    return %c0_i32, %c0_i32_0 : i32, i32
  }
  func.func @transform_9(%arg0: i32) -> (i32, i32) {
    %c0_i32 = arith.constant 0 : i32
    %c0_i32_0 = arith.constant 0 : i32
    %c0_i32_1 = arith.constant 0 : i32
    return %c0_i32, %c0_i32_0 : i32, i32
  }
  func.func @transform_10(%arg0: i32) -> (i32, i32) {
    %c0_i32 = arith.constant 0 : i32
    %c0_i32_0 = arith.constant 0 : i32
    %c0_i32_1 = arith.constant 0 : i32
    return %c0_i32, %c0_i32_0 : i32, i32
  }
  func.func @transform_11(%arg0: i32) -> (i32, i32) {
    %c0_i32 = arith.constant 0 : i32
    %c0_i32_0 = arith.constant 0 : i32
    %c0_i32_1 = arith.constant 0 : i32
    return %c0_i32, %c0_i32_0 : i32, i32
  }
  func.func @transform_12(%arg0: i32) -> (i32, i32) {
    %c0_i32 = arith.constant 0 : i32
    %c0_i32_0 = arith.constant 0 : i32
    %c0_i32_1 = arith.constant 0 : i32
    return %c0_i32, %c0_i32_0 : i32, i32
  }
  func.func @transform_13(%arg0: i32) -> (i32, i32) {
    %c0_i32 = arith.constant 0 : i32
    %c0_i32_0 = arith.constant 0 : i32
    %c0_i32_1 = arith.constant 0 : i32
    return %c0_i32, %c0_i32_0 : i32, i32
  }
  func.func @transform_14(%arg0: i32) -> (i32, i32) {
    %c0_i32 = arith.constant 0 : i32
    %c0_i32_0 = arith.constant 0 : i32
    %c0_i32_1 = arith.constant 0 : i32
    return %c0_i32, %c0_i32_0 : i32, i32
  }
  func.func @transform_15(%arg0: i32) -> (i32, i32) {
    %c0_i32 = arith.constant 0 : i32
    %c0_i32_0 = arith.constant 0 : i32
    %c0_i32_1 = arith.constant 0 : i32
    return %c0_i32, %c0_i32_0 : i32, i32
  }
  func.func @transform_16(%arg0: i32) -> (i32, i32) {
    %c0_i32 = arith.constant 0 : i32
    %c0_i32_0 = arith.constant 0 : i32
    %c0_i32_1 = arith.constant 0 : i32
    return %c0_i32, %c0_i32_0 : i32, i32
  }
  func.func @transform_17(%arg0: i32) -> (i32, i32) {
    %c0_i32 = arith.constant 0 : i32
    %c0_i32_0 = arith.constant 0 : i32
    %c0_i32_1 = arith.constant 0 : i32
    return %c0_i32, %c0_i32_0 : i32, i32
  }
  func.func @transform_18(%arg0: i32) -> (i32, i32) {
    %c0_i32 = arith.constant 0 : i32
    %c0_i32_0 = arith.constant 0 : i32
    %c0_i32_1 = arith.constant 0 : i32
    return %c0_i32, %c0_i32_0 : i32, i32
  }
  func.func @transform_19(%arg0: i32) -> (i32, i32) {
    %c0_i32 = arith.constant 0 : i32
    %c0_i32_0 = arith.constant 0 : i32
    %c0_i32_1 = arith.constant 0 : i32
    return %c0_i32, %c0_i32_0 : i32, i32
  }
  func.func @transform_20(%arg0: i32) -> (i32, i32) {
    %c0_i32 = arith.constant 0 : i32
    %c0_i32_0 = arith.constant 0 : i32
    %c0_i32_1 = arith.constant 0 : i32
    return %c0_i32, %c0_i32_0 : i32, i32
  }
  func.func @transform_21(%arg0: i32) -> (i32, i32) {
    %c0_i32 = arith.constant 0 : i32
    %c0_i32_0 = arith.constant 0 : i32
    %c0_i32_1 = arith.constant 0 : i32
    return %c0_i32, %c0_i32_0 : i32, i32
  }
  func.func @transform_22(%arg0: i32) -> (i32, i32) {
    %c0_i32 = arith.constant 0 : i32
    %c0_i32_0 = arith.constant 0 : i32
    %c0_i32_1 = arith.constant 0 : i32
    return %c0_i32, %c0_i32_0 : i32, i32
  }
  func.func @transform_23(%arg0: i32) -> (i32, i32) {
    %c0_i32 = arith.constant 0 : i32
    %c0_i32_0 = arith.constant 0 : i32
    %c0_i32_1 = arith.constant 0 : i32
    return %c0_i32, %c0_i32_0 : i32, i32
  }
  func.func @transform_24(%arg0: i32) -> (i32, i32) {
    %c0_i32 = arith.constant 0 : i32
    %c0_i32_0 = arith.constant 0 : i32
    %c0_i32_1 = arith.constant 0 : i32
    return %c0_i32, %c0_i32_0 : i32, i32
  }
  func.func @transform_25(%arg0: i32) -> (i32, i32) {
    %c0_i32 = arith.constant 0 : i32
    %c0_i32_0 = arith.constant 0 : i32
    %c0_i32_1 = arith.constant 0 : i32
    return %c0_i32, %c0_i32_0 : i32, i32
  }
  func.func @transform_26(%arg0: i32) -> (i32, i32) {
    %c0_i32 = arith.constant 0 : i32
    %c0_i32_0 = arith.constant 0 : i32
    return %c0_i32, %arg0 : i32, i32
  }
}

</mosaic_0001>

<llo_original>
// kernel: nerf_forward.1
$region0: #{nerf_forward.1}
  #allocation0 [shape = 'u32[]', space=smem, size = 0x4, offset = 0x4, fixed_abs, tag = 'smem constant byte address 0x4 - core index']
  #allocation1 [shape = 'u32[72,128]{1,0:T(1,128)}', space=vmem, size = 0x9000, scoped, tag = 'internal scratch']
  #allocation2 [shape = 'f32[1,1]{1,0:T(1,128)S(1)}', space=vmem, size = 0x200, scoped, tag = 'scoped memory for nerf_forward.1']
  %s0 = inlined_call_operand.vmem [shape: f32[33,1024], index: 0, kind: input, shape index: {}]
  %s1 = inlined_call_operand.vmem [shape: f32[15,1024], index: 1, kind: input, shape index: {}]
  %s2 = inlined_call_operand.vmem [shape: bf16[128,33], index: 2, kind: input, shape index: {}]
  %s3 = inlined_call_operand.vmem [shape: f32[128,1], index: 3, kind: input, shape index: {}]
  %s4 = inlined_call_operand.vmem [shape: bf16[128,128], index: 4, kind: input, shape index: {}]
  %s5 = inlined_call_operand.vmem [shape: f32[128,1], index: 5, kind: input, shape index: {}]
  %s6 = inlined_call_operand.vmem [shape: bf16[128,128], index: 6, kind: input, shape index: {}]
  %s7 = inlined_call_operand.vmem [shape: f32[128,1], index: 7, kind: input, shape index: {}]
  %s8 = inlined_call_operand.vmem [shape: bf16[128,128], index: 8, kind: input, shape index: {}]
  %s9 = inlined_call_operand.vmem [shape: f32[128,1], index: 9, kind: input, shape index: {}]
  %s10 = inlined_call_operand.vmem [shape: bf16[128,128], index: 10, kind: input, shape index: {}]
  %s11 = inlined_call_operand.vmem [shape: bf16[128,33], index: 11, kind: input, shape index: {}]
  %s12 = inlined_call_operand.vmem [shape: f32[128,1], index: 12, kind: input, shape index: {}]
  %s13 = inlined_call_operand.vmem [shape: bf16[128,128], index: 13, kind: input, shape index: {}]
  %s14 = inlined_call_operand.vmem [shape: f32[128,1], index: 14, kind: input, shape index: {}]
  %s15 = inlined_call_operand.vmem [shape: bf16[128,128], index: 15, kind: input, shape index: {}]
  %s16 = inlined_call_operand.vmem [shape: f32[128,1], index: 16, kind: input, shape index: {}]
  %s17 = inlined_call_operand.vmem [shape: bf16[128,128], index: 17, kind: input, shape index: {}]
  %s18 = inlined_call_operand.vmem [shape: f32[128,1], index: 18, kind: input, shape index: {}]
  %s19 = inlined_call_operand.vmem [shape: f32[128,1], index: 19, kind: input, shape index: {}]
  %s20 = inlined_call_operand.<no memory space> [shape: f32[1,1], index: 20, kind: input, shape index: {}]
  %s21 = inlined_call_operand.vmem [shape: bf16[64,128], index: 21, kind: input, shape index: {}]
  %s22 = inlined_call_operand.vmem [shape: bf16[64,15], index: 22, kind: input, shape index: {}]
  %s23 = inlined_call_operand.vmem [shape: f32[64,1], index: 23, kind: input, shape index: {}]
  %s24 = inlined_call_operand.vmem [shape: bf16[3,64], index: 24, kind: input, shape index: {}]
  %s25 = inlined_call_operand.vmem [shape: f32[3,1], index: 25, kind: input, shape index: {}]
  %s26 = inlined_call_operand.vmem [shape: f32[4,1024], index: 26, kind: output, shape index: {}]
  %s27 = sld [smem:[#allocation0]]
  $region183: #{nerf_forward.1} parent=0
    _
  %s29 = ssub.s32 1, %s27
  %s30 = scalar_select 0, %s29, %s27
  %v31 = vstv %s20
  %32 = vst [vmem:[#allocation2] sm:$0x1] %v31
  $region1: #{nerf_forward.1} parent=0
    #allocation3 [shape = 'u8[163840]{0}', space=vmem, size = 0x28000, scoped, tag = 'input window, operand 0']
    #allocation4 [shape = 'u8[65536]{0}', space=vmem, size = 0x10000, scoped, tag = 'input window, operand 1']
    loop: start=0, step=1, limit=4
    $region2: #{nerf_forward.1} parent=1 // loop_pre_header
      _
    $region3: #{nerf_forward.1} parent=1 // loop_header
      %s34 = sphi 0, %s38
      %p35 = scmp.ge.s32.totalorder %s34, 4
      %s44 = sphi 0, %s46
      %s47 = sphi 0, %s44
      %s48 = sphi 0, %s47
      %s64 = sphi 0, %s48
      %s70 = sphi 0, %s72
      %s73 = sphi 0, %s70
      %s74 = sphi 0, %s73
      %s90 = sphi 0, %s74
      %s94 = sphi 0, %s94
      %s96 = sphi 0, %s94
      %s97 = sphi 0, %s96
      %s111 = sphi 0, %s97
      %s115 = sphi 0, %s115
      %s117 = sphi 0, %s115
      %s118 = sphi 0, %s117
      %s132 = sphi 0, %s118
      %s136 = sphi 0, %s136
      %s138 = sphi 0, %s136
      %s139 = sphi 0, %s138
      %s153 = sphi 0, %s139
      %s157 = sphi 0, %s157
      %s159 = sphi 0, %s157
      %s160 = sphi 0, %s159
      %s174 = sphi 0, %s160
      %s178 = sphi 0, %s178
      %s180 = sphi 0, %s178
      %s181 = sphi 0, %s180
      %s195 = sphi 0, %s181
      %s199 = sphi 0, %s199
      %s201 = sphi 0, %s199
      %s202 = sphi 0, %s201
      %s216 = sphi 0, %s202
      %s220 = sphi 0, %s220
      %s222 = sphi 0, %s220
      %s223 = sphi 0, %s222
      %s237 = sphi 0, %s223
      %s241 = sphi 0, %s241
      %s243 = sphi 0, %s241
      %s244 = sphi 0, %s243
      %s258 = sphi 0, %s244
      %s262 = sphi 0, %s262
      %s264 = sphi 0, %s262
      %s265 = sphi 0, %s264
      %s279 = sphi 0, %s265
      %s283 = sphi 0, %s283
      %s285 = sphi 0, %s283
      %s286 = sphi 0, %s285
      %s300 = sphi 0, %s286
      %s304 = sphi 0, %s304
      %s306 = sphi 0, %s304
      %s307 = sphi 0, %s306
      %s321 = sphi 0, %s307
      %s325 = sphi 0, %s325
      %s327 = sphi 0, %s325
      %s328 = sphi 0, %s327
      %s342 = sphi 0, %s328
      %s346 = sphi 0, %s346
      %s348 = sphi 0, %s346
      %s349 = sphi 0, %s348
      %s363 = sphi 0, %s349
      %s367 = sphi 0, %s367
      %s369 = sphi 0, %s367
      %s370 = sphi 0, %s369
      %s384 = sphi 0, %s370
      %s388 = sphi 0, %s388
      %s390 = sphi 0, %s388
      %s391 = sphi 0, %s390
      %s405 = sphi 0, %s391
      %s409 = sphi 0, %s409
      %s411 = sphi 0, %s409
      %s412 = sphi 0, %s411
      %s426 = sphi 0, %s412
      %s430 = sphi 0, %s430
      %s432 = sphi 0, %s430
      %s433 = sphi 0, %s432
      %s447 = sphi 0, %s433
      %s451 = sphi 0, %s451
      %s453 = sphi 0, %s451
      %s454 = sphi 0, %s453
      %s468 = sphi 0, %s454
      %s472 = sphi 0, %s472
      %s474 = sphi 0, %s472
      %s475 = sphi 0, %s474
      %s489 = sphi 0, %s475
      %s493 = sphi 0, %s493
      %s495 = sphi 0, %s493
      %s496 = sphi 0, %s495
      %s510 = sphi 0, %s496
      %s514 = sphi 0, %s514
      %s516 = sphi 0, %s514
      %s517 = sphi 0, %s516
      %s531 = sphi 0, %s517
      %s535 = sphi 0, %s535
      %s537 = sphi 0, %s535
      %s538 = sphi 0, %s537
      %s552 = sphi 0, %s538
      %s556 = sphi 0, %s556
      %s558 = sphi 0, %s556
      %s559 = sphi 0, %s558
      %s573 = sphi 0, %s559
      %s577 = sphi 0, %s577
      %s579 = sphi 0, %s577
      %s580 = sphi 0, %s579
      %s594 = sphi 0, %s580
      %s600 = sphi 0, %s602
      %s603 = sphi 0, %s600
      %s604 = sphi 0, %s603
      %s620 = sphi 0, %s604
    $region4: #{nerf_forward.1} parent=1 // loop_header_branch
      %37 = sbr.rel (%p35) target = $region8
    $region5: #{nerf_forward.1} parent=1 // loop_body
      %s39 = ssub.s32 %s34, 1
      %s40 = ssub.s32 %s34, 2
      %s41 = sadd.s32 %s34, 1
      %s42 = ssub.s32 %s34, %s41
      %p43 = scmp.eq.s32.totalorder %s42, 0
      %s45 = sadd.s32 %s44, 1
      %s46 = scalar_select %p43, %s44, %s45
      %p49 = pneg %p43
      %p50 = scmp.eq.s32.totalorder %s34, 1
      %p51 = por %p49, %p50
      %p52 = scmp.ne.s32.totalorder %s44, %s47
      %p53 = scmp.eq.s32.totalorder %s34, 0
      %p54 = por %p52, %p53
      %p55 = scmp.ne.s32.totalorder %s44, %s47
      %p56 = scmp.eq.s32.totalorder %s39, 1
      %p57 = por %p55, %p56
      %p58 = scmp.ne.s32.totalorder %s47, %s48
      %p59 = scmp.eq.s32.totalorder %s39, 0
      %p60 = por %p58, %p59
      %p61 = scmp.ne.s32.totalorder %s47, %s48
      %p62 = scmp.eq.s32.totalorder %s40, 1
      %p63 = por %p61, %p62
      %p65 = scmp.ne.s32.totalorder %s48, %s64
      %p66 = scmp.eq.s32.totalorder %s40, 0
      %p67 = por %p65, %p66
      %s68 = ssub.s32 %s34, %s41
      %p69 = scmp.eq.s32.totalorder %s68, 0
      %s71 = sadd.s32 %s70, 1
      %s72 = scalar_select %p69, %s70, %s71
      %p75 = pneg %p69
      %p76 = scmp.eq.s32.totalorder %s34, 1
      %p77 = por %p75, %p76
      %p78 = scmp.ne.s32.totalorder %s70, %s73
      %p79 = scmp.eq.s32.totalorder %s34, 0
      %p80 = por %p78, %p79
      %p81 = scmp.ne.s32.totalorder %s70, %s73
      %p82 = scmp.eq.s32.totalorder %s39, 1
      %p83 = por %p81, %p82
      %p84 = scmp.ne.s32.totalorder %s73, %s74
      %p85 = scmp.eq.s32.totalorder %s39, 0
      %p86 = por %p84, %p85
      %p87 = scmp.ne.s32.totalorder %s73, %s74
      %p88 = scmp.eq.s32.totalorder %s40, 1
      %p89 = por %p87, %p88
      %p91 = scmp.ne.s32.totalorder %s74, %s90
      %p92 = scmp.eq.s32.totalorder %s40, 0
      %p93 = por %p91, %p92
      %s95 = sadd.s32 %s94, 1
      %p98 = scmp.eq.s32.totalorder %s34, 1
      %p99 = scmp.ne.s32.totalorder %s94, %s96
      %p100 = scmp.eq.s32.totalorder %s34, 0
      %p101 = por %p99, %p100
      %p102 = scmp.ne.s32.totalorder %s94, %s96
      %p103 = scmp.eq.s32.totalorder %s39, 1
      %p104 = por %p102, %p103
      %p105 = scmp.ne.s32.totalorder %s96, %s97
      %p106 = scmp.eq.s32.totalorder %s39, 0
      %p107 = por %p105, %p106
      %p108 = scmp.ne.s32.totalorder %s96, %s97
      %p109 = scmp.eq.s32.totalorder %s40, 1
      %p110 = por %p108, %p109
      %p112 = scmp.ne.s32.totalorder %s97, %s111
      %p113 = scmp.eq.s32.totalorder %s40, 0
      %p114 = por %p112, %p113
      %s116 = sadd.s32 %s115, 1
      %p119 = scmp.eq.s32.totalorder %s34, 1
      %p120 = scmp.ne.s32.totalorder %s115, %s117
      %p121 = scmp.eq.s32.totalorder %s34, 0
      %p122 = por %p120, %p121
      %p123 = scmp.ne.s32.totalorder %s115, %s117
      %p124 = scmp.eq.s32.totalorder %s39, 1
      %p125 = por %p123, %p124
      %p126 = scmp.ne.s32.totalorder %s117, %s118
      %p127 = scmp.eq.s32.totalorder %s39, 0
      %p128 = por %p126, %p127
      %p129 = scmp.ne.s32.totalorder %s117, %s118
      %p130 = scmp.eq.s32.totalorder %s40, 1
      %p131 = por %p129, %p130
      %p133 = scmp.ne.s32.totalorder %s118, %s132
      %p134 = scmp.eq.s32.totalorder %s40, 0
      %p135 = por %p133, %p134
      %s137 = sadd.s32 %s136, 1
      %p140 = scmp.eq.s32.totalorder %s34, 1
      %p141 = scmp.ne.s32.totalorder %s136, %s138
      %p142 = scmp.eq.s32.totalorder %s34, 0
      %p143 = por %p141, %p142
      %p144 = scmp.ne.s32.totalorder %s136, %s138
      %p145 = scmp.eq.s32.totalorder %s39, 1
      %p146 = por %p144, %p145
      %p147 = scmp.ne.s32.totalorder %s138, %s139
      %p148 = scmp.eq.s32.totalorder %s39, 0
      %p149 = por %p147, %p148
      %p150 = scmp.ne.s32.totalorder %s138, %s139
      %p151 = scmp.eq.s32.totalorder %s40, 1
      %p152 = por %p150, %p151
      %p154 = scmp.ne.s32.totalorder %s139, %s153
      %p155 = scmp.eq.s32.totalorder %s40, 0
      %p156 = por %p154, %p155
      %s158 = sadd.s32 %s157, 1
      %p161 = scmp.eq.s32.totalorder %s34, 1
      %p162 = scmp.ne.s32.totalorder %s157, %s159
      %p163 = scmp.eq.s32.totalorder %s34, 0
      %p164 = por %p162, %p163
      %p165 = scmp.ne.s32.totalorder %s157, %s159
      %p166 = scmp.eq.s32.totalorder %s39, 1
      %p167 = por %p165, %p166
      %p168 = scmp.ne.s32.totalorder %s159, %s160
      %p169 = scmp.eq.s32.totalorder %s39, 0
      %p170 = por %p168, %p169
      %p171 = scmp.ne.s32.totalorder %s159, %s160
      %p172 = scmp.eq.s32.totalorder %s40, 1
      %p173 = por %p171, %p172
      %p175 = scmp.ne.s32.totalorder %s160, %s174
      %p176 = scmp.eq.s32.totalorder %s40, 0
      %p177 = por %p175, %p176
      %s179 = sadd.s32 %s178, 1
      %p182 = scmp.eq.s32.totalorder %s34, 1
      %p183 = scmp.ne.s32.totalorder %s178, %s180
      %p184 = scmp.eq.s32.totalorder %s34, 0
      %p185 = por %p183, %p184
      %p186 = scmp.ne.s32.totalorder %s178, %s180
      %p187 = scmp.eq.s32.totalorder %s39, 1
      %p188 = por %p186, %p187
      %p189 = scmp.ne.s32.totalorder %s180, %s181
      %p190 = scmp.eq.s32.totalorder %s39, 0
      %p191 = por %p189, %p190
      %p192 = scmp.ne.s32.totalorder %s180, %s181
      %p193 = scmp.eq.s32.totalorder %s40, 1
      %p194 = por %p192, %p193
      %p196 = scmp.ne.s32.totalorder %s181, %s195
      %p197 = scmp.eq.s32.totalorder %s40, 0
      %p198 = por %p196, %p197
      %s200 = sadd.s32 %s199, 1
      %p203 = scmp.eq.s32.totalorder %s34, 1
      %p204 = scmp.ne.s32.totalorder %s199, %s201
      %p205 = scmp.eq.s32.totalorder %s34, 0
      %p206 = por %p204, %p205
      %p207 = scmp.ne.s32.totalorder %s199, %s201
      %p208 = scmp.eq.s32.totalorder %s39, 1
      %p209 = por %p207, %p208
      %p210 = scmp.ne.s32.totalorder %s201, %s202
      %p211 = scmp.eq.s32.totalorder %s39, 0
      %p212 = por %p210, %p211
      %p213 = scmp.ne.s32.totalorder %s201, %s202
      %p214 = scmp.eq.s32.totalorder %s40, 1
      %p215 = por %p213, %p214
      %p217 = scmp.ne.s32.totalorder %s202, %s216
      %p218 = scmp.eq.s32.totalorder %s40, 0
      %p219 = por %p217, %p218
      %s221 = sadd.s32 %s220, 1
      %p224 = scmp.eq.s32.totalorder %s34, 1
      %p225 = scmp.ne.s32.totalorder %s220, %s222
      %p226 = scmp.eq.s32.totalorder %s34, 0
      %p227 = por %p225, %p226
      %p228 = scmp.ne.s32.totalorder %s220, %s222
      %p229 = scmp.eq.s32.totalorder %s39, 1
      %p230 = por %p228, %p229
      %p231 = scmp.ne.s32.totalorder %s222, %s223
      %p232 = scmp.eq.s32.totalorder %s39, 0
      %p233 = por %p231, %p232
      %p234 = scmp.ne.s32.totalorder %s222, %s223
      %p235 = scmp.eq.s32.totalorder %s40, 1
      %p236 = por %p234, %p235
      %p238 = scmp.ne.s32.totalorder %s223, %s237
      %p239 = scmp.eq.s32.totalorder %s40, 0
      %p240 = por %p238, %p239
      %s242 = sadd.s32 %s241, 1
      %p245 = scmp.eq.s32.totalorder %s34, 1
      %p246 = scmp.ne.s32.totalorder %s241, %s243
      %p247 = scmp.eq.s32.totalorder %s34, 0
      %p248 = por %p246, %p247
      %p249 = scmp.ne.s32.totalorder %s241, %s243
      %p250 = scmp.eq.s32.totalorder %s39, 1
      %p251 = por %p249, %p250
      %p252 = scmp.ne.s32.totalorder %s243, %s244
      %p253 = scmp.eq.s32.totalorder %s39, 0
      %p254 = por %p252, %p253
      %p255 = scmp.ne.s32.totalorder %s243, %s244
      %p256 = scmp.eq.s32.totalorder %s40, 1
      %p257 = por %p255, %p256
      %p259 = scmp.ne.s32.totalorder %s244, %s258
      %p260 = scmp.eq.s32.totalorder %s40, 0
      %p261 = por %p259, %p260
      %s263 = sadd.s32 %s262, 1
      %p266 = scmp.eq.s32.totalorder %s34, 1
      %p267 = scmp.ne.s32.totalorder %s262, %s264
      %p268 = scmp.eq.s32.totalorder %s34, 0
      %p269 = por %p267, %p268
      %p270 = scmp.ne.s32.totalorder %s262, %s264
      %p271 = scmp.eq.s32.totalorder %s39, 1
      %p272 = por %p270, %p271
      %p273 = scmp.ne.s32.totalorder %s264, %s265
      %p274 = scmp.eq.s32.totalorder %s39, 0
      %p275 = por %p273, %p274
      %p276 = scmp.ne.s32.totalorder %s264, %s265
      %p277 = scmp.eq.s32.totalorder %s40, 1
      %p278 = por %p276, %p277
      %p280 = scmp.ne.s32.totalorder %s265, %s279
      %p281 = scmp.eq.s32.totalorder %s40, 0
      %p282 = por %p280, %p281
      %s284 = sadd.s32 %s283, 1
      %p287 = scmp.eq.s32.totalorder %s34, 1
      %p288 = scmp.ne.s32.totalorder %s283, %s285
      %p289 = scmp.eq.s32.totalorder %s34, 0
      %p290 = por %p288, %p289
      %p291 = scmp.ne.s32.totalorder %s283, %s285
      %p292 = scmp.eq.s32.totalorder %s39, 1
      %p293 = por %p291, %p292
      %p294 = scmp.ne.s32.totalorder %s285, %s286
      %p295 = scmp.eq.s32.totalorder %s39, 0
      %p296 = por %p294, %p295
      %p297 = scmp.ne.s32.totalorder %s285, %s286
      %p298 = scmp.eq.s32.totalorder %s40, 1
      %p299 = por %p297, %p298
      %p301 = scmp.ne.s32.totalorder %s286, %s300
      %p302 = scmp.eq.s32.totalorder %s40, 0
      %p303 = por %p301, %p302
      %s305 = sadd.s32 %s304, 1
      %p308 = scmp.eq.s32.totalorder %s34, 1
      %p309 = scmp.ne.s32.totalorder %s304, %s306
      %p310 = scmp.eq.s32.totalorder %s34, 0
      %p311 = por %p309, %p310
      %p312 = scmp.ne.s32.totalorder %s304, %s306
      %p313 = scmp.eq.s32.totalorder %s39, 1
      %p314 = por %p312, %p313
      %p315 = scmp.ne.s32.totalorder %s306, %s307
      %p316 = scmp.eq.s32.totalorder %s39, 0
      %p317 = por %p315, %p316
      %p318 = scmp.ne.s32.totalorder %s306, %s307
      %p319 = scmp.eq.s32.totalorder %s40, 1
      %p320 = por %p318, %p319
      %p322 = scmp.ne.s32.totalorder %s307, %s321
      %p323 = scmp.eq.s32.totalorder %s40, 0
      %p324 = por %p322, %p323
      %s326 = sadd.s32 %s325, 1
      %p329 = scmp.eq.s32.totalorder %s34, 1
      %p330 = scmp.ne.s32.totalorder %s325, %s327
      %p331 = scmp.eq.s32.totalorder %s34, 0
      %p332 = por %p330, %p331
      %p333 = scmp.ne.s32.totalorder %s325, %s327
      %p334 = scmp.eq.s32.totalorder %s39, 1
      %p335 = por %p333, %p334
      %p336 = scmp.ne.s32.totalorder %s327, %s328
      %p337 = scmp.eq.s32.totalorder %s39, 0
      %p338 = por %p336, %p337
      %p339 = scmp.ne.s32.totalorder %s327, %s328
      %p340 = scmp.eq.s32.totalorder %s40, 1
      %p341 = por %p339, %p340
      %p343 = scmp.ne.s32.totalorder %s328, %s342
      %p344 = scmp.eq.s32.totalorder %s40, 0
      %p345 = por %p343, %p344
      %s347 = sadd.s32 %s346, 1
      %p350 = scmp.eq.s32.totalorder %s34, 1
      %p351 = scmp.ne.s32.totalorder %s346, %s348
      %p352 = scmp.eq.s32.totalorder %s34, 0
      %p353 = por %p351, %p352
      %p354 = scmp.ne.s32.totalorder %s346, %s348
      %p355 = scmp.eq.s32.totalorder %s39, 1
      %p356 = por %p354, %p355
      %p357 = scmp.ne.s32.totalorder %s348, %s349
      %p358 = scmp.eq.s32.totalorder %s39, 0
      %p359 = por %p357, %p358
      %p360 = scmp.ne.s32.totalorder %s348, %s349
      %p361 = scmp.eq.s32.totalorder %s40, 1
      %p362 = por %p360, %p361
      %p364 = scmp.ne.s32.totalorder %s349, %s363
      %p365 = scmp.eq.s32.totalorder %s40, 0
      %p366 = por %p364, %p365
      %s368 = sadd.s32 %s367, 1
      %p371 = scmp.eq.s32.totalorder %s34, 1
      %p372 = scmp.ne.s32.totalorder %s367, %s369
      %p373 = scmp.eq.s32.totalorder %s34, 0
      %p374 = por %p372, %p373
      %p375 = scmp.ne.s32.totalorder %s367, %s369
      %p376 = scmp.eq.s32.totalorder %s39, 1
      %p377 = por %p375, %p376
      %p378 = scmp.ne.s32.totalorder %s369, %s370
      %p379 = scmp.eq.s32.totalorder %s39, 0
      %p380 = por %p378, %p379
      %p381 = scmp.ne.s32.totalorder %s369, %s370
      %p382 = scmp.eq.s32.totalorder %s40, 1
      %p383 = por %p381, %p382
      %p385 = scmp.ne.s32.totalorder %s370, %s384
      %p386 = scmp.eq.s32.totalorder %s40, 0
      %p387 = por %p385, %p386
      %s389 = sadd.s32 %s388, 1
      %p392 = scmp.eq.s32.totalorder %s34, 1
      %p393 = scmp.ne.s32.totalorder %s388, %s390
      %p394 = scmp.eq.s32.totalorder %s34, 0
      %p395 = por %p393, %p394
      %p396 = scmp.ne.s32.totalorder %s388, %s390
      %p397 = scmp.eq.s32.totalorder %s39, 1
      %p398 = por %p396, %p397
      %p399 = scmp.ne.s32.totalorder %s390, %s391
      %p400 = scmp.eq.s32.totalorder %s39, 0
      %p401 = por %p399, %p400
      %p402 = scmp.ne.s32.totalorder %s390, %s391
      %p403 = scmp.eq.s32.totalorder %s40, 1
      %p404 = por %p402, %p403
      %p406 = scmp.ne.s32.totalorder %s391, %s405
      %p407 = scmp.eq.s32.totalorder %s40, 0
      %p408 = por %p406, %p407
      %s410 = sadd.s32 %s409, 1
      %p413 = scmp.eq.s32.totalorder %s34, 1
      %p414 = scmp.ne.s32.totalorder %s409, %s411
      %p415 = scmp.eq.s32.totalorder %s34, 0
      %p416 = por %p414, %p415
      %p417 = scmp.ne.s32.totalorder %s409, %s411
      %p418 = scmp.eq.s32.totalorder %s39, 1
      %p419 = por %p417, %p418
      %p420 = scmp.ne.s32.totalorder %s411, %s412
      %p421 = scmp.eq.s32.totalorder %s39, 0
      %p422 = por %p420, %p421
      %p423 = scmp.ne.s32.totalorder %s411, %s412
      %p424 = scmp.eq.s32.totalorder %s40, 1
      %p425 = por %p423, %p424
      %p427 = scmp.ne.s32.totalorder %s412, %s426
      %p428 = scmp.eq.s32.totalorder %s40, 0
      %p429 = por %p427, %p428
      %s431 = sadd.s32 %s430, 1
      %p434 = scmp.eq.s32.totalorder %s34, 1
      %p435 = scmp.ne.s32.totalorder %s430, %s432
      %p436 = scmp.eq.s32.totalorder %s34, 0
      %p437 = por %p435, %p436
      %p438 = scmp.ne.s32.totalorder %s430, %s432
      %p439 = scmp.eq.s32.totalorder %s39, 1
      %p440 = por %p438, %p439
      %p441 = scmp.ne.s32.totalorder %s432, %s433
      %p442 = scmp.eq.s32.totalorder %s39, 0
      %p443 = por %p441, %p442
      %p444 = scmp.ne.s32.totalorder %s432, %s433
      %p445 = scmp.eq.s32.totalorder %s40, 1
      %p446 = por %p444, %p445
      %p448 = scmp.ne.s32.totalorder %s433, %s447
      %p449 = scmp.eq.s32.totalorder %s40, 0
      %p450 = por %p448, %p449
      %s452 = sadd.s32 %s451, 1
      %p455 = scmp.eq.s32.totalorder %s34, 1
      %p456 = scmp.ne.s32.totalorder %s451, %s453
      %p457 = scmp.eq.s32.totalorder %s34, 0
      %p458 = por %p456, %p457
      %p459 = scmp.ne.s32.totalorder %s451, %s453
      %p460 = scmp.eq.s32.totalorder %s39, 1
      %p461 = por %p459, %p460
      %p462 = scmp.ne.s32.totalorder %s453, %s454
      %p463 = scmp.eq.s32.totalorder %s39, 0
      %p464 = por %p462, %p463
      %p465 = scmp.ne.s32.totalorder %s453, %s454
      %p466 = scmp.eq.s32.totalorder %s40, 1
      %p467 = por %p465, %p466
      %p469 = scmp.ne.s32.totalorder %s454, %s468
      %p470 = scmp.eq.s32.totalorder %s40, 0
      %p471 = por %p469, %p470
      %s473 = sadd.s32 %s472, 1
      %p476 = scmp.eq.s32.totalorder %s34, 1
      %p477 = scmp.ne.s32.totalorder %s472, %s474
      %p478 = scmp.eq.s32.totalorder %s34, 0
      %p479 = por %p477, %p478
      %p480 = scmp.ne.s32.totalorder %s472, %s474
      %p481 = scmp.eq.s32.totalorder %s39, 1
      %p482 = por %p480, %p481
      %p483 = scmp.ne.s32.totalorder %s474, %s475
      %p484 = scmp.eq.s32.totalorder %s39, 0
      %p485 = por %p483, %p484
      %p486 = scmp.ne.s32.totalorder %s474, %s475
      %p487 = scmp.eq.s32.totalorder %s40, 1
      %p488 = por %p486, %p487
      %p490 = scmp.ne.s32.totalorder %s475, %s489
      %p491 = scmp.eq.s32.totalorder %s40, 0
      %p492 = por %p490, %p491
      %s494 = sadd.s32 %s493, 1
      %p497 = scmp.eq.s32.totalorder %s34, 1
      %p498 = scmp.ne.s32.totalorder %s493, %s495
      %p499 = scmp.eq.s32.totalorder %s34, 0
      %p500 = por %p498, %p499
      %p501 = scmp.ne.s32.totalorder %s493, %s495
      %p502 = scmp.eq.s32.totalorder %s39, 1
      %p503 = por %p501, %p502
      %p504 = scmp.ne.s32.totalorder %s495, %s496
      %p505 = scmp.eq.s32.totalorder %s39, 0
      %p506 = por %p504, %p505
      %p507 = scmp.ne.s32.totalorder %s495, %s496
      %p508 = scmp.eq.s32.totalorder %s40, 1
      %p509 = por %p507, %p508
      %p511 = scmp.ne.s32.totalorder %s496, %s510
      %p512 = scmp.eq.s32.totalorder %s40, 0
      %p513 = por %p511, %p512
      %s515 = sadd.s32 %s514, 1
      %p518 = scmp.eq.s32.totalorder %s34, 1
      %p519 = scmp.ne.s32.totalorder %s514, %s516
      %p520 = scmp.eq.s32.totalorder %s34, 0
      %p521 = por %p519, %p520
      %p522 = scmp.ne.s32.totalorder %s514, %s516
      %p523 = scmp.eq.s32.totalorder %s39, 1
      %p524 = por %p522, %p523
      %p525 = scmp.ne.s32.totalorder %s516, %s517
      %p526 = scmp.eq.s32.totalorder %s39, 0
      %p527 = por %p525, %p526
      %p528 = scmp.ne.s32.totalorder %s516, %s517
      %p529 = scmp.eq.s32.totalorder %s40, 1
      %p530 = por %p528, %p529
      %p532 = scmp.ne.s32.totalorder %s517, %s531
      %p533 = scmp.eq.s32.totalorder %s40, 0
      %p534 = por %p532, %p533
      %s536 = sadd.s32 %s535, 1
      %p539 = scmp.eq.s32.totalorder %s34, 1
      %p540 = scmp.ne.s32.totalorder %s535, %s537
      %p541 = scmp.eq.s32.totalorder %s34, 0
      %p542 = por %p540, %p541
      %p543 = scmp.ne.s32.totalorder %s535, %s537
      %p544 = scmp.eq.s32.totalorder %s39, 1
      %p545 = por %p543, %p544
      %p546 = scmp.ne.s32.totalorder %s537, %s538
      %p547 = scmp.eq.s32.totalorder %s39, 0
      %p548 = por %p546, %p547
      %p549 = scmp.ne.s32.totalorder %s537, %s538
      %p550 = scmp.eq.s32.totalorder %s40, 1
      %p551 = por %p549, %p550
      %p553 = scmp.ne.s32.totalorder %s538, %s552
      %p554 = scmp.eq.s32.totalorder %s40, 0
      %p555 = por %p553, %p554
      %s557 = sadd.s32 %s556, 1
      %p560 = scmp.eq.s32.totalorder %s34, 1
      %p561 = scmp.ne.s32.totalorder %s556, %s558
      %p562 = scmp.eq.s32.totalorder %s34, 0
      %p563 = por %p561, %p562
      %p564 = scmp.ne.s32.totalorder %s556, %s558
      %p565 = scmp.eq.s32.totalorder %s39, 1
      %p566 = por %p564, %p565
      %p567 = scmp.ne.s32.totalorder %s558, %s559
      %p568 = scmp.eq.s32.totalorder %s39, 0
      %p569 = por %p567, %p568
      %p570 = scmp.ne.s32.totalorder %s558, %s559
      %p571 = scmp.eq.s32.totalorder %s40, 1
      %p572 = por %p570, %p571
      %p574 = scmp.ne.s32.totalorder %s559, %s573
      %p575 = scmp.eq.s32.totalorder %s40, 0
      %p576 = por %p574, %p575
      %s578 = sadd.s32 %s577, 1
      %p581 = scmp.eq.s32.totalorder %s34, 1
      %p582 = scmp.ne.s32.totalorder %s577, %s579
      %p583 = scmp.eq.s32.totalorder %s34, 0
      %p584 = por %p582, %p583
      %p585 = scmp.ne.s32.totalorder %s577, %s579
      %p586 = scmp.eq.s32.totalorder %s39, 1
      %p587 = por %p585, %p586
      %p588 = scmp.ne.s32.totalorder %s579, %s580
      %p589 = scmp.eq.s32.totalorder %s39, 0
      %p590 = por %p588, %p589
      %p591 = scmp.ne.s32.totalorder %s579, %s580
      %p592 = scmp.eq.s32.totalorder %s40, 1
      %p593 = por %p591, %p592
      %p595 = scmp.ne.s32.totalorder %s580, %s594
      %p596 = scmp.eq.s32.totalorder %s40, 0
      %p597 = por %p595, %p596
      %s598 = ssub.s32 %s34, %s41
      %p599 = scmp.eq.s32.totalorder %s598, 0
      %s601 = sadd.s32 %s600, 1
      %s602 = scalar_select %p599, %s600, %s601
      %p605 = pneg %p599
      %p606 = scmp.eq.s32.totalorder %s34, 1
      %p607 = por %p605, %p606
      %p608 = scmp.ne.s32.totalorder %s600, %s603
      %p609 = scmp.eq.s32.totalorder %s34, 0
      %p610 = por %p608, %p609
      %p611 = scmp.ne.s32.totalorder %s600, %s603
      %p612 = scmp.eq.s32.totalorder %s39, 1
      %p613 = por %p611, %p612
      %p614 = scmp.ne.s32.totalorder %s603, %s604
      %p615 = scmp.eq.s32.totalorder %s39, 0
      %p616 = por %p614, %p615
      %p617 = scmp.ne.s32.totalorder %s603, %s604
      %p618 = scmp.eq.s32.totalorder %s40, 1
      %p619 = por %p617, %p618
      %p621 = scmp.ne.s32.totalorder %s604, %s620
      %p622 = scmp.eq.s32.totalorder %s40, 0
      %p623 = por %p621, %p622
      %p624 = scmp.le.s32.totalorder 1, %s34
      %p625 = scmp.lt.s32.totalorder %s34, 3
      %p626 = pnand %p624, %p625
      %p627 = pneg %p626
      // Predicated region
      $region9: #{nerf_forward.1} parent=5 // pred_check
        _
      $region10: #{nerf_forward.1} parent=5 // pred_check_branch
        %629 = sbr.rel (%p626) target = $region12
      $region11: #{nerf_forward.1} parent=5 // pred_region
        %s630 = ssub.s32 %s34, 1
        // Predicated region
        $region13: #{nerf_forward.1} parent=11 // pred_check
          %p631 = pneg %p107
        $region14: #{nerf_forward.1} parent=11 // pred_check_branch
          %633 = sbr.rel (%p631) target = $region16
        $region15: #{nerf_forward.1} parent=11 // pred_region
          _
        $region16: #{nerf_forward.1} parent=11 // pred_fallthru
          _
        // Predicated region
        $region17: #{nerf_forward.1} parent=11 // pred_check
          %p634 = pneg %p128
        $region18: #{nerf_forward.1} parent=11 // pred_check_branch
          %636 = sbr.rel (%p634) target = $region20
        $region19: #{nerf_forward.1} parent=11 // pred_region
          _
        $region20: #{nerf_forward.1} parent=11 // pred_fallthru
          _
        // Predicated region
        $region21: #{nerf_forward.1} parent=11 // pred_check
          %p637 = pneg %p149
        $region22: #{nerf_forward.1} parent=11 // pred_check_branch
          %639 = sbr.rel (%p637) target = $region24
        $region23: #{nerf_forward.1} parent=11 // pred_region
          _
        $region24: #{nerf_forward.1} parent=11 // pred_fallthru
          _
        // Predicated region
        $region25: #{nerf_forward.1} parent=11 // pred_check
          %p640 = pneg %p170
        $region26: #{nerf_forward.1} parent=11 // pred_check_branch
          %642 = sbr.rel (%p640) target = $region28
        $region27: #{nerf_forward.1} parent=11 // pred_region
          _
        $region28: #{nerf_forward.1} parent=11 // pred_fallthru
          _
        // Predicated region
        $region29: #{nerf_forward.1} parent=11 // pred_check
          %p643 = pneg %p191
        $region30: #{nerf_forward.1} parent=11 // pred_check_branch
          %645 = sbr.rel (%p643) target = $region32
        $region31: #{nerf_forward.1} parent=11 // pred_region
          _
        $region32: #{nerf_forward.1} parent=11 // pred_fallthru
          _
        // Predicated region
        $region33: #{nerf_forward.1} parent=11 // pred_check
          %p646 = pneg %p212
        $region34: #{nerf_forward.1} parent=11 // pred_check_branch
          %648 = sbr.rel (%p646) target = $region36
        $region35: #{nerf_forward.1} parent=11 // pred_region
          _
        $region36: #{nerf_forward.1} parent=11 // pred_fallthru
          _
        // Predicated region
        $region37: #{nerf_forward.1} parent=11 // pred_check
          %p649 = pneg %p233
        $region38: #{nerf_forward.1} parent=11 // pred_check_branch
          %651 = sbr.rel (%p649) target = $region40
        $region39: #{nerf_forward.1} parent=11 // pred_region
          _
        $region40: #{nerf_forward.1} parent=11 // pred_fallthru
          _
        // Predicated region
        $region41: #{nerf_forward.1} parent=11 // pred_check
          %p652 = pneg %p254
        $region42: #{nerf_forward.1} parent=11 // pred_check_branch
          %654 = sbr.rel (%p652) target = $region44
        $region43: #{nerf_forward.1} parent=11 // pred_region
          _
        $region44: #{nerf_forward.1} parent=11 // pred_fallthru
          _
        // Predicated region
        $region45: #{nerf_forward.1} parent=11 // pred_check
          %p655 = pneg %p275
        $region46: #{nerf_forward.1} parent=11 // pred_check_branch
          %657 = sbr.rel (%p655) target = $region48
        $region47: #{nerf_forward.1} parent=11 // pred_region
          _
        $region48: #{nerf_forward.1} parent=11 // pred_fallthru
          _
        // Predicated region
        $region49: #{nerf_forward.1} parent=11 // pred_check
          %p658 = pneg %p296
        $region50: #{nerf_forward.1} parent=11 // pred_check_branch
          %660 = sbr.rel (%p658) target = $region52
        $region51: #{nerf_forward.1} parent=11 // pred_region
          _
        $region52: #{nerf_forward.1} parent=11 // pred_fallthru
          _
        // Predicated region
        $region53: #{nerf_forward.1} parent=11 // pred_check
          %p661 = pneg %p317
        $region54: #{nerf_forward.1} parent=11 // pred_check_branch
          %663 = sbr.rel (%p661) target = $region56
        $region55: #{nerf_forward.1} parent=11 // pred_region
          _
        $region56: #{nerf_forward.1} parent=11 // pred_fallthru
          _
        // Predicated region
        $region57: #{nerf_forward.1} parent=11 // pred_check
          %p664 = pneg %p338
        $region58: #{nerf_forward.1} parent=11 // pred_check_branch
          %666 = sbr.rel (%p664) target = $region60
        $region59: #{nerf_forward.1} parent=11 // pred_region
          _
        $region60: #{nerf_forward.1} parent=11 // pred_fallthru
          _
        // Predicated region
        $region61: #{nerf_forward.1} parent=11 // pred_check
          %p667 = pneg %p359
        $region62: #{nerf_forward.1} parent=11 // pred_check_branch
          %669 = sbr.rel (%p667) target = $region64
        $region63: #{nerf_forward.1} parent=11 // pred_region
          _
        $region64: #{nerf_forward.1} parent=11 // pred_fallthru
          _
        // Predicated region
        $region65: #{nerf_forward.1} parent=11 // pred_check
          %p670 = pneg %p380
        $region66: #{nerf_forward.1} parent=11 // pred_check_branch
          %672 = sbr.rel (%p670) target = $region68
        $region67: #{nerf_forward.1} parent=11 // pred_region
          _
        $region68: #{nerf_forward.1} parent=11 // pred_fallthru
          _
        // Predicated region
        $region69: #{nerf_forward.1} parent=11 // pred_check
          %p673 = pneg %p401
        $region70: #{nerf_forward.1} parent=11 // pred_check_branch
          %675 = sbr.rel (%p673) target = $region72
        $region71: #{nerf_forward.1} parent=11 // pred_region
          _
        $region72: #{nerf_forward.1} parent=11 // pred_fallthru
          _
        // Predicated region
        $region73: #{nerf_forward.1} parent=11 // pred_check
          %p676 = pneg %p422
        $region74: #{nerf_forward.1} parent=11 // pred_check_branch
          %678 = sbr.rel (%p676) target = $region76
        $region75: #{nerf_forward.1} parent=11 // pred_region
          _
        $region76: #{nerf_forward.1} parent=11 // pred_fallthru
          _
        // Predicated region
        $region77: #{nerf_forward.1} parent=11 // pred_check
          %p679 = pneg %p443
        $region78: #{nerf_forward.1} parent=11 // pred_check_branch
          %681 = sbr.rel (%p679) target = $region80
        $region79: #{nerf_forward.1} parent=11 // pred_region
          _
        $region80: #{nerf_forward.1} parent=11 // pred_fallthru
          _
        // Predicated region
        $region81: #{nerf_forward.1} parent=11 // pred_check
          %p682 = pneg %p464
        $region82: #{nerf_forward.1} parent=11 // pred_check_branch
          %684 = sbr.rel (%p682) target = $region84
        $region83: #{nerf_forward.1} parent=11 // pred_region
          _
        $region84: #{nerf_forward.1} parent=11 // pred_fallthru
          _
        // Predicated region
        $region85: #{nerf_forward.1} parent=11 // pred_check
          %p685 = pneg %p485
        $region86: #{nerf_forward.1} parent=11 // pred_check_branch
          %687 = sbr.rel (%p685) target = $region88
        $region87: #{nerf_forward.1} parent=11 // pred_region
          _
        $region88: #{nerf_forward.1} parent=11 // pred_fallthru
          _
        // Predicated region
        $region89: #{nerf_forward.1} parent=11 // pred_check
          %p688 = pneg %p506
        $region90: #{nerf_forward.1} parent=11 // pred_check_branch
          %690 = sbr.rel (%p688) target = $region92
        $region91: #{nerf_forward.1} parent=11 // pred_region
          _
        $region92: #{nerf_forward.1} parent=11 // pred_fallthru
          _
        // Predicated region
        $region93: #{nerf_forward.1} parent=11 // pred_check
          %p691 = pneg %p527
        $region94: #{nerf_forward.1} parent=11 // pred_check_branch
          %693 = sbr.rel (%p691) target = $region96
        $region95: #{nerf_forward.1} parent=11 // pred_region
          _
        $region96: #{nerf_forward.1} parent=11 // pred_fallthru
          _
        // Predicated region
        $region97: #{nerf_forward.1} parent=11 // pred_check
          %p694 = pneg %p548
        $region98: #{nerf_forward.1} parent=11 // pred_check_branch
          %696 = sbr.rel (%p694) target = $region100
        $region99: #{nerf_forward.1} parent=11 // pred_region
          _
        $region100: #{nerf_forward.1} parent=11 // pred_fallthru
          _
        // Predicated region
        $region101: #{nerf_forward.1} parent=11 // pred_check
          %p697 = pneg %p569
        $region102: #{nerf_forward.1} parent=11 // pred_check_branch
          %699 = sbr.rel (%p697) target = $region104
        $region103: #{nerf_forward.1} parent=11 // pred_region
          _
        $region104: #{nerf_forward.1} parent=11 // pred_fallthru
          _
        // Predicated region
        $region105: #{nerf_forward.1} parent=11 // pred_check
          %p700 = pneg %p590
        $region106: #{nerf_forward.1} parent=11 // pred_check_branch
          %702 = sbr.rel (%p700) target = $region108
        $region107: #{nerf_forward.1} parent=11 // pred_region
          _
        $region108: #{nerf_forward.1} parent=11 // pred_fallthru
          _
      $region12: #{nerf_forward.1} parent=5 // pred_fallthru
        _
      %p703 = scmp.lt.s32.totalorder %s34, 2
      // Predicated region
      $region109: #{nerf_forward.1} parent=5 // pred_check
        %p704 = pneg %p703
      $region110: #{nerf_forward.1} parent=5 // pred_check_branch
        %706 = sbr.rel (%p704) target = $region112
      $region111: #{nerf_forward.1} parent=5 // pred_region
        // Predicated region
        $region113: #{nerf_forward.1} parent=111 // pred_check
          %p707 = pneg %p54
        $region114: #{nerf_forward.1} parent=111 // pred_check_branch
          %709 = sbr.rel (%p707) target = $region116
        $region115: #{nerf_forward.1} parent=111 // pred_region
          %s710 = sand.u32 %s44, 1
          %s711 = sand.u32 %s44, 1
          %s712 = smul.addr %s711, 160
          %s713 = scalar_lea.vmem [#allocation3], %s712
          %s714 = smul.u32 4, %s34
          %s715 = smul.addr %s714, 8
          %s716 = scalar_lea.vmem %s0, %s715
          // Predicated region
          $region117: #{nerf_forward.1} parent=115 // pred_check
            _
          $region118: #{nerf_forward.1} parent=115 // pred_check_branch
            %718 = sbr.rel (0) target = $region120
          $region119: #{nerf_forward.1} parent=115 // pred_region
            // Predicated region
            $region121: #{nerf_forward.1} parent=119 // pred_check
              _
            $region122: #{nerf_forward.1} parent=119 // pred_check_branch
              %720 = sbr.rel (0) target = $region124
            $region123: #{nerf_forward.1} parent=119 // pred_region
              loop: start=0, step=1, limit=1
              $region125: #{nerf_forward.1} parent=123 // loop_pre_header
                _
              $region126: #{nerf_forward.1} parent=123 // loop_header
                %s722 = sphi 0, %s726
                %p723 = scmp.ge.s32.totalorder %s722, 1
                %s727 = sphi %s716, %s716
                %s728 = sphi %s713, %s713
              $region127: #{nerf_forward.1} parent=123 // loop_header_branch
                %725 = sbr.rel (%p723) target = $region131
              $region128: #{nerf_forward.1} parent=123 // loop_body
                %v729 = vld [vmem:[%s727] sm:$0xff]
                %730 = vst [vmem:[%s728] sm:$0xff] %v729
                %v731 = vld [vmem:[%s727 + $0x8] sm:$0xff]
                %732 = vst [vmem:[%s728 + $0x8] sm:$0xff] %v731
                %v733 = vld [vmem:[%s727 + $0x10] sm:$0xff]
                %734 = vst [vmem:[%s728 + $0x10] sm:$0xff] %v733
                %v735 = vld [vmem:[%s727 + $0x18] sm:$0xff]
                %736 = vst [vmem:[%s728 + $0x18] sm:$0xff] %v735
                %v737 = vld [vmem:[%s727 + $0x40] sm:$0xff]
                %738 = vst [vmem:[%s728 + $0x20] sm:$0xff] %v737
                %v739 = vld [vmem:[%s727 + $0x48] sm:$0xff]
                %740 = vst [vmem:[%s728 + $0x28] sm:$0xff] %v739
                %v741 = vld [vmem:[%s727 + $0x50] sm:$0xff]
                %742 = vst [vmem:[%s728 + $0x30] sm:$0xff] %v741
                %v743 = vld [vmem:[%s727 + $0x58] sm:$0xff]
                %744 = vst [vmem:[%s728 + $0x38] sm:$0xff] %v743
                %v745 = vld [vmem:[%s727 + $0x80] sm:$0xff]
                %746 = vst [vmem:[%s728 + $0x40] sm:$0xff] %v745
                %v747 = vld [vmem:[%s727 + $0x88] sm:$0xff]
                %748 = vst [vmem:[%s728 + $0x48] sm:$0xff] %v747
                %v749 = vld [vmem:[%s727 + $0x90] sm:$0xff]
                %750 = vst [vmem:[%s728 + $0x50] sm:$0xff] %v749
                %v751 = vld [vmem:[%s727 + $0x98] sm:$0xff]
                %752 = vst [vmem:[%s728 + $0x58] sm:$0xff] %v751
                %v753 = vld [vmem:[%s727 + $0xc0] sm:$0xff]
                %754 = vst [vmem:[%s728 + $0x60] sm:$0xff] %v753
                %v755 = vld [vmem:[%s727 + $0xc8] sm:$0xff]
                %756 = vst [vmem:[%s728 + $0x68] sm:$0xff] %v755
                %v757 = vld [vmem:[%s727 + $0xd0] sm:$0xff]
                %758 = vst [vmem:[%s728 + $0x70] sm:$0xff] %v757
                %v759 = vld [vmem:[%s727 + $0xd8] sm:$0xff]
                %760 = vst [vmem:[%s728 + $0x78] sm:$0xff] %v759
                %v761 = vld [vmem:[%s727 + $0x100] sm:$0xff]
                %762 = vst [vmem:[%s728 + $0x80] sm:$0xff] %v761
                %v763 = vld [vmem:[%s727 + $0x108] sm:$0xff]
                %764 = vst [vmem:[%s728 + $0x88] sm:$0xff] %v763
                %v765 = vld [vmem:[%s727 + $0x110] sm:$0xff]
                %766 = vst [vmem:[%s728 + $0x90] sm:$0xff] %v765
                %v767 = vld [vmem:[%s727 + $0x118] sm:$0xff]
                %768 = vst [vmem:[%s728 + $0x98] sm:$0xff] %v767
              $region129: #{nerf_forward.1} parent=123 // loop_footer
                %s726 = sadd.s32 1, %s722
              $region130: #{nerf_forward.1} parent=123 // loop_footer_branch
                %721 = sbr.rel target = $region126
              $region131: #{nerf_forward.1} parent=123 // loop_exit
                _
            $region124: #{nerf_forward.1} parent=119 // pred_fallthru
              _
            // Predicated region
            $region132: #{nerf_forward.1} parent=119 // pred_check
              _
            $region133: #{nerf_forward.1} parent=119 // pred_check_branch
              %770 = sbr.rel target = $region135
            $region134: #{nerf_forward.1} parent=119 // pred_region
              _
            $region135: #{nerf_forward.1} parent=119 // pred_fallthru
              _
          $region120: #{nerf_forward.1} parent=115 // pred_fallthru
            _
          %771 = vnop
        $region116: #{nerf_forward.1} parent=111 // pred_fallthru
          _
        // Predicated region
        $region136: #{nerf_forward.1} parent=111 // pred_check
          %p772 = pneg %p80
        $region137: #{nerf_forward.1} parent=111 // pred_check_branch
          %774 = sbr.rel (%p772) target = $region139
        $region138: #{nerf_forward.1} parent=111 // pred_region
          %s775 = sand.u32 %s70, 1
          %s776 = sand.u32 %s70, 1
          %s777 = smul.addr %s776, 64
          %s778 = scalar_lea.vmem [#allocation4], %s777
          %s779 = smul.u32 4, %s34
          %s780 = smul.addr %s779, 8
          %s781 = scalar_lea.vmem %s1, %s780
          // Predicated region
          $region140: #{nerf_forward.1} parent=138 // pred_check
            _
          $region141: #{nerf_forward.1} parent=138 // pred_check_branch
            %783 = sbr.rel (0) target = $region143
          $region142: #{nerf_forward.1} parent=138 // pred_region
            // Predicated region
            $region144: #{nerf_forward.1} parent=142 // pred_check
              _
            $region145: #{nerf_forward.1} parent=142 // pred_check_branch
              %785 = sbr.rel (0) target = $region147
            $region146: #{nerf_forward.1} parent=142 // pred_region
              loop: start=0, step=1, limit=1
              $region148: #{nerf_forward.1} parent=146 // loop_pre_header
                _
              $region149: #{nerf_forward.1} parent=146 // loop_header
                %s787 = sphi 0, %s791
                %p788 = scmp.ge.s32.totalorder %s787, 1
                %s792 = sphi %s781, %s781
                %s793 = sphi %s778, %s778
              $region150: #{nerf_forward.1} parent=146 // loop_header_branch
                %790 = sbr.rel (%p788) target = $region154
              $region151: #{nerf_forward.1} parent=146 // loop_body
                %v794 = vld [vmem:[%s792] sm:$0xff]
                %795 = vst [vmem:[%s793] sm:$0xff] %v794
                %v796 = vld [vmem:[%s792 + $0x8] sm:$0xff]
                %797 = vst [vmem:[%s793 + $0x8] sm:$0xff] %v796
                %v798 = vld [vmem:[%s792 + $0x10] sm:$0xff]
                %799 = vst [vmem:[%s793 + $0x10] sm:$0xff] %v798
                %v800 = vld [vmem:[%s792 + $0x18] sm:$0xff]
                %801 = vst [vmem:[%s793 + $0x18] sm:$0xff] %v800
                %v802 = vld [vmem:[%s792 + $0x40] sm:$0xff]
                %803 = vst [vmem:[%s793 + $0x20] sm:$0xff] %v802
                %v804 = vld [vmem:[%s792 + $0x48] sm:$0xff]
                %805 = vst [vmem:[%s793 + $0x28] sm:$0xff] %v804
                %v806 = vld [vmem:[%s792 + $0x50] sm:$0xff]
                %807 = vst [vmem:[%s793 + $0x30] sm:$0xff] %v806
                %v808 = vld [vmem:[%s792 + $0x58] sm:$0xff]
                %809 = vst [vmem:[%s793 + $0x38] sm:$0xff] %v808
              $region152: #{nerf_forward.1} parent=146 // loop_footer
                %s791 = sadd.s32 1, %s787
              $region153: #{nerf_forward.1} parent=146 // loop_footer_branch
                %786 = sbr.rel target = $region149
              $region154: #{nerf_forward.1} parent=146 // loop_exit
                _
            $region147: #{nerf_forward.1} parent=142 // pred_fallthru
              _
            // Predicated region
            $region155: #{nerf_forward.1} parent=142 // pred_check
              _
            $region156: #{nerf_forward.1} parent=142 // pred_check_branch
              %811 = sbr.rel target = $region158
            $region157: #{nerf_forward.1} parent=142 // pred_region
              _
            $region158: #{nerf_forward.1} parent=142 // pred_fallthru
              _
          $region143: #{nerf_forward.1} parent=138 // pred_fallthru
            _
          %812 = vnop
        $region139: #{nerf_forward.1} parent=111 // pred_fallthru
          _
      $region112: #{nerf_forward.1} parent=5 // pred_fallthru
        _
      %p813 = scmp.le.s32.totalorder 1, %s34
      %p814 = scmp.lt.s32.totalorder %s34, 3
      %p815 = pnand %p813, %p814
      %p816 = pneg %p815
      // Predicated region
      $region159: #{nerf_forward.1} parent=5 // pred_check
        _
      $region160: #{nerf_forward.1} parent=5 // pred_check_branch
        %818 = sbr.rel (%p815) target = $region162
      $region161: #{nerf_forward.1} parent=5 // pred_region
        %s819 = ssub.s32 %s34, 1
        %s820 = sand.u32 %s47, 1
        %s821 = sand.u32 %s47, 1
        %s822 = smul.addr %s821, 160
        %s823 = scalar_lea.vmem [#allocation3], %s822
        // Predicated region
        $region163: #{nerf_forward.1} parent=161 // pred_check
          %p824 = pneg %p60
        $region164: #{nerf_forward.1} parent=161 // pred_check_branch
          %826 = sbr.rel (%p824) target = $region166
        $region165: #{nerf_forward.1} parent=161 // pred_region
          _
        $region166: #{nerf_forward.1} parent=161 // pred_fallthru
          _
        %s827 = sand.u32 %s73, 1
        %s828 = sand.u32 %s73, 1
        %s829 = smul.addr %s828, 64
        %s830 = scalar_lea.vmem [#allocation4], %s829
        // Predicated region
        $region167: #{nerf_forward.1} parent=161 // pred_check
          %p831 = pneg %p86
        $region168: #{nerf_forward.1} parent=161 // pred_check_branch
          %833 = sbr.rel (%p831) target = $region170
        $region169: #{nerf_forward.1} parent=161 // pred_region
          _
        $region170: #{nerf_forward.1} parent=161 // pred_fallthru
          _
        %s834 = sand.u32 %s47, 1
        %s835 = sand.u32 %s47, 1
        %s836 = smul.addr %s835, 160
        %s837 = scalar_lea.vmem [#allocation3], %s836
        %p838 = pneg %p60
        %p839 = pneg %p57
        %s840 = sand.u32 %s73, 1
        %s841 = sand.u32 %s73, 1
        %s842 = smul.addr %s841, 64
        %s843 = scalar_lea.vmem [#allocation4], %s842
        %p844 = pneg %p86
        %p845 = pneg %p83
        %p846 = pneg %p107
        %p847 = pneg %p104
        %p848 = pneg %p128
        %p849 = pneg %p125
        %p850 = pneg %p149
        %p851 = pneg %p146
        %p852 = pneg %p170
        %p853 = pneg %p167
        %p854 = pneg %p191
        %p855 = pneg %p188
        %p856 = pneg %p212
        %p857 = pneg %p209
        %p858 = pneg %p233
        %p859 = pneg %p230
        %p860 = pneg %p254
        %p861 = pneg %p251
        %p862 = pneg %p275
        %p863 = pneg %p272
        %p864 = pneg %p296
        %p865 = pneg %p293
        %p866 = pneg %p317
        %p867 = pneg %p314
        %p868 = pneg %p338
        %p869 = pneg %p335
        %p870 = pneg %p359
        %p871 = pneg %p356
        %p872 = pneg %p380
        %p873 = pneg %p377
        %p874 = pneg %p401
        %p875 = pneg %p398
        %p876 = pneg %p422
        %p877 = pneg %p419
        %p878 = pneg %p443
        %p879 = pneg %p440
        %p880 = pneg %p464
        %p881 = pneg %p461
        %p882 = pneg %p485
        %p883 = pneg %p482
        %p884 = pneg %p506
        %p885 = pneg %p503
        %p886 = pneg %p527
        %p887 = pneg %p524
        %p888 = pneg %p548
        %p889 = pneg %p545
        %p890 = pneg %p569
        %p891 = pneg %p566
        %p892 = pneg %p590
        %p893 = pneg %p587
        %p894 = pneg %p616
        %p895 = pneg %p613
        %s896 = smul.u32 4, %s39
        %p897 = scmp.lt.s32.totalorder %s896, 7
        %s898 = scalar_select %p897, %s896, 7
        %s899 = smul.addr %s898, 4
        %s900 = scalar_lea.vmem %s26, %s899
        %s901 = smul.u32 4, %s39
        %s902 = smul.u32 4, %s39
        %s903 = smul.u32 4, %s39
        %p904 = scmp.lt.s32.totalorder %s903, 7
        %s905 = scalar_select %p904, %s903, 7
        %s906 = smul.addr %s905, 4
        %s907 = scalar_lea.vmem %s26, %s906
        %s908 = smul.u32 4, %s39
        %v910 = vld [vmem:[%s823] sm:$0xff]
        %v911 = vld [vmem:[%s823 + $0x8] sm:$0xff]
        %v912 = vld [vmem:[%s823 + $0x10] sm:$0xff]
        %v913 = vld [vmem:[%s823 + $0x18] sm:$0xff]
        %v914 = vld [vmem:[%s823 + $0x20] sm:$0xff]
        %v915 = vld [vmem:[%s823 + $0x28] sm:$0xff]
        %v916 = vld [vmem:[%s823 + $0x30] sm:$0xff]
        %v917 = vld [vmem:[%s823 + $0x38] sm:$0xff]
        %v918 = vld [vmem:[%s823 + $0x40] sm:$0xff]
        %v919 = vld [vmem:[%s823 + $0x48] sm:$0xff]
        %v920 = vld [vmem:[%s823 + $0x50] sm:$0xff]
        %v921 = vld [vmem:[%s823 + $0x58] sm:$0xff]
        %v922 = vld [vmem:[%s823 + $0x60] sm:$0xff]
        %v923 = vld [vmem:[%s823 + $0x68] sm:$0xff]
        %v924 = vld [vmem:[%s823 + $0x70] sm:$0xff]
        %v925 = vld [vmem:[%s823 + $0x78] sm:$0xff]
        %v926 = vld [vmem:[%s823 + $0x80] sm:$0x1]
        %v927 = vld [vmem:[%s823 + $0x88] sm:$0x1]
        %v928 = vld [vmem:[%s823 + $0x90] sm:$0x1]
        %v929 = vld [vmem:[%s823 + $0x98] sm:$0x1]
        %v930 = vpack.c.bf16 %v914, %v910
        %v931 = vpack.c.bf16 %v915, %v911
        %v932 = vpack.c.bf16 %v916, %v912
        %v933 = vpack.c.bf16 %v917, %v913
        %v934 = vpack.c.bf16 %v922, %v918
        %v935 = vpack.c.bf16 %v923, %v919
        %v936 = vpack.c.bf16 %v924, %v920
        %v937 = vpack.c.bf16 %v925, %v921
        %v938 = vpack.c.bf16 %v926, %v926
        %v939 = vpack.c.bf16 %v927, %v927
        %v940 = vpack.c.bf16 %v928, %v928
        %v941 = vpack.c.bf16 %v929, %v929
        %v942 = vld [vmem:[%s830] sm:$0xff]
        %v943 = vld [vmem:[%s830 + $0x8] sm:$0xff]
        %v944 = vld [vmem:[%s830 + $0x10] sm:$0xff]
        %v945 = vld [vmem:[%s830 + $0x18] sm:$0xff]
        %v946 = vld [vmem:[%s830 + $0x20] sm:$0x7f]
        %v947 = vld [vmem:[%s830 + $0x28] sm:$0x7f]
        %v948 = vld [vmem:[%s830 + $0x30] sm:$0x7f]
        %v949 = vld [vmem:[%s830 + $0x38] sm:$0x7f]
        %v950 = vpack.c.bf16 %v946, %v942
        %v951 = vpack.c.bf16 %v947, %v943
        %v952 = vpack.c.bf16 %v948, %v944
        %v953 = vpack.c.bf16 %v949, %v945
        %v954 = vld [vmem:[%s2] sm:$0xf]
        %v955 = vld [vmem:[%s2 + $0x4] sm:$0xf]
        %v956 = vld [vmem:[%s2 + $0x8] sm:$0xf]
        %v957 = vld [vmem:[%s2 + $0xc] sm:$0xf]
        %v958 = vld [vmem:[%s2 + $0x10] sm:$0xf]
        %v959 = vld [vmem:[%s2 + $0x14] sm:$0xf]
        %v960 = vld [vmem:[%s2 + $0x18] sm:$0xf]
        %v961 = vld [vmem:[%s2 + $0x1c] sm:$0xf]
        %v962 = vld [vmem:[%s2 + $0x20] sm:$0xf]
        %v963 = vld [vmem:[%s2 + $0x24] sm:$0xf]
        %v964 = vld [vmem:[%s2 + $0x28] sm:$0xf]
        %v965 = vld [vmem:[%s2 + $0x2c] sm:$0xf]
        %v966 = vld [vmem:[%s2 + $0x30] sm:$0xf]
        %v967 = vld [vmem:[%s2 + $0x34] sm:$0xf]
        %v968 = vld [vmem:[%s2 + $0x38] sm:$0xf]
        %v969 = vld [vmem:[%s2 + $0x3c] sm:$0xf]
        %v970 = vld [vmem:[%s3] sm:$0xff]
        %v971 = vld [vmem:[%s3 + $0x8] sm:$0xff]
        %v972 = vld [vmem:[%s3 + $0x10] sm:$0xff]
        %v973 = vld [vmem:[%s3 + $0x18] sm:$0xff]
        %v974 = vld [vmem:[%s3 + $0x20] sm:$0xff]
        %v975 = vld [vmem:[%s3 + $0x28] sm:$0xff]
        %v976 = vld [vmem:[%s3 + $0x30] sm:$0xff]
        %v977 = vld [vmem:[%s3 + $0x38] sm:$0xff]
        %v978 = vld [vmem:[%s3 + $0x40] sm:$0xff]
        %v979 = vld [vmem:[%s3 + $0x48] sm:$0xff]
        %v980 = vld [vmem:[%s3 + $0x50] sm:$0xff]
        %v981 = vld [vmem:[%s3 + $0x58] sm:$0xff]
        %v982 = vld [vmem:[%s3 + $0x60] sm:$0xff]
        %v983 = vld [vmem:[%s3 + $0x68] sm:$0xff]
        %v984 = vld [vmem:[%s3 + $0x70] sm:$0xff]
        %v985 = vld [vmem:[%s3 + $0x78] sm:$0xff]
        %987 = vset.pattern.permute.xlu0 0
        %988 = vperm.xlu0 %987, %v970
        %v989 = vpop.permute.xlu0 %988
        %992 = vset.pattern.permute.xlu0 0
        %993 = vperm.xlu0 %992, %v971
        %v994 = vpop.permute.xlu0 %993
        %997 = vset.pattern.permute.xlu0 0
        %998 = vperm.xlu0 %997, %v972
        %v999 = vpop.permute.xlu0 %998
        %1002 = vset.pattern.permute.xlu0 0
        %1003 = vperm.xlu0 %1002, %v973
        %v1004 = vpop.permute.xlu0 %1003
        %1007 = vset.pattern.permute.xlu0 0
        %1008 = vperm.xlu0 %1007, %v974
        %v1009 = vpop.permute.xlu0 %1008
        %1012 = vset.pattern.permute.xlu0 0
        %1013 = vperm.xlu0 %1012, %v975
        %v1014 = vpop.permute.xlu0 %1013
        %1017 = vset.pattern.permute.xlu0 0
        %1018 = vperm.xlu0 %1017, %v976
        %v1019 = vpop.permute.xlu0 %1018
        %1022 = vset.pattern.permute.xlu0 0
        %1023 = vperm.xlu0 %1022, %v977
        %v1024 = vpop.permute.xlu0 %1023
        %1027 = vset.pattern.permute.xlu0 0
        %1028 = vperm.xlu0 %1027, %v978
        %v1029 = vpop.permute.xlu0 %1028
        %1032 = vset.pattern.permute.xlu0 0
        %1033 = vperm.xlu0 %1032, %v979
        %v1034 = vpop.permute.xlu0 %1033
        %1037 = vset.pattern.permute.xlu0 0
        %1038 = vperm.xlu0 %1037, %v980
        %v1039 = vpop.permute.xlu0 %1038
        %1042 = vset.pattern.permute.xlu0 0
        %1043 = vperm.xlu0 %1042, %v981
        %v1044 = vpop.permute.xlu0 %1043
        %1047 = vset.pattern.permute.xlu0 0
        %1048 = vperm.xlu0 %1047, %v982
        %v1049 = vpop.permute.xlu0 %1048
        %1052 = vset.pattern.permute.xlu0 0
        %1053 = vperm.xlu0 %1052, %v983
        %v1054 = vpop.permute.xlu0 %1053
        %1057 = vset.pattern.permute.xlu0 0
        %1058 = vperm.xlu0 %1057, %v984
        %v1059 = vpop.permute.xlu0 %1058
        %1062 = vset.pattern.permute.xlu0 0
        %1063 = vperm.xlu0 %1062, %v985
        %v1064 = vpop.permute.xlu0 %1063
        %v1082 = vunpack.c.l.b16 %v954
        %v1083 = vunpack.c.l.b16 %v955
        %v1084 = vunpack.c.l.b16 %v956
        %v1085 = vunpack.c.l.b16 %v957
        %v1086 = vunpack.c.l.b16 %v958
        %v1087 = vunpack.c.l.b16 %v959
        %v1088 = vunpack.c.l.b16 %v960
        %v1089 = vunpack.c.l.b16 %v961
        %v1090 = vunpack.c.l.b16 %v962
        %v1091 = vunpack.c.l.b16 %v963
        %v1092 = vunpack.c.l.b16 %v964
        %v1093 = vunpack.c.l.b16 %v965
        %v1094 = vunpack.c.l.b16 %v966
        %v1095 = vunpack.c.l.b16 %v967
        %v1096 = vunpack.c.l.b16 %v968
        %v1097 = vunpack.c.l.b16 %v969
        %v1098 = vpack.c.b16 %v1083, %v1082
        %v1099 = vpack.c.b16 %v1085, %v1084
        %v1100 = vpack.c.b16 %v1087, %v1086
        %v1101 = vpack.c.b16 %v1089, %v1088
        %v1102 = vpack.c.b16 %v1091, %v1090
        %v1103 = vpack.c.b16 %v1093, %v1092
        %v1104 = vpack.c.b16 %v1095, %v1094
        %v1105 = vpack.c.b16 %v1097, %v1096
        %vm1106 = vcmask 269312
        %v1108 = vsel %vm1106, %v1098, 0
        %v1111 = vsel %vm1106, %v1099, 0
        %v1114 = vsel %vm1106, %v1100, 0
        %v1117 = vsel %vm1106, %v1101, 0
        %v1120 = vsel %vm1106, %v1102, 0
        %v1123 = vsel %vm1106, %v1103, 0
        %v1126 = vsel %vm1106, %v1104, 0
        %v1129 = vsel %vm1106, %v1105, 0
        %vm1131 = vcmask 1040384
        %v1132 = vsel 0, 4294967295, 65535
        %v1133 = vsel %vm1131, %v1132, 0
        %v1135 = vand.u32 %v938, %v1133
        %v1138 = vand.u32 %v939, %v1133
        %v1141 = vand.u32 %v940, %v1133
        %v1144 = vand.u32 %v941, %v1133
        %1146 = vmatpush.bf16.msra.mxu0 0
        %1147 = vmatpush.bf16.msra.mxu0 0
        %1148 = vmatpush.bf16.msra.mxu0 0
        %1149 = vmatpush.bf16.msra.mxu0 0
        %1150 = vmatpush.bf16.msra.mxu0 0
        %1151 = vmatpush.bf16.msra.mxu0 %v1135
        %1152 = vmatpush.bf16.msra.mxu0 %v934
        %1153 = vmatpush.bf16.msra.mxu0 %v930
        %1154 = vmatmul.bf16.gmra.mxu0 %v1108
        %v1155 = vpop.f32.mrf.mxu0
        %v1156 = vadd.f32 %v989, %v1155
        %v1157 = vpop.f32.mrf.mxu0
        %v1158 = vadd.f32 %v994, %v1157
        %1159 = vmatmul.bf16.gmra.mxu0 %v1111
        %v1160 = vpop.f32.mrf.mxu0
        %v1161 = vadd.f32 %v999, %v1160
        %v1162 = vpop.f32.mrf.mxu0
        %v1163 = vadd.f32 %v1004, %v1162
        %1164 = vmatmul.bf16.gmra.mxu0 %v1114
        %v1165 = vpop.f32.mrf.mxu0
        %v1166 = vadd.f32 %v1009, %v1165
        %v1167 = vpop.f32.mrf.mxu0
        %v1168 = vadd.f32 %v1014, %v1167
        %1169 = vmatmul.bf16.gmra.mxu0 %v1117
        %v1170 = vpop.f32.mrf.mxu0
        %v1171 = vadd.f32 %v1019, %v1170
        %v1172 = vpop.f32.mrf.mxu0
        %v1173 = vadd.f32 %v1024, %v1172
        %1174 = vmatmul.bf16.gmra.mxu0 %v1120
        %v1175 = vpop.f32.mrf.mxu0
        %v1176 = vadd.f32 %v1029, %v1175
        %v1177 = vpop.f32.mrf.mxu0
        %v1178 = vadd.f32 %v1034, %v1177
        %1179 = vmatmul.bf16.gmra.mxu0 %v1123
        %v1180 = vpop.f32.mrf.mxu0
        %v1181 = vadd.f32 %v1039, %v1180
        %v1182 = vpop.f32.mrf.mxu0
        %v1183 = vadd.f32 %v1044, %v1182
        %1184 = vmatmul.bf16.gmra.mxu0 %v1126
        %v1185 = vpop.f32.mrf.mxu0
        %v1186 = vadd.f32 %v1049, %v1185
        %v1187 = vpop.f32.mrf.mxu0
        %v1188 = vadd.f32 %v1054, %v1187
        %1189 = vmatmul.bf16.gmra.mxu0 %v1129
        %v1190 = vpop.f32.mrf.mxu0
        %v1191 = vadd.f32 %v1059, %v1190
        %v1192 = vpop.f32.mrf.mxu0
        %v1193 = vadd.f32 %v1064, %v1192
        %1194 = vdwg.mxu0
        %1195 = vmatpush.bf16.msra.mxu0 0
        %1196 = vmatpush.bf16.msra.mxu0 0
        %1197 = vmatpush.bf16.msra.mxu0 0
        %1198 = vmatpush.bf16.msra.mxu0 0
        %1199 = vmatpush.bf16.msra.mxu0 0
        %1200 = vmatpush.bf16.msra.mxu0 %v1138
        %1201 = vmatpush.bf16.msra.mxu0 %v935
        %1202 = vmatpush.bf16.msra.mxu0 %v931
        %1203 = vmatmul.bf16.gmra.mxu0 %v1108
        %v1204 = vpop.f32.mrf.mxu0
        %v1205 = vadd.f32 %v989, %v1204
        %v1206 = vpop.f32.mrf.mxu0
        %v1207 = vadd.f32 %v994, %v1206
        %1208 = vmatmul.bf16.gmra.mxu0 %v1111
        %v1209 = vpop.f32.mrf.mxu0
        %v1210 = vadd.f32 %v999, %v1209
        %v1211 = vpop.f32.mrf.mxu0
        %v1212 = vadd.f32 %v1004, %v1211
        %1213 = vmatmul.bf16.gmra.mxu0 %v1114
        %v1214 = vpop.f32.mrf.mxu0
        %v1215 = vadd.f32 %v1009, %v1214
        %v1216 = vpop.f32.mrf.mxu0
        %v1217 = vadd.f32 %v1014, %v1216
        %1218 = vmatmul.bf16.gmra.mxu0 %v1117
        %v1219 = vpop.f32.mrf.mxu0
        %v1220 = vadd.f32 %v1019, %v1219
        %v1221 = vpop.f32.mrf.mxu0
        %v1222 = vadd.f32 %v1024, %v1221
        %1223 = vmatmul.bf16.gmra.mxu0 %v1120
        %v1224 = vpop.f32.mrf.mxu0
        %v1225 = vadd.f32 %v1029, %v1224
        %v1226 = vpop.f32.mrf.mxu0
        %v1227 = vadd.f32 %v1034, %v1226
        %1228 = vmatmul.bf16.gmra.mxu0 %v1123
        %v1229 = vpop.f32.mrf.mxu0
        %v1230 = vadd.f32 %v1039, %v1229
        %v1231 = vpop.f32.mrf.mxu0
        %v1232 = vadd.f32 %v1044, %v1231
        %1233 = vmatmul.bf16.gmra.mxu0 %v1126
        %v1234 = vpop.f32.mrf.mxu0
        %v1235 = vadd.f32 %v1049, %v1234
        %v1236 = vpop.f32.mrf.mxu0
        %v1237 = vadd.f32 %v1054, %v1236
        %1238 = vmatmul.bf16.gmra.mxu0 %v1129
        %v1239 = vpop.f32.mrf.mxu0
        %v1240 = vadd.f32 %v1059, %v1239
        %v1241 = vpop.f32.mrf.mxu0
        %v1242 = vadd.f32 %v1064, %v1241
        %1243 = vdwg.mxu0
        %1244 = vmatpush.bf16.msra.mxu0 0
        %1245 = vmatpush.bf16.msra.mxu0 0
        %1246 = vmatpush.bf16.msra.mxu0 0
        %1247 = vmatpush.bf16.msra.mxu0 0
        %1248 = vmatpush.bf16.msra.mxu0 0
        %1249 = vmatpush.bf16.msra.mxu0 %v1141
        %1250 = vmatpush.bf16.msra.mxu0 %v936
        %1251 = vmatpush.bf16.msra.mxu0 %v932
        %1252 = vmatmul.bf16.gmra.mxu0 %v1108
        %v1253 = vpop.f32.mrf.mxu0
        %v1254 = vadd.f32 %v989, %v1253
        %v1255 = vpop.f32.mrf.mxu0
        %v1256 = vadd.f32 %v994, %v1255
        %1257 = vmatmul.bf16.gmra.mxu0 %v1111
        %v1258 = vpop.f32.mrf.mxu0
        %v1259 = vadd.f32 %v999, %v1258
        %v1260 = vpop.f32.mrf.mxu0
        %v1261 = vadd.f32 %v1004, %v1260
        %1262 = vmatmul.bf16.gmra.mxu0 %v1114
        %v1263 = vpop.f32.mrf.mxu0
        %v1264 = vadd.f32 %v1009, %v1263
        %v1265 = vpop.f32.mrf.mxu0
        %v1266 = vadd.f32 %v1014, %v1265
        %1267 = vmatmul.bf16.gmra.mxu0 %v1117
        %v1268 = vpop.f32.mrf.mxu0
        %v1269 = vadd.f32 %v1019, %v1268
        %v1270 = vpop.f32.mrf.mxu0
        %v1271 = vadd.f32 %v1024, %v1270
        %1272 = vmatmul.bf16.gmra.mxu0 %v1120
        %v1273 = vpop.f32.mrf.mxu0
        %v1274 = vadd.f32 %v1029, %v1273
        %v1275 = vpop.f32.mrf.mxu0
        %v1276 = vadd.f32 %v1034, %v1275
        %1277 = vmatmul.bf16.gmra.mxu0 %v1123
        %v1278 = vpop.f32.mrf.mxu0
        %v1279 = vadd.f32 %v1039, %v1278
        %v1280 = vpop.f32.mrf.mxu0
        %v1281 = vadd.f32 %v1044, %v1280
        %1282 = vmatmul.bf16.gmra.mxu0 %v1126
        %v1283 = vpop.f32.mrf.mxu0
        %v1284 = vadd.f32 %v1049, %v1283
        %v1285 = vpop.f32.mrf.mxu0
        %v1286 = vadd.f32 %v1054, %v1285
        %1287 = vmatmul.bf16.gmra.mxu0 %v1129
        %v1288 = vpop.f32.mrf.mxu0
        %v1289 = vadd.f32 %v1059, %v1288
        %v1290 = vpop.f32.mrf.mxu0
        %v1291 = vadd.f32 %v1064, %v1290
        %1292 = vdwg.mxu0
        %1293 = vmatpush.bf16.msra.mxu0 0
        %1294 = vmatpush.bf16.msra.mxu0 0
        %1295 = vmatpush.bf16.msra.mxu0 0
        %1296 = vmatpush.bf16.msra.mxu0 0
        %1297 = vmatpush.bf16.msra.mxu0 0
        %1298 = vmatpush.bf16.msra.mxu0 %v1144
        %1299 = vmatpush.bf16.msra.mxu0 %v937
        %1300 = vmatpush.bf16.msra.mxu0 %v933
        %1301 = vmatmul.bf16.gmra.mxu0 %v1108
        %v1302 = vpop.f32.mrf.mxu0
        %v1303 = vadd.f32 %v989, %v1302
        %v1304 = vpop.f32.mrf.mxu0
        %v1305 = vadd.f32 %v994, %v1304
        %1306 = vmatmul.bf16.gmra.mxu0 %v1111
        %v1307 = vpop.f32.mrf.mxu0
        %v1308 = vadd.f32 %v999, %v1307
        %v1309 = vpop.f32.mrf.mxu0
        %v1310 = vadd.f32 %v1004, %v1309
        %1311 = vmatmul.bf16.gmra.mxu0 %v1114
        %v1312 = vpop.f32.mrf.mxu0
        %v1313 = vadd.f32 %v1009, %v1312
        %v1314 = vpop.f32.mrf.mxu0
        %v1315 = vadd.f32 %v1014, %v1314
        %1316 = vmatmul.bf16.gmra.mxu0 %v1117
        %v1317 = vpop.f32.mrf.mxu0
        %v1318 = vadd.f32 %v1019, %v1317
        %v1319 = vpop.f32.mrf.mxu0
        %v1320 = vadd.f32 %v1024, %v1319
        %1321 = vmatmul.bf16.gmra.mxu0 %v1120
        %v1322 = vpop.f32.mrf.mxu0
        %v1323 = vadd.f32 %v1029, %v1322
        %v1324 = vpop.f32.mrf.mxu0
        %v1325 = vadd.f32 %v1034, %v1324
        %1326 = vmatmul.bf16.gmra.mxu0 %v1123
        %v1327 = vpop.f32.mrf.mxu0
        %v1328 = vadd.f32 %v1039, %v1327
        %v1329 = vpop.f32.mrf.mxu0
        %v1330 = vadd.f32 %v1044, %v1329
        %1331 = vmatmul.bf16.gmra.mxu0 %v1126
        %v1332 = vpop.f32.mrf.mxu0
        %v1333 = vadd.f32 %v1049, %v1332
        %v1334 = vpop.f32.mrf.mxu0
        %v1335 = vadd.f32 %v1054, %v1334
        %1336 = vmatmul.bf16.gmra.mxu0 %v1129
        %v1337 = vpop.f32.mrf.mxu0
        %v1338 = vadd.f32 %v1059, %v1337
        %v1339 = vpop.f32.mrf.mxu0
        %v1340 = vadd.f32 %v1064, %v1339
        %1341 = vdwg.mxu0
        %v1342 = vmax.f32 %v1156, 0.0
        %v1343 = vmax.f32 %v1205, 0.0
        %v1344 = vmax.f32 %v1254, 0.0
        %v1345 = vmax.f32 %v1303, 0.0
        %v1346 = vmax.f32 %v1158, 0.0
        %v1347 = vmax.f32 %v1207, 0.0
        %v1348 = vmax.f32 %v1256, 0.0
        %v1349 = vmax.f32 %v1305, 0.0
        %v1350 = vmax.f32 %v1161, 0.0
        %v1351 = vmax.f32 %v1210, 0.0
        %v1352 = vmax.f32 %v1259, 0.0
        %v1353 = vmax.f32 %v1308, 0.0
        %v1354 = vmax.f32 %v1163, 0.0
        %v1355 = vmax.f32 %v1212, 0.0
        %v1356 = vmax.f32 %v1261, 0.0
        %v1357 = vmax.f32 %v1310, 0.0
        %v1358 = vmax.f32 %v1166, 0.0
        %v1359 = vmax.f32 %v1215, 0.0
        %v1360 = vmax.f32 %v1264, 0.0
        %v1361 = vmax.f32 %v1313, 0.0
        %v1362 = vmax.f32 %v1168, 0.0
        %v1363 = vmax.f32 %v1217, 0.0
        %v1364 = vmax.f32 %v1266, 0.0
        %v1365 = vmax.f32 %v1315, 0.0
        %v1366 = vmax.f32 %v1171, 0.0
        %v1367 = vmax.f32 %v1220, 0.0
        %v1368 = vmax.f32 %v1269, 0.0
        %v1369 = vmax.f32 %v1318, 0.0
        %v1370 = vmax.f32 %v1173, 0.0
        %v1371 = vmax.f32 %v1222, 0.0
        %v1372 = vmax.f32 %v1271, 0.0
        %v1373 = vmax.f32 %v1320, 0.0
        %v1374 = vmax.f32 %v1176, 0.0
        %v1375 = vmax.f32 %v1225, 0.0
        %v1376 = vmax.f32 %v1274, 0.0
        %v1377 = vmax.f32 %v1323, 0.0
        %v1378 = vmax.f32 %v1178, 0.0
        %v1379 = vmax.f32 %v1227, 0.0
        %v1380 = vmax.f32 %v1276, 0.0
        %v1381 = vmax.f32 %v1325, 0.0
        %v1382 = vmax.f32 %v1181, 0.0
        %v1383 = vmax.f32 %v1230, 0.0
        %v1384 = vmax.f32 %v1279, 0.0
        %v1385 = vmax.f32 %v1328, 0.0
        %v1386 = vmax.f32 %v1183, 0.0
        %v1387 = vmax.f32 %v1232, 0.0
        %v1388 = vmax.f32 %v1281, 0.0
        %v1389 = vmax.f32 %v1330, 0.0
        %v1390 = vmax.f32 %v1186, 0.0
        %v1391 = vmax.f32 %v1235, 0.0
        %v1392 = vmax.f32 %v1284, 0.0
        %v1393 = vmax.f32 %v1333, 0.0
        %v1394 = vmax.f32 %v1188, 0.0
        %v1395 = vmax.f32 %v1237, 0.0
        %v1396 = vmax.f32 %v1286, 0.0
        %v1397 = vmax.f32 %v1335, 0.0
        %v1398 = vmax.f32 %v1191, 0.0
        %v1399 = vmax.f32 %v1240, 0.0
        %v1400 = vmax.f32 %v1289, 0.0
        %v1401 = vmax.f32 %v1338, 0.0
        %v1402 = vmax.f32 %v1193, 0.0
        %v1403 = vmax.f32 %v1242, 0.0
        %v1404 = vmax.f32 %v1291, 0.0
        %v1405 = vmax.f32 %v1340, 0.0
        %v1406 = vld [vmem:[%s4] sm:$0xf]
        %v1407 = vld [vmem:[%s4 + $0x4] sm:$0xf]
        %v1408 = vld [vmem:[%s4 + $0x8] sm:$0xf]
        %v1409 = vld [vmem:[%s4 + $0xc] sm:$0xf]
        %v1410 = vld [vmem:[%s4 + $0x10] sm:$0xf]
        %v1411 = vld [vmem:[%s4 + $0x14] sm:$0xf]
        %v1412 = vld [vmem:[%s4 + $0x18] sm:$0xf]
        %v1413 = vld [vmem:[%s4 + $0x1c] sm:$0xf]
        %v1414 = vld [vmem:[%s4 + $0x20] sm:$0xf]
        %v1415 = vld [vmem:[%s4 + $0x24] sm:$0xf]
        %v1416 = vld [vmem:[%s4 + $0x28] sm:$0xf]
        %v1417 = vld [vmem:[%s4 + $0x2c] sm:$0xf]
        %v1418 = vld [vmem:[%s4 + $0x30] sm:$0xf]
        %v1419 = vld [vmem:[%s4 + $0x34] sm:$0xf]
        %v1420 = vld [vmem:[%s4 + $0x38] sm:$0xf]
        %v1421 = vld [vmem:[%s4 + $0x3c] sm:$0xf]
        %v1422 = vpack.c.bf16 %v1346, %v1342
        %v1423 = vpack.c.bf16 %v1347, %v1343
        %v1424 = vpack.c.bf16 %v1348, %v1344
        %v1425 = vpack.c.bf16 %v1349, %v1345
        %v1426 = vpack.c.bf16 %v1354, %v1350
        %v1427 = vpack.c.bf16 %v1355, %v1351
        %v1428 = vpack.c.bf16 %v1356, %v1352
        %v1429 = vpack.c.bf16 %v1357, %v1353
        %v1430 = vpack.c.bf16 %v1362, %v1358
        %v1431 = vpack.c.bf16 %v1363, %v1359
        %v1432 = vpack.c.bf16 %v1364, %v1360
        %v1433 = vpack.c.bf16 %v1365, %v1361
        %v1434 = vpack.c.bf16 %v1370, %v1366
        %v1435 = vpack.c.bf16 %v1371, %v1367
        %v1436 = vpack.c.bf16 %v1372, %v1368
        %v1437 = vpack.c.bf16 %v1373, %v1369
        %v1438 = vpack.c.bf16 %v1378, %v1374
        %v1439 = vpack.c.bf16 %v1379, %v1375
        %v1440 = vpack.c.bf16 %v1380, %v1376
        %v1441 = vpack.c.bf16 %v1381, %v1377
        %v1442 = vpack.c.bf16 %v1386, %v1382
        %v1443 = vpack.c.bf16 %v1387, %v1383
        %v1444 = vpack.c.bf16 %v1388, %v1384
        %v1445 = vpack.c.bf16 %v1389, %v1385
        %v1446 = vpack.c.bf16 %v1394, %v1390
        %v1447 = vpack.c.bf16 %v1395, %v1391
        %v1448 = vpack.c.bf16 %v1396, %v1392
        %v1449 = vpack.c.bf16 %v1397, %v1393
        %v1450 = vpack.c.bf16 %v1402, %v1398
        %v1451 = vpack.c.bf16 %v1403, %v1399
        %v1452 = vpack.c.bf16 %v1404, %v1400
        %v1453 = vpack.c.bf16 %v1405, %v1401
        %v1454 = vld [vmem:[%s5] sm:$0xff]
        %v1455 = vld [vmem:[%s5 + $0x8] sm:$0xff]
        %v1456 = vld [vmem:[%s5 + $0x10] sm:$0xff]
        %v1457 = vld [vmem:[%s5 + $0x18] sm:$0xff]
        %v1458 = vld [vmem:[%s5 + $0x20] sm:$0xff]
        %v1459 = vld [vmem:[%s5 + $0x28] sm:$0xff]
        %v1460 = vld [vmem:[%s5 + $0x30] sm:$0xff]
        %v1461 = vld [vmem:[%s5 + $0x38] sm:$0xff]
        %v1462 = vld [vmem:[%s5 + $0x40] sm:$0xff]
        %v1463 = vld [vmem:[%s5 + $0x48] sm:$0xff]
        %v1464 = vld [vmem:[%s5 + $0x50] sm:$0xff]
        %v1465 = vld [vmem:[%s5 + $0x58] sm:$0xff]
        %v1466 = vld [vmem:[%s5 + $0x60] sm:$0xff]
        %v1467 = vld [vmem:[%s5 + $0x68] sm:$0xff]
        %v1468 = vld [vmem:[%s5 + $0x70] sm:$0xff]
        %v1469 = vld [vmem:[%s5 + $0x78] sm:$0xff]
        %1471 = vset.pattern.permute.xlu0 0
        %1472 = vperm.xlu0 %1471, %v1454
        %v1473 = vpop.permute.xlu0 %1472
        %1476 = vset.pattern.permute.xlu0 0
        %1477 = vperm.xlu0 %1476, %v1455
        %v1478 = vpop.permute.xlu0 %1477
        %1481 = vset.pattern.permute.xlu0 0
        %1482 = vperm.xlu0 %1481, %v1456
        %v1483 = vpop.permute.xlu0 %1482
        %1486 = vset.pattern.permute.xlu0 0
        %1487 = vperm.xlu0 %1486, %v1457
        %v1488 = vpop.permute.xlu0 %1487
        %1491 = vset.pattern.permute.xlu0 0
        %1492 = vperm.xlu0 %1491, %v1458
        %v1493 = vpop.permute.xlu0 %1492
        %1496 = vset.pattern.permute.xlu0 0
        %1497 = vperm.xlu0 %1496, %v1459
        %v1498 = vpop.permute.xlu0 %1497
        %1501 = vset.pattern.permute.xlu0 0
        %1502 = vperm.xlu0 %1501, %v1460
        %v1503 = vpop.permute.xlu0 %1502
        %1506 = vset.pattern.permute.xlu0 0
        %1507 = vperm.xlu0 %1506, %v1461
        %v1508 = vpop.permute.xlu0 %1507
        %1511 = vset.pattern.permute.xlu0 0
        %1512 = vperm.xlu0 %1511, %v1462
        %v1513 = vpop.permute.xlu0 %1512
        %1516 = vset.pattern.permute.xlu0 0
        %1517 = vperm.xlu0 %1516, %v1463
        %v1518 = vpop.permute.xlu0 %1517
        %1521 = vset.pattern.permute.xlu0 0
        %1522 = vperm.xlu0 %1521, %v1464
        %v1523 = vpop.permute.xlu0 %1522
        %1526 = vset.pattern.permute.xlu0 0
        %1527 = vperm.xlu0 %1526, %v1465
        %v1528 = vpop.permute.xlu0 %1527
        %1531 = vset.pattern.permute.xlu0 0
        %1532 = vperm.xlu0 %1531, %v1466
        %v1533 = vpop.permute.xlu0 %1532
        %1536 = vset.pattern.permute.xlu0 0
        %1537 = vperm.xlu0 %1536, %v1467
        %v1538 = vpop.permute.xlu0 %1537
        %1541 = vset.pattern.permute.xlu0 0
        %1542 = vperm.xlu0 %1541, %v1468
        %v1543 = vpop.permute.xlu0 %1542
        %1546 = vset.pattern.permute.xlu0 0
        %1547 = vperm.xlu0 %1546, %v1469
        %v1548 = vpop.permute.xlu0 %1547
        %v1566 = vunpack.c.l.b16 %v1406
        %v1567 = vunpack.c.l.b16 %v1407
        %v1568 = vunpack.c.l.b16 %v1408
        %v1569 = vunpack.c.l.b16 %v1409
        %v1570 = vunpack.c.l.b16 %v1410
        %v1571 = vunpack.c.l.b16 %v1411
        %v1572 = vunpack.c.l.b16 %v1412
        %v1573 = vunpack.c.l.b16 %v1413
        %v1574 = vunpack.c.l.b16 %v1414
        %v1575 = vunpack.c.l.b16 %v1415
        %v1576 = vunpack.c.l.b16 %v1416
        %v1577 = vunpack.c.l.b16 %v1417
        %v1578 = vunpack.c.l.b16 %v1418
        %v1579 = vunpack.c.l.b16 %v1419
        %v1580 = vunpack.c.l.b16 %v1420
        %v1581 = vunpack.c.l.b16 %v1421
        %v1582 = vpack.c.b16 %v1567, %v1566
        %v1583 = vpack.c.b16 %v1569, %v1568
        %v1584 = vpack.c.b16 %v1571, %v1570
        %v1585 = vpack.c.b16 %v1573, %v1572
        %v1586 = vpack.c.b16 %v1575, %v1574
        %v1587 = vpack.c.b16 %v1577, %v1576
        %v1588 = vpack.c.b16 %v1579, %v1578
        %v1589 = vpack.c.b16 %v1581, %v1580
        %1598 = vmatpush.bf16.msra.mxu0 %v1450
        %1599 = vmatpush.bf16.msra.mxu0 %v1446
        %1600 = vmatpush.bf16.msra.mxu0 %v1442
        %1601 = vmatpush.bf16.msra.mxu0 %v1438
        %1602 = vmatpush.bf16.msra.mxu0 %v1434
        %1603 = vmatpush.bf16.msra.mxu0 %v1430
        %1604 = vmatpush.bf16.msra.mxu0 %v1426
        %1605 = vmatpush.bf16.msra.mxu0 %v1422
        %1606 = vmatmul.bf16.gmra.mxu0 %v1582
        %v1607 = vpop.f32.mrf.mxu0
        %v1608 = vadd.f32 %v1473, %v1607
        %v1609 = vpop.f32.mrf.mxu0
        %v1610 = vadd.f32 %v1478, %v1609
        %1611 = vmatmul.bf16.gmra.mxu0 %v1583
        %v1612 = vpop.f32.mrf.mxu0
        %v1613 = vadd.f32 %v1483, %v1612
        %v1614 = vpop.f32.mrf.mxu0
        %v1615 = vadd.f32 %v1488, %v1614
        %1616 = vmatmul.bf16.gmra.mxu0 %v1584
        %v1617 = vpop.f32.mrf.mxu0
        %v1618 = vadd.f32 %v1493, %v1617
        %v1619 = vpop.f32.mrf.mxu0
        %v1620 = vadd.f32 %v1498, %v1619
        %1621 = vmatmul.bf16.gmra.mxu0 %v1585
        %v1622 = vpop.f32.mrf.mxu0
        %v1623 = vadd.f32 %v1503, %v1622
        %v1624 = vpop.f32.mrf.mxu0
        %v1625 = vadd.f32 %v1508, %v1624
        %1626 = vmatmul.bf16.gmra.mxu0 %v1586
        %v1627 = vpop.f32.mrf.mxu0
        %v1628 = vadd.f32 %v1513, %v1627
        %v1629 = vpop.f32.mrf.mxu0
        %v1630 = vadd.f32 %v1518, %v1629
        %1631 = vmatmul.bf16.gmra.mxu0 %v1587
        %v1632 = vpop.f32.mrf.mxu0
        %v1633 = vadd.f32 %v1523, %v1632
        %v1634 = vpop.f32.mrf.mxu0
        %v1635 = vadd.f32 %v1528, %v1634
        %1636 = vmatmul.bf16.gmra.mxu0 %v1588
        %v1637 = vpop.f32.mrf.mxu0
        %v1638 = vadd.f32 %v1533, %v1637
        %v1639 = vpop.f32.mrf.mxu0
        %v1640 = vadd.f32 %v1538, %v1639
        %1641 = vmatmul.bf16.gmra.mxu0 %v1589
        %v1642 = vpop.f32.mrf.mxu0
        %v1643 = vadd.f32 %v1543, %v1642
        %v1644 = vpop.f32.mrf.mxu0
        %v1645 = vadd.f32 %v1548, %v1644
        %1646 = vdwg.mxu0
        %1647 = vmatpush.bf16.msra.mxu0 %v1451
        %1648 = vmatpush.bf16.msra.mxu0 %v1447
        %1649 = vmatpush.bf16.msra.mxu0 %v1443
        %1650 = vmatpush.bf16.msra.mxu0 %v1439
        %1651 = vmatpush.bf16.msra.mxu0 %v1435
        %1652 = vmatpush.bf16.msra.mxu0 %v1431
        %1653 = vmatpush.bf16.msra.mxu0 %v1427
        %1654 = vmatpush.bf16.msra.mxu0 %v1423
        %1655 = vmatmul.bf16.gmra.mxu0 %v1582
        %v1656 = vpop.f32.mrf.mxu0
        %v1657 = vadd.f32 %v1473, %v1656
        %v1658 = vpop.f32.mrf.mxu0
        %v1659 = vadd.f32 %v1478, %v1658
        %1660 = vmatmul.bf16.gmra.mxu0 %v1583
        %v1661 = vpop.f32.mrf.mxu0
        %v1662 = vadd.f32 %v1483, %v1661
        %v1663 = vpop.f32.mrf.mxu0
        %v1664 = vadd.f32 %v1488, %v1663
        %1665 = vmatmul.bf16.gmra.mxu0 %v1584
        %v1666 = vpop.f32.mrf.mxu0
        %v1667 = vadd.f32 %v1493, %v1666
        %v1668 = vpop.f32.mrf.mxu0
        %v1669 = vadd.f32 %v1498, %v1668
        %1670 = vmatmul.bf16.gmra.mxu0 %v1585
        %v1671 = vpop.f32.mrf.mxu0
        %v1672 = vadd.f32 %v1503, %v1671
        %v1673 = vpop.f32.mrf.mxu0
        %v1674 = vadd.f32 %v1508, %v1673
        %1675 = vmatmul.bf16.gmra.mxu0 %v1586
        %v1676 = vpop.f32.mrf.mxu0
        %v1677 = vadd.f32 %v1513, %v1676
        %v1678 = vpop.f32.mrf.mxu0
        %v1679 = vadd.f32 %v1518, %v1678
        %1680 = vmatmul.bf16.gmra.mxu0 %v1587
        %v1681 = vpop.f32.mrf.mxu0
        %v1682 = vadd.f32 %v1523, %v1681
        %v1683 = vpop.f32.mrf.mxu0
        %v1684 = vadd.f32 %v1528, %v1683
        %1685 = vmatmul.bf16.gmra.mxu0 %v1588
        %v1686 = vpop.f32.mrf.mxu0
        %v1687 = vadd.f32 %v1533, %v1686
        %v1688 = vpop.f32.mrf.mxu0
        %v1689 = vadd.f32 %v1538, %v1688
        %1690 = vmatmul.bf16.gmra.mxu0 %v1589
        %v1691 = vpop.f32.mrf.mxu0
        %v1692 = vadd.f32 %v1543, %v1691
        %v1693 = vpop.f32.mrf.mxu0
        %v1694 = vadd.f32 %v1548, %v1693
        %1695 = vdwg.mxu0
        %1696 = vmatpush.bf16.msra.mxu0 %v1452
        %1697 = vmatpush.bf16.msra.mxu0 %v1448
        %1698 = vmatpush.bf16.msra.mxu0 %v1444
        %1699 = vmatpush.bf16.msra.mxu0 %v1440
        %1700 = vmatpush.bf16.msra.mxu0 %v1436
        %1701 = vmatpush.bf16.msra.mxu0 %v1432
        %1702 = vmatpush.bf16.msra.mxu0 %v1428
        %1703 = vmatpush.bf16.msra.mxu0 %v1424
        %1704 = vmatmul.bf16.gmra.mxu0 %v1582
        %v1705 = vpop.f32.mrf.mxu0
        %v1706 = vadd.f32 %v1473, %v1705
        %v1707 = vpop.f32.mrf.mxu0
        %v1708 = vadd.f32 %v1478, %v1707
        %1709 = vmatmul.bf16.gmra.mxu0 %v1583
        %v1710 = vpop.f32.mrf.mxu0
        %v1711 = vadd.f32 %v1483, %v1710
        %v1712 = vpop.f32.mrf.mxu0
        %v1713 = vadd.f32 %v1488, %v1712
        %1714 = vmatmul.bf16.gmra.mxu0 %v1584
        %v1715 = vpop.f32.mrf.mxu0
        %v1716 = vadd.f32 %v1493, %v1715
        %v1717 = vpop.f32.mrf.mxu0
        %v1718 = vadd.f32 %v1498, %v1717
        %1719 = vmatmul.bf16.gmra.mxu0 %v1585
        %v1720 = vpop.f32.mrf.mxu0
        %v1721 = vadd.f32 %v1503, %v1720
        %v1722 = vpop.f32.mrf.mxu0
        %v1723 = vadd.f32 %v1508, %v1722
        %1724 = vmatmul.bf16.gmra.mxu0 %v1586
        %v1725 = vpop.f32.mrf.mxu0
        %v1726 = vadd.f32 %v1513, %v1725
        %v1727 = vpop.f32.mrf.mxu0
        %v1728 = vadd.f32 %v1518, %v1727
        %1729 = vmatmul.bf16.gmra.mxu0 %v1587
        %v1730 = vpop.f32.mrf.mxu0
        %v1731 = vadd.f32 %v1523, %v1730
        %v1732 = vpop.f32.mrf.mxu0
        %v1733 = vadd.f32 %v1528, %v1732
        %1734 = vmatmul.bf16.gmra.mxu0 %v1588
        %v1735 = vpop.f32.mrf.mxu0
        %v1736 = vadd.f32 %v1533, %v1735
        %v1737 = vpop.f32.mrf.mxu0
        %v1738 = vadd.f32 %v1538, %v1737
        %1739 = vmatmul.bf16.gmra.mxu0 %v1589
        %v1740 = vpop.f32.mrf.mxu0
        %v1741 = vadd.f32 %v1543, %v1740
        %v1742 = vpop.f32.mrf.mxu0
        %v1743 = vadd.f32 %v1548, %v1742
        %1744 = vdwg.mxu0
        %1745 = vmatpush.bf16.msra.mxu0 %v1453
        %1746 = vmatpush.bf16.msra.mxu0 %v1449
        %1747 = vmatpush.bf16.msra.mxu0 %v1445
        %1748 = vmatpush.bf16.msra.mxu0 %v1441
        %1749 = vmatpush.bf16.msra.mxu0 %v1437
        %1750 = vmatpush.bf16.msra.mxu0 %v1433
        %1751 = vmatpush.bf16.msra.mxu0 %v1429
        %1752 = vmatpush.bf16.msra.mxu0 %v1425
        %1753 = vmatmul.bf16.gmra.mxu0 %v1582
        %v1754 = vpop.f32.mrf.mxu0
        %v1755 = vadd.f32 %v1473, %v1754
        %v1756 = vpop.f32.mrf.mxu0
        %v1757 = vadd.f32 %v1478, %v1756
        %1758 = vmatmul.bf16.gmra.mxu0 %v1583
        %v1759 = vpop.f32.mrf.mxu0
        %v1760 = vadd.f32 %v1483, %v1759
        %v1761 = vpop.f32.mrf.mxu0
        %v1762 = vadd.f32 %v1488, %v1761
        %1763 = vmatmul.bf16.gmra.mxu0 %v1584
        %v1764 = vpop.f32.mrf.mxu0
        %v1765 = vadd.f32 %v1493, %v1764
        %v1766 = vpop.f32.mrf.mxu0
        %v1767 = vadd.f32 %v1498, %v1766
        %1768 = vmatmul.bf16.gmra.mxu0 %v1585
        %v1769 = vpop.f32.mrf.mxu0
        %v1770 = vadd.f32 %v1503, %v1769
        %v1771 = vpop.f32.mrf.mxu0
        %v1772 = vadd.f32 %v1508, %v1771
        %1773 = vmatmul.bf16.gmra.mxu0 %v1586
        %v1774 = vpop.f32.mrf.mxu0
        %v1775 = vadd.f32 %v1513, %v1774
        %v1776 = vpop.f32.mrf.mxu0
        %v1777 = vadd.f32 %v1518, %v1776
        %1778 = vmatmul.bf16.gmra.mxu0 %v1587
        %v1779 = vpop.f32.mrf.mxu0
        %v1780 = vadd.f32 %v1523, %v1779
        %v1781 = vpop.f32.mrf.mxu0
        %v1782 = vadd.f32 %v1528, %v1781
        %1783 = vmatmul.bf16.gmra.mxu0 %v1588
        %v1784 = vpop.f32.mrf.mxu0
        %v1785 = vadd.f32 %v1533, %v1784
        %v1786 = vpop.f32.mrf.mxu0
        %v1787 = vadd.f32 %v1538, %v1786
        %1788 = vmatmul.bf16.gmra.mxu0 %v1589
        %v1789 = vpop.f32.mrf.mxu0
        %v1790 = vadd.f32 %v1543, %v1789
        %v1791 = vpop.f32.mrf.mxu0
        %v1792 = vadd.f32 %v1548, %v1791
        %1793 = vdwg.mxu0
        %v1794 = vmax.f32 %v1608, 0.0
        %v1795 = vmax.f32 %v1657, 0.0
        %v1796 = vmax.f32 %v1706, 0.0
        %v1797 = vmax.f32 %v1755, 0.0
        %v1798 = vmax.f32 %v1610, 0.0
        %v1799 = vmax.f32 %v1659, 0.0
        %v1800 = vmax.f32 %v1708, 0.0
        %v1801 = vmax.f32 %v1757, 0.0
        %v1802 = vmax.f32 %v1613, 0.0
        %v1803 = vmax.f32 %v1662, 0.0
        %v1804 = vmax.f32 %v1711, 0.0
        %v1805 = vmax.f32 %v1760, 0.0
        %v1806 = vmax.f32 %v1615, 0.0
        %v1807 = vmax.f32 %v1664, 0.0
        %v1808 = vmax.f32 %v1713, 0.0
        %v1809 = vmax.f32 %v1762, 0.0
        %v1810 = vmax.f32 %v1618, 0.0
        %v1811 = vmax.f32 %v1667, 0.0
        %v1812 = vmax.f32 %v1716, 0.0
        %v1813 = vmax.f32 %v1765, 0.0
        %v1814 = vmax.f32 %v1620, 0.0
        %v1815 = vmax.f32 %v1669, 0.0
        %v1816 = vmax.f32 %v1718, 0.0
        %v1817 = vmax.f32 %v1767, 0.0
        %v1818 = vmax.f32 %v1623, 0.0
        %v1819 = vmax.f32 %v1672, 0.0
        %v1820 = vmax.f32 %v1721, 0.0
        %v1821 = vmax.f32 %v1770, 0.0
        %v1822 = vmax.f32 %v1625, 0.0
        %v1823 = vmax.f32 %v1674, 0.0
        %v1824 = vmax.f32 %v1723, 0.0
        %v1825 = vmax.f32 %v1772, 0.0
        %v1826 = vmax.f32 %v1628, 0.0
        %v1827 = vmax.f32 %v1677, 0.0
        %v1828 = vmax.f32 %v1726, 0.0
        %v1829 = vmax.f32 %v1775, 0.0
        %v1830 = vmax.f32 %v1630, 0.0
        %v1831 = vmax.f32 %v1679, 0.0
        %v1832 = vmax.f32 %v1728, 0.0
        %v1833 = vmax.f32 %v1777, 0.0
        %v1834 = vmax.f32 %v1633, 0.0
        %v1835 = vmax.f32 %v1682, 0.0
        %v1836 = vmax.f32 %v1731, 0.0
        %v1837 = vmax.f32 %v1780, 0.0
        %v1838 = vmax.f32 %v1635, 0.0
        %v1839 = vmax.f32 %v1684, 0.0
        %v1840 = vmax.f32 %v1733, 0.0
        %v1841 = vmax.f32 %v1782, 0.0
        %v1842 = vmax.f32 %v1638, 0.0
        %v1843 = vmax.f32 %v1687, 0.0
        %v1844 = vmax.f32 %v1736, 0.0
        %v1845 = vmax.f32 %v1785, 0.0
        %v1846 = vmax.f32 %v1640, 0.0
        %v1847 = vmax.f32 %v1689, 0.0
        %v1848 = vmax.f32 %v1738, 0.0
        %v1849 = vmax.f32 %v1787, 0.0
        %v1850 = vmax.f32 %v1643, 0.0
        %v1851 = vmax.f32 %v1692, 0.0
        %v1852 = vmax.f32 %v1741, 0.0
        %v1853 = vmax.f32 %v1790, 0.0
        %v1854 = vmax.f32 %v1645, 0.0
        %v1855 = vmax.f32 %v1694, 0.0
        %v1856 = vmax.f32 %v1743, 0.0
        %v1857 = vmax.f32 %v1792, 0.0
        %v1858 = vld [vmem:[%s6] sm:$0xf]
        %v1859 = vld [vmem:[%s6 + $0x4] sm:$0xf]
        %v1860 = vld [vmem:[%s6 + $0x8] sm:$0xf]
        %v1861 = vld [vmem:[%s6 + $0xc] sm:$0xf]
        %v1862 = vld [vmem:[%s6 + $0x10] sm:$0xf]
        %v1863 = vld [vmem:[%s6 + $0x14] sm:$0xf]
        %v1864 = vld [vmem:[%s6 + $0x18] sm:$0xf]
        %v1865 = vld [vmem:[%s6 + $0x1c] sm:$0xf]
        %v1866 = vld [vmem:[%s6 + $0x20] sm:$0xf]
        %v1867 = vld [vmem:[%s6 + $0x24] sm:$0xf]
        %v1868 = vld [vmem:[%s6 + $0x28] sm:$0xf]
        %v1869 = vld [vmem:[%s6 + $0x2c] sm:$0xf]
        %v1870 = vld [vmem:[%s6 + $0x30] sm:$0xf]
        %v1871 = vld [vmem:[%s6 + $0x34] sm:$0xf]
        %v1872 = vld [vmem:[%s6 + $0x38] sm:$0xf]
        %v1873 = vld [vmem:[%s6 + $0x3c] sm:$0xf]
        %v1874 = vpack.c.bf16 %v1798, %v1794
        %v1875 = vpack.c.bf16 %v1799, %v1795
        %v1876 = vpack.c.bf16 %v1800, %v1796
        %v1877 = vpack.c.bf16 %v1801, %v1797
        %v1878 = vpack.c.bf16 %v1806, %v1802
        %v1879 = vpack.c.bf16 %v1807, %v1803
        %v1880 = vpack.c.bf16 %v1808, %v1804
        %v1881 = vpack.c.bf16 %v1809, %v1805
        %v1882 = vpack.c.bf16 %v1814, %v1810
        %v1883 = vpack.c.bf16 %v1815, %v1811
        %v1884 = vpack.c.bf16 %v1816, %v1812
        %v1885 = vpack.c.bf16 %v1817, %v1813
        %v1886 = vpack.c.bf16 %v1822, %v1818
        %v1887 = vpack.c.bf16 %v1823, %v1819
        %v1888 = vpack.c.bf16 %v1824, %v1820
        %v1889 = vpack.c.bf16 %v1825, %v1821
        %v1890 = vpack.c.bf16 %v1830, %v1826
        %v1891 = vpack.c.bf16 %v1831, %v1827
        %v1892 = vpack.c.bf16 %v1832, %v1828
        %v1893 = vpack.c.bf16 %v1833, %v1829
        %v1894 = vpack.c.bf16 %v1838, %v1834
        %v1895 = vpack.c.bf16 %v1839, %v1835
        %v1896 = vpack.c.bf16 %v1840, %v1836
        %v1897 = vpack.c.bf16 %v1841, %v1837
        %v1898 = vpack.c.bf16 %v1846, %v1842
        %v1899 = vpack.c.bf16 %v1847, %v1843
        %v1900 = vpack.c.bf16 %v1848, %v1844
        %v1901 = vpack.c.bf16 %v1849, %v1845
        %v1902 = vpack.c.bf16 %v1854, %v1850
        %v1903 = vpack.c.bf16 %v1855, %v1851
        %v1904 = vpack.c.bf16 %v1856, %v1852
        %v1905 = vpack.c.bf16 %v1857, %v1853
        %v1906 = vld [vmem:[%s7] sm:$0xff]
        %v1907 = vld [vmem:[%s7 + $0x8] sm:$0xff]
        %v1908 = vld [vmem:[%s7 + $0x10] sm:$0xff]
        %v1909 = vld [vmem:[%s7 + $0x18] sm:$0xff]
        %v1910 = vld [vmem:[%s7 + $0x20] sm:$0xff]
        %v1911 = vld [vmem:[%s7 + $0x28] sm:$0xff]
        %v1912 = vld [vmem:[%s7 + $0x30] sm:$0xff]
        %v1913 = vld [vmem:[%s7 + $0x38] sm:$0xff]
        %v1914 = vld [vmem:[%s7 + $0x40] sm:$0xff]
        %v1915 = vld [vmem:[%s7 + $0x48] sm:$0xff]
        %v1916 = vld [vmem:[%s7 + $0x50] sm:$0xff]
        %v1917 = vld [vmem:[%s7 + $0x58] sm:$0xff]
        %v1918 = vld [vmem:[%s7 + $0x60] sm:$0xff]
        %v1919 = vld [vmem:[%s7 + $0x68] sm:$0xff]
        %v1920 = vld [vmem:[%s7 + $0x70] sm:$0xff]
        %v1921 = vld [vmem:[%s7 + $0x78] sm:$0xff]
        %1923 = vset.pattern.permute.xlu0 0
        %1924 = vperm.xlu0 %1923, %v1906
        %v1925 = vpop.permute.xlu0 %1924
        %1928 = vset.pattern.permute.xlu0 0
        %1929 = vperm.xlu0 %1928, %v1907
        %v1930 = vpop.permute.xlu0 %1929
        %1933 = vset.pattern.permute.xlu0 0
        %1934 = vperm.xlu0 %1933, %v1908
        %v1935 = vpop.permute.xlu0 %1934
        %1938 = vset.pattern.permute.xlu0 0
        %1939 = vperm.xlu0 %1938, %v1909
        %v1940 = vpop.permute.xlu0 %1939
        %1943 = vset.pattern.permute.xlu0 0
        %1944 = vperm.xlu0 %1943, %v1910
        %v1945 = vpop.permute.xlu0 %1944
        %1948 = vset.pattern.permute.xlu0 0
        %1949 = vperm.xlu0 %1948, %v1911
        %v1950 = vpop.permute.xlu0 %1949
        %1953 = vset.pattern.permute.xlu0 0
        %1954 = vperm.xlu0 %1953, %v1912
        %v1955 = vpop.permute.xlu0 %1954
        %1958 = vset.pattern.permute.xlu0 0
        %1959 = vperm.xlu0 %1958, %v1913
        %v1960 = vpop.permute.xlu0 %1959
        %1963 = vset.pattern.permute.xlu0 0
        %1964 = vperm.xlu0 %1963, %v1914
        %v1965 = vpop.permute.xlu0 %1964
        %1968 = vset.pattern.permute.xlu0 0
        %1969 = vperm.xlu0 %1968, %v1915
        %v1970 = vpop.permute.xlu0 %1969
        %1973 = vset.pattern.permute.xlu0 0
        %1974 = vperm.xlu0 %1973, %v1916
        %v1975 = vpop.permute.xlu0 %1974
        %1978 = vset.pattern.permute.xlu0 0
        %1979 = vperm.xlu0 %1978, %v1917
        %v1980 = vpop.permute.xlu0 %1979
        %1983 = vset.pattern.permute.xlu0 0
        %1984 = vperm.xlu0 %1983, %v1918
        %v1985 = vpop.permute.xlu0 %1984
        %1988 = vset.pattern.permute.xlu0 0
        %1989 = vperm.xlu0 %1988, %v1919
        %v1990 = vpop.permute.xlu0 %1989
        %1993 = vset.pattern.permute.xlu0 0
        %1994 = vperm.xlu0 %1993, %v1920
        %v1995 = vpop.permute.xlu0 %1994
        %1998 = vset.pattern.permute.xlu0 0
        %1999 = vperm.xlu0 %1998, %v1921
        %v2000 = vpop.permute.xlu0 %1999
        %v2018 = vunpack.c.l.b16 %v1858
        %v2019 = vunpack.c.l.b16 %v1859
        %v2020 = vunpack.c.l.b16 %v1860
        %v2021 = vunpack.c.l.b16 %v1861
        %v2022 = vunpack.c.l.b16 %v1862
        %v2023 = vunpack.c.l.b16 %v1863
        %v2024 = vunpack.c.l.b16 %v1864
        %v2025 = vunpack.c.l.b16 %v1865
        %v2026 = vunpack.c.l.b16 %v1866
        %v2027 = vunpack.c.l.b16 %v1867
        %v2028 = vunpack.c.l.b16 %v1868
        %v2029 = vunpack.c.l.b16 %v1869
        %v2030 = vunpack.c.l.b16 %v1870
        %v2031 = vunpack.c.l.b16 %v1871
        %v2032 = vunpack.c.l.b16 %v1872
        %v2033 = vunpack.c.l.b16 %v1873
        %v2034 = vpack.c.b16 %v2019, %v2018
        %v2035 = vpack.c.b16 %v2021, %v2020
        %v2036 = vpack.c.b16 %v2023, %v2022
        %v2037 = vpack.c.b16 %v2025, %v2024
        %v2038 = vpack.c.b16 %v2027, %v2026
        %v2039 = vpack.c.b16 %v2029, %v2028
        %v2040 = vpack.c.b16 %v2031, %v2030
        %v2041 = vpack.c.b16 %v2033, %v2032
        %2050 = vmatpush.bf16.msra.mxu0 %v1902
        %2051 = vmatpush.bf16.msra.mxu0 %v1898
        %2052 = vmatpush.bf16.msra.mxu0 %v1894
        %2053 = vmatpush.bf16.msra.mxu0 %v1890
        %2054 = vmatpush.bf16.msra.mxu0 %v1886
        %2055 = vmatpush.bf16.msra.mxu0 %v1882
        %2056 = vmatpush.bf16.msra.mxu0 %v1878
        %2057 = vmatpush.bf16.msra.mxu0 %v1874
        %2058 = vmatmul.bf16.gmra.mxu0 %v2034
        %v2059 = vpop.f32.mrf.mxu0
        %v2060 = vadd.f32 %v1925, %v2059
        %v2061 = vpop.f32.mrf.mxu0
        %v2062 = vadd.f32 %v1930, %v2061
        %2063 = vmatmul.bf16.gmra.mxu0 %v2035
        %v2064 = vpop.f32.mrf.mxu0
        %v2065 = vadd.f32 %v1935, %v2064
        %v2066 = vpop.f32.mrf.mxu0
        %v2067 = vadd.f32 %v1940, %v2066
        %2068 = vmatmul.bf16.gmra.mxu0 %v2036
        %v2069 = vpop.f32.mrf.mxu0
        %v2070 = vadd.f32 %v1945, %v2069
        %v2071 = vpop.f32.mrf.mxu0
        %v2072 = vadd.f32 %v1950, %v2071
        %2073 = vmatmul.bf16.gmra.mxu0 %v2037
        %v2074 = vpop.f32.mrf.mxu0
        %v2075 = vadd.f32 %v1955, %v2074
        %v2076 = vpop.f32.mrf.mxu0
        %v2077 = vadd.f32 %v1960, %v2076
        %2078 = vmatmul.bf16.gmra.mxu0 %v2038
        %v2079 = vpop.f32.mrf.mxu0
        %v2080 = vadd.f32 %v1965, %v2079
        %v2081 = vpop.f32.mrf.mxu0
        %v2082 = vadd.f32 %v1970, %v2081
        %2083 = vmatmul.bf16.gmra.mxu0 %v2039
        %v2084 = vpop.f32.mrf.mxu0
        %v2085 = vadd.f32 %v1975, %v2084
        %v2086 = vpop.f32.mrf.mxu0
        %v2087 = vadd.f32 %v1980, %v2086
        %2088 = vmatmul.bf16.gmra.mxu0 %v2040
        %v2089 = vpop.f32.mrf.mxu0
        %v2090 = vadd.f32 %v1985, %v2089
        %v2091 = vpop.f32.mrf.mxu0
        %v2092 = vadd.f32 %v1990, %v2091
        %2093 = vmatmul.bf16.gmra.mxu0 %v2041
        %v2094 = vpop.f32.mrf.mxu0
        %v2095 = vadd.f32 %v1995, %v2094
        %v2096 = vpop.f32.mrf.mxu0
        %v2097 = vadd.f32 %v2000, %v2096
        %2098 = vdwg.mxu0
        %2099 = vmatpush.bf16.msra.mxu0 %v1903
        %2100 = vmatpush.bf16.msra.mxu0 %v1899
        %2101 = vmatpush.bf16.msra.mxu0 %v1895
        %2102 = vmatpush.bf16.msra.mxu0 %v1891
        %2103 = vmatpush.bf16.msra.mxu0 %v1887
        %2104 = vmatpush.bf16.msra.mxu0 %v1883
        %2105 = vmatpush.bf16.msra.mxu0 %v1879
        %2106 = vmatpush.bf16.msra.mxu0 %v1875
        %2107 = vmatmul.bf16.gmra.mxu0 %v2034
        %v2108 = vpop.f32.mrf.mxu0
        %v2109 = vadd.f32 %v1925, %v2108
        %v2110 = vpop.f32.mrf.mxu0
        %v2111 = vadd.f32 %v1930, %v2110
        %2112 = vmatmul.bf16.gmra.mxu0 %v2035
        %v2113 = vpop.f32.mrf.mxu0
        %v2114 = vadd.f32 %v1935, %v2113
        %v2115 = vpop.f32.mrf.mxu0
        %v2116 = vadd.f32 %v1940, %v2115
        %2117 = vmatmul.bf16.gmra.mxu0 %v2036
        %v2118 = vpop.f32.mrf.mxu0
        %v2119 = vadd.f32 %v1945, %v2118
        %v2120 = vpop.f32.mrf.mxu0
        %v2121 = vadd.f32 %v1950, %v2120
        %2122 = vmatmul.bf16.gmra.mxu0 %v2037
        %v2123 = vpop.f32.mrf.mxu0
        %v2124 = vadd.f32 %v1955, %v2123
        %v2125 = vpop.f32.mrf.mxu0
        %v2126 = vadd.f32 %v1960, %v2125
        %2127 = vmatmul.bf16.gmra.mxu0 %v2038
        %v2128 = vpop.f32.mrf.mxu0
        %v2129 = vadd.f32 %v1965, %v2128
        %v2130 = vpop.f32.mrf.mxu0
        %v2131 = vadd.f32 %v1970, %v2130
        %2132 = vmatmul.bf16.gmra.mxu0 %v2039
        %v2133 = vpop.f32.mrf.mxu0
        %v2134 = vadd.f32 %v1975, %v2133
        %v2135 = vpop.f32.mrf.mxu0
        %v2136 = vadd.f32 %v1980, %v2135
        %2137 = vmatmul.bf16.gmra.mxu0 %v2040
        %v2138 = vpop.f32.mrf.mxu0
        %v2139 = vadd.f32 %v1985, %v2138
        %v2140 = vpop.f32.mrf.mxu0
        %v2141 = vadd.f32 %v1990, %v2140
        %2142 = vmatmul.bf16.gmra.mxu0 %v2041
        %v2143 = vpop.f32.mrf.mxu0
        %v2144 = vadd.f32 %v1995, %v2143
        %v2145 = vpop.f32.mrf.mxu0
        %v2146 = vadd.f32 %v2000, %v2145
        %2147 = vdwg.mxu0
        %2148 = vmatpush.bf16.msra.mxu0 %v1904
        %2149 = vmatpush.bf16.msra.mxu0 %v1900
        %2150 = vmatpush.bf16.msra.mxu0 %v1896
        %2151 = vmatpush.bf16.msra.mxu0 %v1892
        %2152 = vmatpush.bf16.msra.mxu0 %v1888
        %2153 = vmatpush.bf16.msra.mxu0 %v1884
        %2154 = vmatpush.bf16.msra.mxu0 %v1880
        %2155 = vmatpush.bf16.msra.mxu0 %v1876
        %2156 = vmatmul.bf16.gmra.mxu0 %v2034
        %v2157 = vpop.f32.mrf.mxu0
        %v2158 = vadd.f32 %v1925, %v2157
        %v2159 = vpop.f32.mrf.mxu0
        %v2160 = vadd.f32 %v1930, %v2159
        %2161 = vmatmul.bf16.gmra.mxu0 %v2035
        %v2162 = vpop.f32.mrf.mxu0
        %v2163 = vadd.f32 %v1935, %v2162
        %v2164 = vpop.f32.mrf.mxu0
        %v2165 = vadd.f32 %v1940, %v2164
        %2166 = vmatmul.bf16.gmra.mxu0 %v2036
        %v2167 = vpop.f32.mrf.mxu0
        %v2168 = vadd.f32 %v1945, %v2167
        %v2169 = vpop.f32.mrf.mxu0
        %v2170 = vadd.f32 %v1950, %v2169
        %2171 = vmatmul.bf16.gmra.mxu0 %v2037
        %v2172 = vpop.f32.mrf.mxu0
        %v2173 = vadd.f32 %v1955, %v2172
        %v2174 = vpop.f32.mrf.mxu0
        %v2175 = vadd.f32 %v1960, %v2174
        %2176 = vmatmul.bf16.gmra.mxu0 %v2038
        %v2177 = vpop.f32.mrf.mxu0
        %v2178 = vadd.f32 %v1965, %v2177
        %v2179 = vpop.f32.mrf.mxu0
        %v2180 = vadd.f32 %v1970, %v2179
        %2181 = vmatmul.bf16.gmra.mxu0 %v2039
        %v2182 = vpop.f32.mrf.mxu0
        %v2183 = vadd.f32 %v1975, %v2182
        %v2184 = vpop.f32.mrf.mxu0
        %v2185 = vadd.f32 %v1980, %v2184
        %2186 = vmatmul.bf16.gmra.mxu0 %v2040
        %v2187 = vpop.f32.mrf.mxu0
        %v2188 = vadd.f32 %v1985, %v2187
        %v2189 = vpop.f32.mrf.mxu0
        %v2190 = vadd.f32 %v1990, %v2189
        %2191 = vmatmul.bf16.gmra.mxu0 %v2041
        %v2192 = vpop.f32.mrf.mxu0
        %v2193 = vadd.f32 %v1995, %v2192
        %v2194 = vpop.f32.mrf.mxu0
        %v2195 = vadd.f32 %v2000, %v2194
        %2196 = vdwg.mxu0
        %2197 = vmatpush.bf16.msra.mxu0 %v1905
        %2198 = vmatpush.bf16.msra.mxu0 %v1901
        %2199 = vmatpush.bf16.msra.mxu0 %v1897
        %2200 = vmatpush.bf16.msra.mxu0 %v1893
        %2201 = vmatpush.bf16.msra.mxu0 %v1889
        %2202 = vmatpush.bf16.msra.mxu0 %v1885
        %2203 = vmatpush.bf16.msra.mxu0 %v1881
        %2204 = vmatpush.bf16.msra.mxu0 %v1877
        %2205 = vmatmul.bf16.gmra.mxu0 %v2034
        %v2206 = vpop.f32.mrf.mxu0
        %v2207 = vadd.f32 %v1925, %v2206
        %v2208 = vpop.f32.mrf.mxu0
        %v2209 = vadd.f32 %v1930, %v2208
        %2210 = vmatmul.bf16.gmra.mxu0 %v2035
        %v2211 = vpop.f32.mrf.mxu0
        %v2212 = vadd.f32 %v1935, %v2211
        %v2213 = vpop.f32.mrf.mxu0
        %v2214 = vadd.f32 %v1940, %v2213
        %2215 = vmatmul.bf16.gmra.mxu0 %v2036
        %v2216 = vpop.f32.mrf.mxu0
        %v2217 = vadd.f32 %v1945, %v2216
        %v2218 = vpop.f32.mrf.mxu0
        %v2219 = vadd.f32 %v1950, %v2218
        %2220 = vmatmul.bf16.gmra.mxu0 %v2037
        %v2221 = vpop.f32.mrf.mxu0
        %v2222 = vadd.f32 %v1955, %v2221
        %v2223 = vpop.f32.mrf.mxu0
        %v2224 = vadd.f32 %v1960, %v2223
        %2225 = vmatmul.bf16.gmra.mxu0 %v2038
        %v2226 = vpop.f32.mrf.mxu0
        %v2227 = vadd.f32 %v1965, %v2226
        %v2228 = vpop.f32.mrf.mxu0
        %v2229 = vadd.f32 %v1970, %v2228
        %2230 = vmatmul.bf16.gmra.mxu0 %v2039
        %v2231 = vpop.f32.mrf.mxu0
        %v2232 = vadd.f32 %v1975, %v2231
        %v2233 = vpop.f32.mrf.mxu0
        %v2234 = vadd.f32 %v1980, %v2233
        %2235 = vmatmul.bf16.gmra.mxu0 %v2040
        %v2236 = vpop.f32.mrf.mxu0
        %v2237 = vadd.f32 %v1985, %v2236
        %v2238 = vpop.f32.mrf.mxu0
        %v2239 = vadd.f32 %v1990, %v2238
        %2240 = vmatmul.bf16.gmra.mxu0 %v2041
        %v2241 = vpop.f32.mrf.mxu0
        %v2242 = vadd.f32 %v1995, %v2241
        %v2243 = vpop.f32.mrf.mxu0
        %v2244 = vadd.f32 %v2000, %v2243
        %2245 = vdwg.mxu0
        %v2246 = vmax.f32 %v2060, 0.0
        %v2247 = vmax.f32 %v2109, 0.0
        %v2248 = vmax.f32 %v2158, 0.0
        %v2249 = vmax.f32 %v2207, 0.0
        %v2250 = vmax.f32 %v2062, 0.0
        %v2251 = vmax.f32 %v2111, 0.0
        %v2252 = vmax.f32 %v2160, 0.0
        %v2253 = vmax.f32 %v2209, 0.0
        %v2254 = vmax.f32 %v2065, 0.0
        %v2255 = vmax.f32 %v2114, 0.0
        %v2256 = vmax.f32 %v2163, 0.0
        %v2257 = vmax.f32 %v2212, 0.0
        %v2258 = vmax.f32 %v2067, 0.0
        %v2259 = vmax.f32 %v2116, 0.0
        %v2260 = vmax.f32 %v2165, 0.0
        %v2261 = vmax.f32 %v2214, 0.0
        %v2262 = vmax.f32 %v2070, 0.0
        %v2263 = vmax.f32 %v2119, 0.0
        %v2264 = vmax.f32 %v2168, 0.0
        %v2265 = vmax.f32 %v2217, 0.0
        %v2266 = vmax.f32 %v2072, 0.0
        %v2267 = vmax.f32 %v2121, 0.0
        %v2268 = vmax.f32 %v2170, 0.0
        %v2269 = vmax.f32 %v2219, 0.0
        %v2270 = vmax.f32 %v2075, 0.0
        %v2271 = vmax.f32 %v2124, 0.0
        %v2272 = vmax.f32 %v2173, 0.0
        %v2273 = vmax.f32 %v2222, 0.0
        %v2274 = vmax.f32 %v2077, 0.0
        %v2275 = vmax.f32 %v2126, 0.0
        %v2276 = vmax.f32 %v2175, 0.0
        %v2277 = vmax.f32 %v2224, 0.0
        %v2278 = vmax.f32 %v2080, 0.0
        %v2279 = vmax.f32 %v2129, 0.0
        %v2280 = vmax.f32 %v2178, 0.0
        %v2281 = vmax.f32 %v2227, 0.0
        %v2282 = vmax.f32 %v2082, 0.0
        %v2283 = vmax.f32 %v2131, 0.0
        %v2284 = vmax.f32 %v2180, 0.0
        %v2285 = vmax.f32 %v2229, 0.0
        %v2286 = vmax.f32 %v2085, 0.0
        %v2287 = vmax.f32 %v2134, 0.0
        %v2288 = vmax.f32 %v2183, 0.0
        %v2289 = vmax.f32 %v2232, 0.0
        %v2290 = vmax.f32 %v2087, 0.0
        %v2291 = vmax.f32 %v2136, 0.0
        %v2292 = vmax.f32 %v2185, 0.0
        %v2293 = vmax.f32 %v2234, 0.0
        %v2294 = vmax.f32 %v2090, 0.0
        %v2295 = vmax.f32 %v2139, 0.0
        %v2296 = vmax.f32 %v2188, 0.0
        %v2297 = vmax.f32 %v2237, 0.0
        %v2298 = vmax.f32 %v2092, 0.0
        %v2299 = vmax.f32 %v2141, 0.0
        %v2300 = vmax.f32 %v2190, 0.0
        %v2301 = vmax.f32 %v2239, 0.0
        %v2302 = vmax.f32 %v2095, 0.0
        %v2303 = vmax.f32 %v2144, 0.0
        %v2304 = vmax.f32 %v2193, 0.0
        %v2305 = vmax.f32 %v2242, 0.0
        %v2306 = vmax.f32 %v2097, 0.0
        %v2307 = vmax.f32 %v2146, 0.0
        %v2308 = vmax.f32 %v2195, 0.0
        %v2309 = vmax.f32 %v2244, 0.0
        %v2310 = vld [vmem:[%s8] sm:$0xf]
        %v2311 = vld [vmem:[%s8 + $0x4] sm:$0xf]
        %v2312 = vld [vmem:[%s8 + $0x8] sm:$0xf]
        %v2313 = vld [vmem:[%s8 + $0xc] sm:$0xf]
        %v2314 = vld [vmem:[%s8 + $0x10] sm:$0xf]
        %v2315 = vld [vmem:[%s8 + $0x14] sm:$0xf]
        %v2316 = vld [vmem:[%s8 + $0x18] sm:$0xf]
        %v2317 = vld [vmem:[%s8 + $0x1c] sm:$0xf]
        %v2318 = vld [vmem:[%s8 + $0x20] sm:$0xf]
        %v2319 = vld [vmem:[%s8 + $0x24] sm:$0xf]
        %v2320 = vld [vmem:[%s8 + $0x28] sm:$0xf]
        %v2321 = vld [vmem:[%s8 + $0x2c] sm:$0xf]
        %v2322 = vld [vmem:[%s8 + $0x30] sm:$0xf]
        %v2323 = vld [vmem:[%s8 + $0x34] sm:$0xf]
        %v2324 = vld [vmem:[%s8 + $0x38] sm:$0xf]
        %v2325 = vld [vmem:[%s8 + $0x3c] sm:$0xf]
        %v2326 = vpack.c.bf16 %v2250, %v2246
        %v2327 = vpack.c.bf16 %v2251, %v2247
        %v2328 = vpack.c.bf16 %v2252, %v2248
        %v2329 = vpack.c.bf16 %v2253, %v2249
        %v2330 = vpack.c.bf16 %v2258, %v2254
        %v2331 = vpack.c.bf16 %v2259, %v2255
        %v2332 = vpack.c.bf16 %v2260, %v2256
        %v2333 = vpack.c.bf16 %v2261, %v2257
        %v2334 = vpack.c.bf16 %v2266, %v2262
        %v2335 = vpack.c.bf16 %v2267, %v2263
        %v2336 = vpack.c.bf16 %v2268, %v2264
        %v2337 = vpack.c.bf16 %v2269, %v2265
        %v2338 = vpack.c.bf16 %v2274, %v2270
        %v2339 = vpack.c.bf16 %v2275, %v2271
        %v2340 = vpack.c.bf16 %v2276, %v2272
        %v2341 = vpack.c.bf16 %v2277, %v2273
        %v2342 = vpack.c.bf16 %v2282, %v2278
        %v2343 = vpack.c.bf16 %v2283, %v2279
        %v2344 = vpack.c.bf16 %v2284, %v2280
        %v2345 = vpack.c.bf16 %v2285, %v2281
        %v2346 = vpack.c.bf16 %v2290, %v2286
        %v2347 = vpack.c.bf16 %v2291, %v2287
        %v2348 = vpack.c.bf16 %v2292, %v2288
        %v2349 = vpack.c.bf16 %v2293, %v2289
        %v2350 = vpack.c.bf16 %v2298, %v2294
        %v2351 = vpack.c.bf16 %v2299, %v2295
        %v2352 = vpack.c.bf16 %v2300, %v2296
        %v2353 = vpack.c.bf16 %v2301, %v2297
        %v2354 = vpack.c.bf16 %v2306, %v2302
        %v2355 = vpack.c.bf16 %v2307, %v2303
        %v2356 = vpack.c.bf16 %v2308, %v2304
        %v2357 = vpack.c.bf16 %v2309, %v2305
        %v2358 = vld [vmem:[%s9] sm:$0xff]
        %v2359 = vld [vmem:[%s9 + $0x8] sm:$0xff]
        %v2360 = vld [vmem:[%s9 + $0x10] sm:$0xff]
        %v2361 = vld [vmem:[%s9 + $0x18] sm:$0xff]
        %v2362 = vld [vmem:[%s9 + $0x20] sm:$0xff]
        %v2363 = vld [vmem:[%s9 + $0x28] sm:$0xff]
        %v2364 = vld [vmem:[%s9 + $0x30] sm:$0xff]
        %v2365 = vld [vmem:[%s9 + $0x38] sm:$0xff]
        %v2366 = vld [vmem:[%s9 + $0x40] sm:$0xff]
        %v2367 = vld [vmem:[%s9 + $0x48] sm:$0xff]
        %v2368 = vld [vmem:[%s9 + $0x50] sm:$0xff]
        %v2369 = vld [vmem:[%s9 + $0x58] sm:$0xff]
        %v2370 = vld [vmem:[%s9 + $0x60] sm:$0xff]
        %v2371 = vld [vmem:[%s9 + $0x68] sm:$0xff]
        %v2372 = vld [vmem:[%s9 + $0x70] sm:$0xff]
        %v2373 = vld [vmem:[%s9 + $0x78] sm:$0xff]
        %2375 = vset.pattern.permute.xlu0 0
        %2376 = vperm.xlu0 %2375, %v2358
        %v2377 = vpop.permute.xlu0 %2376
        %2380 = vset.pattern.permute.xlu0 0
        %2381 = vperm.xlu0 %2380, %v2359
        %v2382 = vpop.permute.xlu0 %2381
        %2385 = vset.pattern.permute.xlu0 0
        %2386 = vperm.xlu0 %2385, %v2360
        %v2387 = vpop.permute.xlu0 %2386
        %2390 = vset.pattern.permute.xlu0 0
        %2391 = vperm.xlu0 %2390, %v2361
        %v2392 = vpop.permute.xlu0 %2391
        %2395 = vset.pattern.permute.xlu0 0
        %2396 = vperm.xlu0 %2395, %v2362
        %v2397 = vpop.permute.xlu0 %2396
        %2400 = vset.pattern.permute.xlu0 0
        %2401 = vperm.xlu0 %2400, %v2363
        %v2402 = vpop.permute.xlu0 %2401
        %2405 = vset.pattern.permute.xlu0 0
        %2406 = vperm.xlu0 %2405, %v2364
        %v2407 = vpop.permute.xlu0 %2406
        %2410 = vset.pattern.permute.xlu0 0
        %2411 = vperm.xlu0 %2410, %v2365
        %v2412 = vpop.permute.xlu0 %2411
        %2415 = vset.pattern.permute.xlu0 0
        %2416 = vperm.xlu0 %2415, %v2366
        %v2417 = vpop.permute.xlu0 %2416
        %2420 = vset.pattern.permute.xlu0 0
        %2421 = vperm.xlu0 %2420, %v2367
        %v2422 = vpop.permute.xlu0 %2421
        %2425 = vset.pattern.permute.xlu0 0
        %2426 = vperm.xlu0 %2425, %v2368
        %v2427 = vpop.permute.xlu0 %2426
        %2430 = vset.pattern.permute.xlu0 0
        %2431 = vperm.xlu0 %2430, %v2369
        %v2432 = vpop.permute.xlu0 %2431
        %2435 = vset.pattern.permute.xlu0 0
        %2436 = vperm.xlu0 %2435, %v2370
        %v2437 = vpop.permute.xlu0 %2436
        %2440 = vset.pattern.permute.xlu0 0
        %2441 = vperm.xlu0 %2440, %v2371
        %v2442 = vpop.permute.xlu0 %2441
        %2445 = vset.pattern.permute.xlu0 0
        %2446 = vperm.xlu0 %2445, %v2372
        %v2447 = vpop.permute.xlu0 %2446
        %2450 = vset.pattern.permute.xlu0 0
        %2451 = vperm.xlu0 %2450, %v2373
        %v2452 = vpop.permute.xlu0 %2451
        %v2470 = vunpack.c.l.b16 %v2310
        %v2471 = vunpack.c.l.b16 %v2311
        %v2472 = vunpack.c.l.b16 %v2312
        %v2473 = vunpack.c.l.b16 %v2313
        %v2474 = vunpack.c.l.b16 %v2314
        %v2475 = vunpack.c.l.b16 %v2315
        %v2476 = vunpack.c.l.b16 %v2316
        %v2477 = vunpack.c.l.b16 %v2317
        %v2478 = vunpack.c.l.b16 %v2318
        %v2479 = vunpack.c.l.b16 %v2319
        %v2480 = vunpack.c.l.b16 %v2320
        %v2481 = vunpack.c.l.b16 %v2321
        %v2482 = vunpack.c.l.b16 %v2322
        %v2483 = vunpack.c.l.b16 %v2323
        %v2484 = vunpack.c.l.b16 %v2324
        %v2485 = vunpack.c.l.b16 %v2325
        %v2486 = vpack.c.b16 %v2471, %v2470
        %v2487 = vpack.c.b16 %v2473, %v2472
        %v2488 = vpack.c.b16 %v2475, %v2474
        %v2489 = vpack.c.b16 %v2477, %v2476
        %v2490 = vpack.c.b16 %v2479, %v2478
        %v2491 = vpack.c.b16 %v2481, %v2480
        %v2492 = vpack.c.b16 %v2483, %v2482
        %v2493 = vpack.c.b16 %v2485, %v2484
        %2502 = vmatpush.bf16.msra.mxu0 %v2354
        %2503 = vmatpush.bf16.msra.mxu0 %v2350
        %2504 = vmatpush.bf16.msra.mxu0 %v2346
        %2505 = vmatpush.bf16.msra.mxu0 %v2342
        %2506 = vmatpush.bf16.msra.mxu0 %v2338
        %2507 = vmatpush.bf16.msra.mxu0 %v2334
        %2508 = vmatpush.bf16.msra.mxu0 %v2330
        %2509 = vmatpush.bf16.msra.mxu0 %v2326
        %2510 = vmatmul.bf16.gmra.mxu0 %v2486
        %v2511 = vpop.f32.mrf.mxu0
        %v2512 = vadd.f32 %v2377, %v2511
        %v2513 = vpop.f32.mrf.mxu0
        %v2514 = vadd.f32 %v2382, %v2513
        %2515 = vmatmul.bf16.gmra.mxu0 %v2487
        %v2516 = vpop.f32.mrf.mxu0
        %v2517 = vadd.f32 %v2387, %v2516
        %v2518 = vpop.f32.mrf.mxu0
        %v2519 = vadd.f32 %v2392, %v2518
        %2520 = vmatmul.bf16.gmra.mxu0 %v2488
        %v2521 = vpop.f32.mrf.mxu0
        %v2522 = vadd.f32 %v2397, %v2521
        %v2523 = vpop.f32.mrf.mxu0
        %v2524 = vadd.f32 %v2402, %v2523
        %2525 = vmatmul.bf16.gmra.mxu0 %v2489
        %v2526 = vpop.f32.mrf.mxu0
        %v2527 = vadd.f32 %v2407, %v2526
        %v2528 = vpop.f32.mrf.mxu0
        %v2529 = vadd.f32 %v2412, %v2528
        %2530 = vmatmul.bf16.gmra.mxu0 %v2490
        %v2531 = vpop.f32.mrf.mxu0
        %v2532 = vadd.f32 %v2417, %v2531
        %v2533 = vpop.f32.mrf.mxu0
        %v2534 = vadd.f32 %v2422, %v2533
        %2535 = vmatmul.bf16.gmra.mxu0 %v2491
        %v2536 = vpop.f32.mrf.mxu0
        %v2537 = vadd.f32 %v2427, %v2536
        %v2538 = vpop.f32.mrf.mxu0
        %v2539 = vadd.f32 %v2432, %v2538
        %2540 = vmatmul.bf16.gmra.mxu0 %v2492
        %v2541 = vpop.f32.mrf.mxu0
        %v2542 = vadd.f32 %v2437, %v2541
        %v2543 = vpop.f32.mrf.mxu0
        %v2544 = vadd.f32 %v2442, %v2543
        %2545 = vmatmul.bf16.gmra.mxu0 %v2493
        %v2546 = vpop.f32.mrf.mxu0
        %v2547 = vadd.f32 %v2447, %v2546
        %v2548 = vpop.f32.mrf.mxu0
        %v2549 = vadd.f32 %v2452, %v2548
        %2550 = vdwg.mxu0
        %2551 = vmatpush.bf16.msra.mxu0 %v2355
        %2552 = vmatpush.bf16.msra.mxu0 %v2351
        %2553 = vmatpush.bf16.msra.mxu0 %v2347
        %2554 = vmatpush.bf16.msra.mxu0 %v2343
        %2555 = vmatpush.bf16.msra.mxu0 %v2339
        %2556 = vmatpush.bf16.msra.mxu0 %v2335
        %2557 = vmatpush.bf16.msra.mxu0 %v2331
        %2558 = vmatpush.bf16.msra.mxu0 %v2327
        %2559 = vmatmul.bf16.gmra.mxu0 %v2486
        %v2560 = vpop.f32.mrf.mxu0
        %v2561 = vadd.f32 %v2377, %v2560
        %v2562 = vpop.f32.mrf.mxu0
        %v2563 = vadd.f32 %v2382, %v2562
        %2564 = vmatmul.bf16.gmra.mxu0 %v2487
        %v2565 = vpop.f32.mrf.mxu0
        %v2566 = vadd.f32 %v2387, %v2565
        %v2567 = vpop.f32.mrf.mxu0
        %v2568 = vadd.f32 %v2392, %v2567
        %2569 = vmatmul.bf16.gmra.mxu0 %v2488
        %v2570 = vpop.f32.mrf.mxu0
        %v2571 = vadd.f32 %v2397, %v2570
        %v2572 = vpop.f32.mrf.mxu0
        %v2573 = vadd.f32 %v2402, %v2572
        %2574 = vmatmul.bf16.gmra.mxu0 %v2489
        %v2575 = vpop.f32.mrf.mxu0
        %v2576 = vadd.f32 %v2407, %v2575
        %v2577 = vpop.f32.mrf.mxu0
        %v2578 = vadd.f32 %v2412, %v2577
        %2579 = vmatmul.bf16.gmra.mxu0 %v2490
        %v2580 = vpop.f32.mrf.mxu0
        %v2581 = vadd.f32 %v2417, %v2580
        %v2582 = vpop.f32.mrf.mxu0
        %v2583 = vadd.f32 %v2422, %v2582
        %2584 = vmatmul.bf16.gmra.mxu0 %v2491
        %v2585 = vpop.f32.mrf.mxu0
        %v2586 = vadd.f32 %v2427, %v2585
        %v2587 = vpop.f32.mrf.mxu0
        %v2588 = vadd.f32 %v2432, %v2587
        %2589 = vmatmul.bf16.gmra.mxu0 %v2492
        %v2590 = vpop.f32.mrf.mxu0
        %v2591 = vadd.f32 %v2437, %v2590
        %v2592 = vpop.f32.mrf.mxu0
        %v2593 = vadd.f32 %v2442, %v2592
        %2594 = vmatmul.bf16.gmra.mxu0 %v2493
        %v2595 = vpop.f32.mrf.mxu0
        %v2596 = vadd.f32 %v2447, %v2595
        %v2597 = vpop.f32.mrf.mxu0
        %v2598 = vadd.f32 %v2452, %v2597
        %2599 = vdwg.mxu0
        %2600 = vmatpush.bf16.msra.mxu0 %v2356
        %2601 = vmatpush.bf16.msra.mxu0 %v2352
        %2602 = vmatpush.bf16.msra.mxu0 %v2348
        %2603 = vmatpush.bf16.msra.mxu0 %v2344
        %2604 = vmatpush.bf16.msra.mxu0 %v2340
        %2605 = vmatpush.bf16.msra.mxu0 %v2336
        %2606 = vmatpush.bf16.msra.mxu0 %v2332
        %2607 = vmatpush.bf16.msra.mxu0 %v2328
        %2608 = vmatmul.bf16.gmra.mxu0 %v2486
        %v2609 = vpop.f32.mrf.mxu0
        %v2610 = vadd.f32 %v2377, %v2609
        %v2611 = vpop.f32.mrf.mxu0
        %v2612 = vadd.f32 %v2382, %v2611
        %2613 = vmatmul.bf16.gmra.mxu0 %v2487
        %v2614 = vpop.f32.mrf.mxu0
        %v2615 = vadd.f32 %v2387, %v2614
        %v2616 = vpop.f32.mrf.mxu0
        %v2617 = vadd.f32 %v2392, %v2616
        %2618 = vmatmul.bf16.gmra.mxu0 %v2488
        %v2619 = vpop.f32.mrf.mxu0
        %v2620 = vadd.f32 %v2397, %v2619
        %v2621 = vpop.f32.mrf.mxu0
        %v2622 = vadd.f32 %v2402, %v2621
        %2623 = vmatmul.bf16.gmra.mxu0 %v2489
        %v2624 = vpop.f32.mrf.mxu0
        %v2625 = vadd.f32 %v2407, %v2624
        %v2626 = vpop.f32.mrf.mxu0
        %v2627 = vadd.f32 %v2412, %v2626
        %2628 = vmatmul.bf16.gmra.mxu0 %v2490
        %v2629 = vpop.f32.mrf.mxu0
        %v2630 = vadd.f32 %v2417, %v2629
        %v2631 = vpop.f32.mrf.mxu0
        %v2632 = vadd.f32 %v2422, %v2631
        %2633 = vmatmul.bf16.gmra.mxu0 %v2491
        %v2634 = vpop.f32.mrf.mxu0
        %v2635 = vadd.f32 %v2427, %v2634
        %v2636 = vpop.f32.mrf.mxu0
        %v2637 = vadd.f32 %v2432, %v2636
        %2638 = vmatmul.bf16.gmra.mxu0 %v2492
        %v2639 = vpop.f32.mrf.mxu0
        %v2640 = vadd.f32 %v2437, %v2639
        %v2641 = vpop.f32.mrf.mxu0
        %v2642 = vadd.f32 %v2442, %v2641
        %2643 = vmatmul.bf16.gmra.mxu0 %v2493
        %v2644 = vpop.f32.mrf.mxu0
        %v2645 = vadd.f32 %v2447, %v2644
        %v2646 = vpop.f32.mrf.mxu0
        %v2647 = vadd.f32 %v2452, %v2646
        %2648 = vdwg.mxu0
        %2649 = vmatpush.bf16.msra.mxu0 %v2357
        %2650 = vmatpush.bf16.msra.mxu0 %v2353
        %2651 = vmatpush.bf16.msra.mxu0 %v2349
        %2652 = vmatpush.bf16.msra.mxu0 %v2345
        %2653 = vmatpush.bf16.msra.mxu0 %v2341
        %2654 = vmatpush.bf16.msra.mxu0 %v2337
        %2655 = vmatpush.bf16.msra.mxu0 %v2333
        %2656 = vmatpush.bf16.msra.mxu0 %v2329
        %2657 = vmatmul.bf16.gmra.mxu0 %v2486
        %v2658 = vpop.f32.mrf.mxu0
        %v2659 = vadd.f32 %v2377, %v2658
        %v2660 = vpop.f32.mrf.mxu0
        %v2661 = vadd.f32 %v2382, %v2660
        %2662 = vmatmul.bf16.gmra.mxu0 %v2487
        %v2663 = vpop.f32.mrf.mxu0
        %v2664 = vadd.f32 %v2387, %v2663
        %v2665 = vpop.f32.mrf.mxu0
        %v2666 = vadd.f32 %v2392, %v2665
        %2667 = vmatmul.bf16.gmra.mxu0 %v2488
        %v2668 = vpop.f32.mrf.mxu0
        %v2669 = vadd.f32 %v2397, %v2668
        %v2670 = vpop.f32.mrf.mxu0
        %v2671 = vadd.f32 %v2402, %v2670
        %2672 = vmatmul.bf16.gmra.mxu0 %v2489
        %v2673 = vpop.f32.mrf.mxu0
        %v2674 = vadd.f32 %v2407, %v2673
        %v2675 = vpop.f32.mrf.mxu0
        %v2676 = vadd.f32 %v2412, %v2675
        %2677 = vmatmul.bf16.gmra.mxu0 %v2490
        %v2678 = vpop.f32.mrf.mxu0
        %v2679 = vadd.f32 %v2417, %v2678
        %v2680 = vpop.f32.mrf.mxu0
        %v2681 = vadd.f32 %v2422, %v2680
        %2682 = vmatmul.bf16.gmra.mxu0 %v2491
        %v2683 = vpop.f32.mrf.mxu0
        %v2684 = vadd.f32 %v2427, %v2683
        %v2685 = vpop.f32.mrf.mxu0
        %v2686 = vadd.f32 %v2432, %v2685
        %2687 = vmatmul.bf16.gmra.mxu0 %v2492
        %v2688 = vpop.f32.mrf.mxu0
        %v2689 = vadd.f32 %v2437, %v2688
        %v2690 = vpop.f32.mrf.mxu0
        %v2691 = vadd.f32 %v2442, %v2690
        %2692 = vmatmul.bf16.gmra.mxu0 %v2493
        %v2693 = vpop.f32.mrf.mxu0
        %v2694 = vadd.f32 %v2447, %v2693
        %v2695 = vpop.f32.mrf.mxu0
        %v2696 = vadd.f32 %v2452, %v2695
        %2697 = vdwg.mxu0
        %v2698 = vmax.f32 %v2512, 0.0
        %v2699 = vmax.f32 %v2561, 0.0
        %v2700 = vmax.f32 %v2610, 0.0
        %v2701 = vmax.f32 %v2659, 0.0
        %v2702 = vmax.f32 %v2514, 0.0
        %v2703 = vmax.f32 %v2563, 0.0
        %v2704 = vmax.f32 %v2612, 0.0
        %v2705 = vmax.f32 %v2661, 0.0
        %v2706 = vmax.f32 %v2517, 0.0
        %v2707 = vmax.f32 %v2566, 0.0
        %v2708 = vmax.f32 %v2615, 0.0
        %v2709 = vmax.f32 %v2664, 0.0
        %v2710 = vmax.f32 %v2519, 0.0
        %v2711 = vmax.f32 %v2568, 0.0
        %v2712 = vmax.f32 %v2617, 0.0
        %v2713 = vmax.f32 %v2666, 0.0
        %v2714 = vmax.f32 %v2522, 0.0
        %v2715 = vmax.f32 %v2571, 0.0
        %v2716 = vmax.f32 %v2620, 0.0
        %v2717 = vmax.f32 %v2669, 0.0
        %v2718 = vmax.f32 %v2524, 0.0
        %v2719 = vmax.f32 %v2573, 0.0
        %v2720 = vmax.f32 %v2622, 0.0
        %v2721 = vmax.f32 %v2671, 0.0
        %v2722 = vmax.f32 %v2527, 0.0
        %v2723 = vmax.f32 %v2576, 0.0
        %v2724 = vmax.f32 %v2625, 0.0
        %v2725 = vmax.f32 %v2674, 0.0
        %v2726 = vmax.f32 %v2529, 0.0
        %v2727 = vmax.f32 %v2578, 0.0
        %v2728 = vmax.f32 %v2627, 0.0
        %v2729 = vmax.f32 %v2676, 0.0
        %v2730 = vmax.f32 %v2532, 0.0
        %v2731 = vmax.f32 %v2581, 0.0
        %v2732 = vmax.f32 %v2630, 0.0
        %v2733 = vmax.f32 %v2679, 0.0
        %v2734 = vmax.f32 %v2534, 0.0
        %v2735 = vmax.f32 %v2583, 0.0
        %v2736 = vmax.f32 %v2632, 0.0
        %v2737 = vmax.f32 %v2681, 0.0
        %v2738 = vmax.f32 %v2537, 0.0
        %v2739 = vmax.f32 %v2586, 0.0
        %v2740 = vmax.f32 %v2635, 0.0
        %v2741 = vmax.f32 %v2684, 0.0
        %v2742 = vmax.f32 %v2539, 0.0
        %v2743 = vmax.f32 %v2588, 0.0
        %v2744 = vmax.f32 %v2637, 0.0
        %v2745 = vmax.f32 %v2686, 0.0
        %v2746 = vmax.f32 %v2542, 0.0
        %v2747 = vmax.f32 %v2591, 0.0
        %v2748 = vmax.f32 %v2640, 0.0
        %v2749 = vmax.f32 %v2689, 0.0
        %v2750 = vmax.f32 %v2544, 0.0
        %v2751 = vmax.f32 %v2593, 0.0
        %v2752 = vmax.f32 %v2642, 0.0
        %v2753 = vmax.f32 %v2691, 0.0
        %v2754 = vmax.f32 %v2547, 0.0
        %v2755 = vmax.f32 %v2596, 0.0
        %v2756 = vmax.f32 %v2645, 0.0
        %v2757 = vmax.f32 %v2694, 0.0
        %v2758 = vmax.f32 %v2549, 0.0
        %v2759 = vmax.f32 %v2598, 0.0
        %v2760 = vmax.f32 %v2647, 0.0
        %v2761 = vmax.f32 %v2696, 0.0
        %v2762 = vld [vmem:[%s10] sm:$0xf]
        %v2763 = vld [vmem:[%s10 + $0x4] sm:$0xf]
        %v2764 = vld [vmem:[%s10 + $0x8] sm:$0xf]
        %v2765 = vld [vmem:[%s10 + $0xc] sm:$0xf]
        %v2766 = vld [vmem:[%s10 + $0x10] sm:$0xf]
        %v2767 = vld [vmem:[%s10 + $0x14] sm:$0xf]
        %v2768 = vld [vmem:[%s10 + $0x18] sm:$0xf]
        %v2769 = vld [vmem:[%s10 + $0x1c] sm:$0xf]
        %v2770 = vld [vmem:[%s10 + $0x20] sm:$0xf]
        %v2771 = vld [vmem:[%s10 + $0x24] sm:$0xf]
        %v2772 = vld [vmem:[%s10 + $0x28] sm:$0xf]
        %v2773 = vld [vmem:[%s10 + $0x2c] sm:$0xf]
        %v2774 = vld [vmem:[%s10 + $0x30] sm:$0xf]
        %v2775 = vld [vmem:[%s10 + $0x34] sm:$0xf]
        %v2776 = vld [vmem:[%s10 + $0x38] sm:$0xf]
        %v2777 = vld [vmem:[%s10 + $0x3c] sm:$0xf]
        %v2778 = vpack.c.bf16 %v2702, %v2698
        %v2779 = vpack.c.bf16 %v2703, %v2699
        %v2780 = vpack.c.bf16 %v2704, %v2700
        %v2781 = vpack.c.bf16 %v2705, %v2701
        %v2782 = vpack.c.bf16 %v2710, %v2706
        %v2783 = vpack.c.bf16 %v2711, %v2707
        %v2784 = vpack.c.bf16 %v2712, %v2708
        %v2785 = vpack.c.bf16 %v2713, %v2709
        %v2786 = vpack.c.bf16 %v2718, %v2714
        %v2787 = vpack.c.bf16 %v2719, %v2715
        %v2788 = vpack.c.bf16 %v2720, %v2716
        %v2789 = vpack.c.bf16 %v2721, %v2717
        %v2790 = vpack.c.bf16 %v2726, %v2722
        %v2791 = vpack.c.bf16 %v2727, %v2723
        %v2792 = vpack.c.bf16 %v2728, %v2724
        %v2793 = vpack.c.bf16 %v2729, %v2725
        %v2794 = vpack.c.bf16 %v2734, %v2730
        %v2795 = vpack.c.bf16 %v2735, %v2731
        %v2796 = vpack.c.bf16 %v2736, %v2732
        %v2797 = vpack.c.bf16 %v2737, %v2733
        %v2798 = vpack.c.bf16 %v2742, %v2738
        %v2799 = vpack.c.bf16 %v2743, %v2739
        %v2800 = vpack.c.bf16 %v2744, %v2740
        %v2801 = vpack.c.bf16 %v2745, %v2741
        %v2802 = vpack.c.bf16 %v2750, %v2746
        %v2803 = vpack.c.bf16 %v2751, %v2747
        %v2804 = vpack.c.bf16 %v2752, %v2748
        %v2805 = vpack.c.bf16 %v2753, %v2749
        %v2806 = vpack.c.bf16 %v2758, %v2754
        %v2807 = vpack.c.bf16 %v2759, %v2755
        %v2808 = vpack.c.bf16 %v2760, %v2756
        %v2809 = vpack.c.bf16 %v2761, %v2757
        %v2810 = vld [vmem:[%s11] sm:$0xf]
        %v2811 = vld [vmem:[%s11 + $0x4] sm:$0xf]
        %v2812 = vld [vmem:[%s11 + $0x8] sm:$0xf]
        %v2813 = vld [vmem:[%s11 + $0xc] sm:$0xf]
        %v2814 = vld [vmem:[%s11 + $0x10] sm:$0xf]
        %v2815 = vld [vmem:[%s11 + $0x14] sm:$0xf]
        %v2816 = vld [vmem:[%s11 + $0x18] sm:$0xf]
        %v2817 = vld [vmem:[%s11 + $0x1c] sm:$0xf]
        %v2818 = vld [vmem:[%s11 + $0x20] sm:$0xf]
        %v2819 = vld [vmem:[%s11 + $0x24] sm:$0xf]
        %v2820 = vld [vmem:[%s11 + $0x28] sm:$0xf]
        %v2821 = vld [vmem:[%s11 + $0x2c] sm:$0xf]
        %v2822 = vld [vmem:[%s11 + $0x30] sm:$0xf]
        %v2823 = vld [vmem:[%s11 + $0x34] sm:$0xf]
        %v2824 = vld [vmem:[%s11 + $0x38] sm:$0xf]
        %v2825 = vld [vmem:[%s11 + $0x3c] sm:$0xf]
        %v2842 = vunpack.c.l.b16 %v2810
        %v2843 = vunpack.c.l.b16 %v2811
        %v2844 = vunpack.c.l.b16 %v2812
        %v2845 = vunpack.c.l.b16 %v2813
        %v2846 = vunpack.c.l.b16 %v2814
        %v2847 = vunpack.c.l.b16 %v2815
        %v2848 = vunpack.c.l.b16 %v2816
        %v2849 = vunpack.c.l.b16 %v2817
        %v2850 = vunpack.c.l.b16 %v2818
        %v2851 = vunpack.c.l.b16 %v2819
        %v2852 = vunpack.c.l.b16 %v2820
        %v2853 = vunpack.c.l.b16 %v2821
        %v2854 = vunpack.c.l.b16 %v2822
        %v2855 = vunpack.c.l.b16 %v2823
        %v2856 = vunpack.c.l.b16 %v2824
        %v2857 = vunpack.c.l.b16 %v2825
        %v2858 = vpack.c.b16 %v2843, %v2842
        %v2859 = vpack.c.b16 %v2845, %v2844
        %v2860 = vpack.c.b16 %v2847, %v2846
        %v2861 = vpack.c.b16 %v2849, %v2848
        %v2862 = vpack.c.b16 %v2851, %v2850
        %v2863 = vpack.c.b16 %v2853, %v2852
        %v2864 = vpack.c.b16 %v2855, %v2854
        %v2865 = vpack.c.b16 %v2857, %v2856
        %v2867 = vsel %vm1106, %v2858, 0
        %v2870 = vsel %vm1106, %v2859, 0
        %v2873 = vsel %vm1106, %v2860, 0
        %v2876 = vsel %vm1106, %v2861, 0
        %v2879 = vsel %vm1106, %v2862, 0
        %v2882 = vsel %vm1106, %v2863, 0
        %v2885 = vsel %vm1106, %v2864, 0
        %v2888 = vsel %vm1106, %v2865, 0
        %2890 = vmatpush.bf16.msra.mxu0 0
        %2891 = vmatpush.bf16.msra.mxu0 0
        %2892 = vmatpush.bf16.msra.mxu0 0
        %2893 = vmatpush.bf16.msra.mxu0 0
        %2894 = vmatpush.bf16.msra.mxu0 0
        %2895 = vmatpush.bf16.msra.mxu0 %v1135
        %2896 = vmatpush.bf16.msra.mxu0 %v934
        %2897 = vmatpush.bf16.msra.mxu0 %v930
        %2898 = vmatmul.bf16.gmra.mxu0 %v2867
        %v2899 = vpop.f32.mrf.mxu0
        %v2900 = vadd.f32 0.0, %v2899
        %v2901 = vpop.f32.mrf.mxu0
        %v2902 = vadd.f32 0.0, %v2901
        %2903 = vmatmul.bf16.gmra.mxu0 %v2870
        %v2904 = vpop.f32.mrf.mxu0
        %v2905 = vadd.f32 0.0, %v2904
        %v2906 = vpop.f32.mrf.mxu0
        %v2907 = vadd.f32 0.0, %v2906
        %2908 = vmatmul.bf16.gmra.mxu0 %v2873
        %v2909 = vpop.f32.mrf.mxu0
        %v2910 = vadd.f32 0.0, %v2909
        %v2911 = vpop.f32.mrf.mxu0
        %v2912 = vadd.f32 0.0, %v2911
        %2913 = vmatmul.bf16.gmra.mxu0 %v2876
        %v2914 = vpop.f32.mrf.mxu0
        %v2915 = vadd.f32 0.0, %v2914
        %v2916 = vpop.f32.mrf.mxu0
        %v2917 = vadd.f32 0.0, %v2916
        %2918 = vmatmul.bf16.gmra.mxu0 %v2879
        %v2919 = vpop.f32.mrf.mxu0
        %v2920 = vadd.f32 0.0, %v2919
        %v2921 = vpop.f32.mrf.mxu0
        %v2922 = vadd.f32 0.0, %v2921
        %2923 = vmatmul.bf16.gmra.mxu0 %v2882
        %v2924 = vpop.f32.mrf.mxu0
        %v2925 = vadd.f32 0.0, %v2924
        %v2926 = vpop.f32.mrf.mxu0
        %v2927 = vadd.f32 0.0, %v2926
        %2928 = vmatmul.bf16.gmra.mxu0 %v2885
        %v2929 = vpop.f32.mrf.mxu0
        %v2930 = vadd.f32 0.0, %v2929
        %v2931 = vpop.f32.mrf.mxu0
        %v2932 = vadd.f32 0.0, %v2931
        %2933 = vmatmul.bf16.gmra.mxu0 %v2888
        %v2934 = vpop.f32.mrf.mxu0
        %v2935 = vadd.f32 0.0, %v2934
        %v2936 = vpop.f32.mrf.mxu0
        %v2937 = vadd.f32 0.0, %v2936
        %2938 = vdwg.mxu0
        %2939 = vmatpush.bf16.msra.mxu0 0
        %2940 = vmatpush.bf16.msra.mxu0 0
        %2941 = vmatpush.bf16.msra.mxu0 0
        %2942 = vmatpush.bf16.msra.mxu0 0
        %2943 = vmatpush.bf16.msra.mxu0 0
        %2944 = vmatpush.bf16.msra.mxu0 %v1138
        %2945 = vmatpush.bf16.msra.mxu0 %v935
        %2946 = vmatpush.bf16.msra.mxu0 %v931
        %2947 = vmatmul.bf16.gmra.mxu0 %v2867
        %v2948 = vpop.f32.mrf.mxu0
        %v2949 = vadd.f32 0.0, %v2948
        %v2950 = vpop.f32.mrf.mxu0
        %v2951 = vadd.f32 0.0, %v2950
        %2952 = vmatmul.bf16.gmra.mxu0 %v2870
        %v2953 = vpop.f32.mrf.mxu0
        %v2954 = vadd.f32 0.0, %v2953
        %v2955 = vpop.f32.mrf.mxu0
        %v2956 = vadd.f32 0.0, %v2955
        %2957 = vmatmul.bf16.gmra.mxu0 %v2873
        %v2958 = vpop.f32.mrf.mxu0
        %v2959 = vadd.f32 0.0, %v2958
        %v2960 = vpop.f32.mrf.mxu0
        %v2961 = vadd.f32 0.0, %v2960
        %2962 = vmatmul.bf16.gmra.mxu0 %v2876
        %v2963 = vpop.f32.mrf.mxu0
        %v2964 = vadd.f32 0.0, %v2963
        %v2965 = vpop.f32.mrf.mxu0
        %v2966 = vadd.f32 0.0, %v2965
        %2967 = vmatmul.bf16.gmra.mxu0 %v2879
        %v2968 = vpop.f32.mrf.mxu0
        %v2969 = vadd.f32 0.0, %v2968
        %v2970 = vpop.f32.mrf.mxu0
        %v2971 = vadd.f32 0.0, %v2970
        %2972 = vmatmul.bf16.gmra.mxu0 %v2882
        %v2973 = vpop.f32.mrf.mxu0
        %v2974 = vadd.f32 0.0, %v2973
        %v2975 = vpop.f32.mrf.mxu0
        %v2976 = vadd.f32 0.0, %v2975
        %2977 = vmatmul.bf16.gmra.mxu0 %v2885
        %v2978 = vpop.f32.mrf.mxu0
        %v2979 = vadd.f32 0.0, %v2978
        %v2980 = vpop.f32.mrf.mxu0
        %v2981 = vadd.f32 0.0, %v2980
        %2982 = vmatmul.bf16.gmra.mxu0 %v2888
        %v2983 = vpop.f32.mrf.mxu0
        %v2984 = vadd.f32 0.0, %v2983
        %v2985 = vpop.f32.mrf.mxu0
        %v2986 = vadd.f32 0.0, %v2985
        %2987 = vdwg.mxu0
        %2988 = vmatpush.bf16.msra.mxu0 0
        %2989 = vmatpush.bf16.msra.mxu0 0
        %2990 = vmatpush.bf16.msra.mxu0 0
        %2991 = vmatpush.bf16.msra.mxu0 0
        %2992 = vmatpush.bf16.msra.mxu0 0
        %2993 = vmatpush.bf16.msra.mxu0 %v1141
        %2994 = vmatpush.bf16.msra.mxu0 %v936
        %2995 = vmatpush.bf16.msra.mxu0 %v932
        %2996 = vmatmul.bf16.gmra.mxu0 %v2867
        %v2997 = vpop.f32.mrf.mxu0
        %v2998 = vadd.f32 0.0, %v2997
        %v2999 = vpop.f32.mrf.mxu0
        %v3000 = vadd.f32 0.0, %v2999
        %3001 = vmatmul.bf16.gmra.mxu0 %v2870
        %v3002 = vpop.f32.mrf.mxu0
        %v3003 = vadd.f32 0.0, %v3002
        %v3004 = vpop.f32.mrf.mxu0
        %v3005 = vadd.f32 0.0, %v3004
        %3006 = vmatmul.bf16.gmra.mxu0 %v2873
        %v3007 = vpop.f32.mrf.mxu0
        %v3008 = vadd.f32 0.0, %v3007
        %v3009 = vpop.f32.mrf.mxu0
        %v3010 = vadd.f32 0.0, %v3009
        %3011 = vmatmul.bf16.gmra.mxu0 %v2876
        %v3012 = vpop.f32.mrf.mxu0
        %v3013 = vadd.f32 0.0, %v3012
        %v3014 = vpop.f32.mrf.mxu0
        %v3015 = vadd.f32 0.0, %v3014
        %3016 = vmatmul.bf16.gmra.mxu0 %v2879
        %v3017 = vpop.f32.mrf.mxu0
        %v3018 = vadd.f32 0.0, %v3017
        %v3019 = vpop.f32.mrf.mxu0
        %v3020 = vadd.f32 0.0, %v3019
        %3021 = vmatmul.bf16.gmra.mxu0 %v2882
        %v3022 = vpop.f32.mrf.mxu0
        %v3023 = vadd.f32 0.0, %v3022
        %v3024 = vpop.f32.mrf.mxu0
        %v3025 = vadd.f32 0.0, %v3024
        %3026 = vmatmul.bf16.gmra.mxu0 %v2885
        %v3027 = vpop.f32.mrf.mxu0
        %v3028 = vadd.f32 0.0, %v3027
        %v3029 = vpop.f32.mrf.mxu0
        %v3030 = vadd.f32 0.0, %v3029
        %3031 = vmatmul.bf16.gmra.mxu0 %v2888
        %v3032 = vpop.f32.mrf.mxu0
        %v3033 = vadd.f32 0.0, %v3032
        %v3034 = vpop.f32.mrf.mxu0
        %v3035 = vadd.f32 0.0, %v3034
        %3036 = vdwg.mxu0
        %3037 = vmatpush.bf16.msra.mxu0 0
        %3038 = vmatpush.bf16.msra.mxu0 0
        %3039 = vmatpush.bf16.msra.mxu0 0
        %3040 = vmatpush.bf16.msra.mxu0 0
        %3041 = vmatpush.bf16.msra.mxu0 0
        %3042 = vmatpush.bf16.msra.mxu0 %v1144
        %3043 = vmatpush.bf16.msra.mxu0 %v937
        %3044 = vmatpush.bf16.msra.mxu0 %v933
        %3045 = vmatmul.bf16.gmra.mxu0 %v2867
        %v3046 = vpop.f32.mrf.mxu0
        %v3047 = vadd.f32 0.0, %v3046
        %v3048 = vpop.f32.mrf.mxu0
        %v3049 = vadd.f32 0.0, %v3048
        %3050 = vmatmul.bf16.gmra.mxu0 %v2870
        %v3051 = vpop.f32.mrf.mxu0
        %v3052 = vadd.f32 0.0, %v3051
        %v3053 = vpop.f32.mrf.mxu0
        %v3054 = vadd.f32 0.0, %v3053
        %3055 = vmatmul.bf16.gmra.mxu0 %v2873
        %v3056 = vpop.f32.mrf.mxu0
        %v3057 = vadd.f32 0.0, %v3056
        %v3058 = vpop.f32.mrf.mxu0
        %v3059 = vadd.f32 0.0, %v3058
        %3060 = vmatmul.bf16.gmra.mxu0 %v2876
        %v3061 = vpop.f32.mrf.mxu0
        %v3062 = vadd.f32 0.0, %v3061
        %v3063 = vpop.f32.mrf.mxu0
        %v3064 = vadd.f32 0.0, %v3063
        %3065 = vmatmul.bf16.gmra.mxu0 %v2879
        %v3066 = vpop.f32.mrf.mxu0
        %v3067 = vadd.f32 0.0, %v3066
        %v3068 = vpop.f32.mrf.mxu0
        %v3069 = vadd.f32 0.0, %v3068
        %3070 = vmatmul.bf16.gmra.mxu0 %v2882
        %v3071 = vpop.f32.mrf.mxu0
        %v3072 = vadd.f32 0.0, %v3071
        %v3073 = vpop.f32.mrf.mxu0
        %v3074 = vadd.f32 0.0, %v3073
        %3075 = vmatmul.bf16.gmra.mxu0 %v2885
        %v3076 = vpop.f32.mrf.mxu0
        %v3077 = vadd.f32 0.0, %v3076
        %v3078 = vpop.f32.mrf.mxu0
        %v3079 = vadd.f32 0.0, %v3078
        %3080 = vmatmul.bf16.gmra.mxu0 %v2888
        %v3081 = vpop.f32.mrf.mxu0
        %v3082 = vadd.f32 0.0, %v3081
        %v3083 = vpop.f32.mrf.mxu0
        %v3084 = vadd.f32 0.0, %v3083
        %3085 = vdwg.mxu0
        %v3102 = vunpack.c.l.b16 %v2762
        %v3103 = vunpack.c.l.b16 %v2763
        %v3104 = vunpack.c.l.b16 %v2764
        %v3105 = vunpack.c.l.b16 %v2765
        %v3106 = vunpack.c.l.b16 %v2766
        %v3107 = vunpack.c.l.b16 %v2767
        %v3108 = vunpack.c.l.b16 %v2768
        %v3109 = vunpack.c.l.b16 %v2769
        %v3110 = vunpack.c.l.b16 %v2770
        %v3111 = vunpack.c.l.b16 %v2771
        %v3112 = vunpack.c.l.b16 %v2772
        %v3113 = vunpack.c.l.b16 %v2773
        %v3114 = vunpack.c.l.b16 %v2774
        %v3115 = vunpack.c.l.b16 %v2775
        %v3116 = vunpack.c.l.b16 %v2776
        %v3117 = vunpack.c.l.b16 %v2777
        %v3118 = vpack.c.b16 %v3103, %v3102
        %v3119 = vpack.c.b16 %v3105, %v3104
        %v3120 = vpack.c.b16 %v3107, %v3106
        %v3121 = vpack.c.b16 %v3109, %v3108
        %v3122 = vpack.c.b16 %v3111, %v3110
        %v3123 = vpack.c.b16 %v3113, %v3112
        %v3124 = vpack.c.b16 %v3115, %v3114
        %v3125 = vpack.c.b16 %v3117, %v3116
        %3134 = vmatpush.bf16.msra.mxu0 %v2806
        %3135 = vmatpush.bf16.msra.mxu0 %v2802
        %3136 = vmatpush.bf16.msra.mxu0 %v2798
        %3137 = vmatpush.bf16.msra.mxu0 %v2794
        %3138 = vmatpush.bf16.msra.mxu0 %v2790
        %3139 = vmatpush.bf16.msra.mxu0 %v2786
        %3140 = vmatpush.bf16.msra.mxu0 %v2782
        %3141 = vmatpush.bf16.msra.mxu0 %v2778
        %3142 = vmatmul.bf16.gmra.mxu0 %v3118
        %v3143 = vpop.f32.mrf.mxu0
        %v3144 = vadd.f32 %v2900, %v3143
        %v3145 = vpop.f32.mrf.mxu0
        %v3146 = vadd.f32 %v2902, %v3145
        %3147 = vmatmul.bf16.gmra.mxu0 %v3119
        %v3148 = vpop.f32.mrf.mxu0
        %v3149 = vadd.f32 %v2905, %v3148
        %v3150 = vpop.f32.mrf.mxu0
        %v3151 = vadd.f32 %v2907, %v3150
        %3152 = vmatmul.bf16.gmra.mxu0 %v3120
        %v3153 = vpop.f32.mrf.mxu0
        %v3154 = vadd.f32 %v2910, %v3153
        %v3155 = vpop.f32.mrf.mxu0
        %v3156 = vadd.f32 %v2912, %v3155
        %3157 = vmatmul.bf16.gmra.mxu0 %v3121
        %v3158 = vpop.f32.mrf.mxu0
        %v3159 = vadd.f32 %v2915, %v3158
        %v3160 = vpop.f32.mrf.mxu0
        %v3161 = vadd.f32 %v2917, %v3160
        %3162 = vmatmul.bf16.gmra.mxu0 %v3122
        %v3163 = vpop.f32.mrf.mxu0
        %v3164 = vadd.f32 %v2920, %v3163
        %v3165 = vpop.f32.mrf.mxu0
        %v3166 = vadd.f32 %v2922, %v3165
        %3167 = vmatmul.bf16.gmra.mxu0 %v3123
        %v3168 = vpop.f32.mrf.mxu0
        %v3169 = vadd.f32 %v2925, %v3168
        %v3170 = vpop.f32.mrf.mxu0
        %v3171 = vadd.f32 %v2927, %v3170
        %3172 = vmatmul.bf16.gmra.mxu0 %v3124
        %v3173 = vpop.f32.mrf.mxu0
        %v3174 = vadd.f32 %v2930, %v3173
        %v3175 = vpop.f32.mrf.mxu0
        %v3176 = vadd.f32 %v2932, %v3175
        %3177 = vmatmul.bf16.gmra.mxu0 %v3125
        %v3178 = vpop.f32.mrf.mxu0
        %v3179 = vadd.f32 %v2935, %v3178
        %v3180 = vpop.f32.mrf.mxu0
        %v3181 = vadd.f32 %v2937, %v3180
        %3182 = vdwg.mxu0
        %3183 = vmatpush.bf16.msra.mxu0 %v2807
        %3184 = vmatpush.bf16.msra.mxu0 %v2803
        %3185 = vmatpush.bf16.msra.mxu0 %v2799
        %3186 = vmatpush.bf16.msra.mxu0 %v2795
        %3187 = vmatpush.bf16.msra.mxu0 %v2791
        %3188 = vmatpush.bf16.msra.mxu0 %v2787
        %3189 = vmatpush.bf16.msra.mxu0 %v2783
        %3190 = vmatpush.bf16.msra.mxu0 %v2779
        %3191 = vmatmul.bf16.gmra.mxu0 %v3118
        %v3192 = vpop.f32.mrf.mxu0
        %v3193 = vadd.f32 %v2949, %v3192
        %v3194 = vpop.f32.mrf.mxu0
        %v3195 = vadd.f32 %v2951, %v3194
        %3196 = vmatmul.bf16.gmra.mxu0 %v3119
        %v3197 = vpop.f32.mrf.mxu0
        %v3198 = vadd.f32 %v2954, %v3197
        %v3199 = vpop.f32.mrf.mxu0
        %v3200 = vadd.f32 %v2956, %v3199
        %3201 = vmatmul.bf16.gmra.mxu0 %v3120
        %v3202 = vpop.f32.mrf.mxu0
        %v3203 = vadd.f32 %v2959, %v3202
        %v3204 = vpop.f32.mrf.mxu0
        %v3205 = vadd.f32 %v2961, %v3204
        %3206 = vmatmul.bf16.gmra.mxu0 %v3121
        %v3207 = vpop.f32.mrf.mxu0
        %v3208 = vadd.f32 %v2964, %v3207
        %v3209 = vpop.f32.mrf.mxu0
        %v3210 = vadd.f32 %v2966, %v3209
        %3211 = vmatmul.bf16.gmra.mxu0 %v3122
        %v3212 = vpop.f32.mrf.mxu0
        %v3213 = vadd.f32 %v2969, %v3212
        %v3214 = vpop.f32.mrf.mxu0
        %v3215 = vadd.f32 %v2971, %v3214
        %3216 = vmatmul.bf16.gmra.mxu0 %v3123
        %v3217 = vpop.f32.mrf.mxu0
        %v3218 = vadd.f32 %v2974, %v3217
        %v3219 = vpop.f32.mrf.mxu0
        %v3220 = vadd.f32 %v2976, %v3219
        %3221 = vmatmul.bf16.gmra.mxu0 %v3124
        %v3222 = vpop.f32.mrf.mxu0
        %v3223 = vadd.f32 %v2979, %v3222
        %v3224 = vpop.f32.mrf.mxu0
        %v3225 = vadd.f32 %v2981, %v3224
        %3226 = vmatmul.bf16.gmra.mxu0 %v3125
        %v3227 = vpop.f32.mrf.mxu0
        %v3228 = vadd.f32 %v2984, %v3227
        %v3229 = vpop.f32.mrf.mxu0
        %v3230 = vadd.f32 %v2986, %v3229
        %3231 = vdwg.mxu0
        %3232 = vmatpush.bf16.msra.mxu0 %v2808
        %3233 = vmatpush.bf16.msra.mxu0 %v2804
        %3234 = vmatpush.bf16.msra.mxu0 %v2800
        %3235 = vmatpush.bf16.msra.mxu0 %v2796
        %3236 = vmatpush.bf16.msra.mxu0 %v2792
        %3237 = vmatpush.bf16.msra.mxu0 %v2788
        %3238 = vmatpush.bf16.msra.mxu0 %v2784
        %3239 = vmatpush.bf16.msra.mxu0 %v2780
        %3240 = vmatmul.bf16.gmra.mxu0 %v3118
        %v3241 = vpop.f32.mrf.mxu0
        %v3242 = vadd.f32 %v2998, %v3241
        %v3243 = vpop.f32.mrf.mxu0
        %v3244 = vadd.f32 %v3000, %v3243
        %3245 = vmatmul.bf16.gmra.mxu0 %v3119
        %v3246 = vpop.f32.mrf.mxu0
        %v3247 = vadd.f32 %v3003, %v3246
        %v3248 = vpop.f32.mrf.mxu0
        %v3249 = vadd.f32 %v3005, %v3248
        %3250 = vmatmul.bf16.gmra.mxu0 %v3120
        %v3251 = vpop.f32.mrf.mxu0
        %v3252 = vadd.f32 %v3008, %v3251
        %v3253 = vpop.f32.mrf.mxu0
        %v3254 = vadd.f32 %v3010, %v3253
        %3255 = vmatmul.bf16.gmra.mxu0 %v3121
        %v3256 = vpop.f32.mrf.mxu0
        %v3257 = vadd.f32 %v3013, %v3256
        %v3258 = vpop.f32.mrf.mxu0
        %v3259 = vadd.f32 %v3015, %v3258
        %3260 = vmatmul.bf16.gmra.mxu0 %v3122
        %v3261 = vpop.f32.mrf.mxu0
        %v3262 = vadd.f32 %v3018, %v3261
        %v3263 = vpop.f32.mrf.mxu0
        %v3264 = vadd.f32 %v3020, %v3263
        %3265 = vmatmul.bf16.gmra.mxu0 %v3123
        %v3266 = vpop.f32.mrf.mxu0
        %v3267 = vadd.f32 %v3023, %v3266
        %v3268 = vpop.f32.mrf.mxu0
        %v3269 = vadd.f32 %v3025, %v3268
        %3270 = vmatmul.bf16.gmra.mxu0 %v3124
        %v3271 = vpop.f32.mrf.mxu0
        %v3272 = vadd.f32 %v3028, %v3271
        %v3273 = vpop.f32.mrf.mxu0
        %v3274 = vadd.f32 %v3030, %v3273
        %3275 = vmatmul.bf16.gmra.mxu0 %v3125
        %v3276 = vpop.f32.mrf.mxu0
        %v3277 = vadd.f32 %v3033, %v3276
        %v3278 = vpop.f32.mrf.mxu0
        %v3279 = vadd.f32 %v3035, %v3278
        %3280 = vdwg.mxu0
        %3281 = vmatpush.bf16.msra.mxu0 %v2809
        %3282 = vmatpush.bf16.msra.mxu0 %v2805
        %3283 = vmatpush.bf16.msra.mxu0 %v2801
        %3284 = vmatpush.bf16.msra.mxu0 %v2797
        %3285 = vmatpush.bf16.msra.mxu0 %v2793
        %3286 = vmatpush.bf16.msra.mxu0 %v2789
        %3287 = vmatpush.bf16.msra.mxu0 %v2785
        %3288 = vmatpush.bf16.msra.mxu0 %v2781
        %3289 = vmatmul.bf16.gmra.mxu0 %v3118
        %v3290 = vpop.f32.mrf.mxu0
        %v3291 = vadd.f32 %v3047, %v3290
        %v3292 = vpop.f32.mrf.mxu0
        %v3293 = vadd.f32 %v3049, %v3292
        %3294 = vmatmul.bf16.gmra.mxu0 %v3119
        %v3295 = vpop.f32.mrf.mxu0
        %v3296 = vadd.f32 %v3052, %v3295
        %v3297 = vpop.f32.mrf.mxu0
        %v3298 = vadd.f32 %v3054, %v3297
        %3299 = vmatmul.bf16.gmra.mxu0 %v3120
        %v3300 = vpop.f32.mrf.mxu0
        %v3301 = vadd.f32 %v3057, %v3300
        %v3302 = vpop.f32.mrf.mxu0
        %v3303 = vadd.f32 %v3059, %v3302
        %3304 = vmatmul.bf16.gmra.mxu0 %v3121
        %v3305 = vpop.f32.mrf.mxu0
        %v3306 = vadd.f32 %v3062, %v3305
        %v3307 = vpop.f32.mrf.mxu0
        %v3308 = vadd.f32 %v3064, %v3307
        %3309 = vmatmul.bf16.gmra.mxu0 %v3122
        %v3310 = vpop.f32.mrf.mxu0
        %v3311 = vadd.f32 %v3067, %v3310
        %v3312 = vpop.f32.mrf.mxu0
        %v3313 = vadd.f32 %v3069, %v3312
        %3314 = vmatmul.bf16.gmra.mxu0 %v3123
        %v3315 = vpop.f32.mrf.mxu0
        %v3316 = vadd.f32 %v3072, %v3315
        %v3317 = vpop.f32.mrf.mxu0
        %v3318 = vadd.f32 %v3074, %v3317
        %3319 = vmatmul.bf16.gmra.mxu0 %v3124
        %v3320 = vpop.f32.mrf.mxu0
        %v3321 = vadd.f32 %v3077, %v3320
        %v3322 = vpop.f32.mrf.mxu0
        %v3323 = vadd.f32 %v3079, %v3322
        %3324 = vmatmul.bf16.gmra.mxu0 %v3125
        %v3325 = vpop.f32.mrf.mxu0
        %v3326 = vadd.f32 %v3082, %v3325
        %v3327 = vpop.f32.mrf.mxu0
        %v3328 = vadd.f32 %v3084, %v3327
        %3329 = vdwg.mxu0
        %v3330 = vld [vmem:[%s12] sm:$0xff]
        %v3331 = vld [vmem:[%s12 + $0x8] sm:$0xff]
        %v3332 = vld [vmem:[%s12 + $0x10] sm:$0xff]
        %v3333 = vld [vmem:[%s12 + $0x18] sm:$0xff]
        %v3334 = vld [vmem:[%s12 + $0x20] sm:$0xff]
        %v3335 = vld [vmem:[%s12 + $0x28] sm:$0xff]
        %v3336 = vld [vmem:[%s12 + $0x30] sm:$0xff]
        %v3337 = vld [vmem:[%s12 + $0x38] sm:$0xff]
        %v3338 = vld [vmem:[%s12 + $0x40] sm:$0xff]
        %v3339 = vld [vmem:[%s12 + $0x48] sm:$0xff]
        %v3340 = vld [vmem:[%s12 + $0x50] sm:$0xff]
        %v3341 = vld [vmem:[%s12 + $0x58] sm:$0xff]
        %v3342 = vld [vmem:[%s12 + $0x60] sm:$0xff]
        %v3343 = vld [vmem:[%s12 + $0x68] sm:$0xff]
        %v3344 = vld [vmem:[%s12 + $0x70] sm:$0xff]
        %v3345 = vld [vmem:[%s12 + $0x78] sm:$0xff]
        %3347 = vset.pattern.permute.xlu0 0
        %3348 = vperm.xlu0 %3347, %v3330
        %v3349 = vpop.permute.xlu0 %3348
        %3352 = vset.pattern.permute.xlu0 0
        %3353 = vperm.xlu0 %3352, %v3331
        %v3354 = vpop.permute.xlu0 %3353
        %3357 = vset.pattern.permute.xlu0 0
        %3358 = vperm.xlu0 %3357, %v3332
        %v3359 = vpop.permute.xlu0 %3358
        %3362 = vset.pattern.permute.xlu0 0
        %3363 = vperm.xlu0 %3362, %v3333
        %v3364 = vpop.permute.xlu0 %3363
        %3367 = vset.pattern.permute.xlu0 0
        %3368 = vperm.xlu0 %3367, %v3334
        %v3369 = vpop.permute.xlu0 %3368
        %3372 = vset.pattern.permute.xlu0 0
        %3373 = vperm.xlu0 %3372, %v3335
        %v3374 = vpop.permute.xlu0 %3373
        %3377 = vset.pattern.permute.xlu0 0
        %3378 = vperm.xlu0 %3377, %v3336
        %v3379 = vpop.permute.xlu0 %3378
        %3382 = vset.pattern.permute.xlu0 0
        %3383 = vperm.xlu0 %3382, %v3337
        %v3384 = vpop.permute.xlu0 %3383
        %3387 = vset.pattern.permute.xlu0 0
        %3388 = vperm.xlu0 %3387, %v3338
        %v3389 = vpop.permute.xlu0 %3388
        %3392 = vset.pattern.permute.xlu0 0
        %3393 = vperm.xlu0 %3392, %v3339
        %v3394 = vpop.permute.xlu0 %3393
        %3397 = vset.pattern.permute.xlu0 0
        %3398 = vperm.xlu0 %3397, %v3340
        %v3399 = vpop.permute.xlu0 %3398
        %3402 = vset.pattern.permute.xlu0 0
        %3403 = vperm.xlu0 %3402, %v3341
        %v3404 = vpop.permute.xlu0 %3403
        %3407 = vset.pattern.permute.xlu0 0
        %3408 = vperm.xlu0 %3407, %v3342
        %v3409 = vpop.permute.xlu0 %3408
        %3412 = vset.pattern.permute.xlu0 0
        %3413 = vperm.xlu0 %3412, %v3343
        %v3414 = vpop.permute.xlu0 %3413
        %3417 = vset.pattern.permute.xlu0 0
        %3418 = vperm.xlu0 %3417, %v3344
        %v3419 = vpop.permute.xlu0 %3418
        %3422 = vset.pattern.permute.xlu0 0
        %3423 = vperm.xlu0 %3422, %v3345
        %v3424 = vpop.permute.xlu0 %3423
        %v3426 = vadd.f32 %v3144, %v3349
        %v3427 = vadd.f32 %v3193, %v3349
        %v3428 = vadd.f32 %v3242, %v3349
        %v3429 = vadd.f32 %v3291, %v3349
        %v3430 = vadd.f32 %v3146, %v3354
        %v3431 = vadd.f32 %v3195, %v3354
        %v3432 = vadd.f32 %v3244, %v3354
        %v3433 = vadd.f32 %v3293, %v3354
        %v3434 = vadd.f32 %v3149, %v3359
        %v3435 = vadd.f32 %v3198, %v3359
        %v3436 = vadd.f32 %v3247, %v3359
        %v3437 = vadd.f32 %v3296, %v3359
        %v3438 = vadd.f32 %v3151, %v3364
        %v3439 = vadd.f32 %v3200, %v3364
        %v3440 = vadd.f32 %v3249, %v3364
        %v3441 = vadd.f32 %v3298, %v3364
        %v3442 = vadd.f32 %v3154, %v3369
        %v3443 = vadd.f32 %v3203, %v3369
        %v3444 = vadd.f32 %v3252, %v3369
        %v3445 = vadd.f32 %v3301, %v3369
        %v3446 = vadd.f32 %v3156, %v3374
        %v3447 = vadd.f32 %v3205, %v3374
        %v3448 = vadd.f32 %v3254, %v3374
        %v3449 = vadd.f32 %v3303, %v3374
        %v3450 = vadd.f32 %v3159, %v3379
        %v3451 = vadd.f32 %v3208, %v3379
        %v3452 = vadd.f32 %v3257, %v3379
        %v3453 = vadd.f32 %v3306, %v3379
        %v3454 = vadd.f32 %v3161, %v3384
        %v3455 = vadd.f32 %v3210, %v3384
        %v3456 = vadd.f32 %v3259, %v3384
        %v3457 = vadd.f32 %v3308, %v3384
        %v3458 = vadd.f32 %v3164, %v3389
        %v3459 = vadd.f32 %v3213, %v3389
        %v3460 = vadd.f32 %v3262, %v3389
        %v3461 = vadd.f32 %v3311, %v3389
        %v3462 = vadd.f32 %v3166, %v3394
        %v3463 = vadd.f32 %v3215, %v3394
        %v3464 = vadd.f32 %v3264, %v3394
        %v3465 = vadd.f32 %v3313, %v3394
        %v3466 = vadd.f32 %v3169, %v3399
        %v3467 = vadd.f32 %v3218, %v3399
        %v3468 = vadd.f32 %v3267, %v3399
        %v3469 = vadd.f32 %v3316, %v3399
        %v3470 = vadd.f32 %v3171, %v3404
        %v3471 = vadd.f32 %v3220, %v3404
        %v3472 = vadd.f32 %v3269, %v3404
        %v3473 = vadd.f32 %v3318, %v3404
        %v3474 = vadd.f32 %v3174, %v3409
        %v3475 = vadd.f32 %v3223, %v3409
        %v3476 = vadd.f32 %v3272, %v3409
        %v3477 = vadd.f32 %v3321, %v3409
        %v3478 = vadd.f32 %v3176, %v3414
        %v3479 = vadd.f32 %v3225, %v3414
        %v3480 = vadd.f32 %v3274, %v3414
        %v3481 = vadd.f32 %v3323, %v3414
        %v3482 = vadd.f32 %v3179, %v3419
        %v3483 = vadd.f32 %v3228, %v3419
        %v3484 = vadd.f32 %v3277, %v3419
        %v3485 = vadd.f32 %v3326, %v3419
        %v3486 = vadd.f32 %v3181, %v3424
        %v3487 = vadd.f32 %v3230, %v3424
        %v3488 = vadd.f32 %v3279, %v3424
        %v3489 = vadd.f32 %v3328, %v3424
        %v3490 = vmax.f32 %v3426, 0.0
        %v3491 = vmax.f32 %v3427, 0.0
        %v3492 = vmax.f32 %v3428, 0.0
        %v3493 = vmax.f32 %v3429, 0.0
        %v3494 = vmax.f32 %v3430, 0.0
        %v3495 = vmax.f32 %v3431, 0.0
        %v3496 = vmax.f32 %v3432, 0.0
        %v3497 = vmax.f32 %v3433, 0.0
        %v3498 = vmax.f32 %v3434, 0.0
        %v3499 = vmax.f32 %v3435, 0.0
        %v3500 = vmax.f32 %v3436, 0.0
        %v3501 = vmax.f32 %v3437, 0.0
        %v3502 = vmax.f32 %v3438, 0.0
        %v3503 = vmax.f32 %v3439, 0.0
        %v3504 = vmax.f32 %v3440, 0.0
        %v3505 = vmax.f32 %v3441, 0.0
        %v3506 = vmax.f32 %v3442, 0.0
        %v3507 = vmax.f32 %v3443, 0.0
        %v3508 = vmax.f32 %v3444, 0.0
        %v3509 = vmax.f32 %v3445, 0.0
        %v3510 = vmax.f32 %v3446, 0.0
        %v3511 = vmax.f32 %v3447, 0.0
        %v3512 = vmax.f32 %v3448, 0.0
        %v3513 = vmax.f32 %v3449, 0.0
        %v3514 = vmax.f32 %v3450, 0.0
        %v3515 = vmax.f32 %v3451, 0.0
        %v3516 = vmax.f32 %v3452, 0.0
        %v3517 = vmax.f32 %v3453, 0.0
        %v3518 = vmax.f32 %v3454, 0.0
        %v3519 = vmax.f32 %v3455, 0.0
        %v3520 = vmax.f32 %v3456, 0.0
        %v3521 = vmax.f32 %v3457, 0.0
        %v3522 = vmax.f32 %v3458, 0.0
        %v3523 = vmax.f32 %v3459, 0.0
        %v3524 = vmax.f32 %v3460, 0.0
        %v3525 = vmax.f32 %v3461, 0.0
        %v3526 = vmax.f32 %v3462, 0.0
        %v3527 = vmax.f32 %v3463, 0.0
        %v3528 = vmax.f32 %v3464, 0.0
        %v3529 = vmax.f32 %v3465, 0.0
        %v3530 = vmax.f32 %v3466, 0.0
        %v3531 = vmax.f32 %v3467, 0.0
        %v3532 = vmax.f32 %v3468, 0.0
        %v3533 = vmax.f32 %v3469, 0.0
        %v3534 = vmax.f32 %v3470, 0.0
        %v3535 = vmax.f32 %v3471, 0.0
        %v3536 = vmax.f32 %v3472, 0.0
        %v3537 = vmax.f32 %v3473, 0.0
        %v3538 = vmax.f32 %v3474, 0.0
        %v3539 = vmax.f32 %v3475, 0.0
        %v3540 = vmax.f32 %v3476, 0.0
        %v3541 = vmax.f32 %v3477, 0.0
        %v3542 = vmax.f32 %v3478, 0.0
        %v3543 = vmax.f32 %v3479, 0.0
        %v3544 = vmax.f32 %v3480, 0.0
        %v3545 = vmax.f32 %v3481, 0.0
        %v3546 = vmax.f32 %v3482, 0.0
        %v3547 = vmax.f32 %v3483, 0.0
        %v3548 = vmax.f32 %v3484, 0.0
        %v3549 = vmax.f32 %v3485, 0.0
        %v3550 = vmax.f32 %v3486, 0.0
        %v3551 = vmax.f32 %v3487, 0.0
        %v3552 = vmax.f32 %v3488, 0.0
        %v3553 = vmax.f32 %v3489, 0.0
        %v3554 = vld [vmem:[%s13] sm:$0xf]
        %v3555 = vld [vmem:[%s13 + $0x4] sm:$0xf]
        %v3556 = vld [vmem:[%s13 + $0x8] sm:$0xf]
        %v3557 = vld [vmem:[%s13 + $0xc] sm:$0xf]
        %v3558 = vld [vmem:[%s13 + $0x10] sm:$0xf]
        %v3559 = vld [vmem:[%s13 + $0x14] sm:$0xf]
        %v3560 = vld [vmem:[%s13 + $0x18] sm:$0xf]
        %v3561 = vld [vmem:[%s13 + $0x1c] sm:$0xf]
        %v3562 = vld [vmem:[%s13 + $0x20] sm:$0xf]
        %v3563 = vld [vmem:[%s13 + $0x24] sm:$0xf]
        %v3564 = vld [vmem:[%s13 + $0x28] sm:$0xf]
        %v3565 = vld [vmem:[%s13 + $0x2c] sm:$0xf]
        %v3566 = vld [vmem:[%s13 + $0x30] sm:$0xf]
        %v3567 = vld [vmem:[%s13 + $0x34] sm:$0xf]
        %v3568 = vld [vmem:[%s13 + $0x38] sm:$0xf]
        %v3569 = vld [vmem:[%s13 + $0x3c] sm:$0xf]
        %v3570 = vpack.c.bf16 %v3494, %v3490
        %v3571 = vpack.c.bf16 %v3495, %v3491
        %v3572 = vpack.c.bf16 %v3496, %v3492
        %v3573 = vpack.c.bf16 %v3497, %v3493
        %v3574 = vpack.c.bf16 %v3502, %v3498
        %v3575 = vpack.c.bf16 %v3503, %v3499
        %v3576 = vpack.c.bf16 %v3504, %v3500
        %v3577 = vpack.c.bf16 %v3505, %v3501
        %v3578 = vpack.c.bf16 %v3510, %v3506
        %v3579 = vpack.c.bf16 %v3511, %v3507
        %v3580 = vpack.c.bf16 %v3512, %v3508
        %v3581 = vpack.c.bf16 %v3513, %v3509
        %v3582 = vpack.c.bf16 %v3518, %v3514
        %v3583 = vpack.c.bf16 %v3519, %v3515
        %v3584 = vpack.c.bf16 %v3520, %v3516
        %v3585 = vpack.c.bf16 %v3521, %v3517
        %v3586 = vpack.c.bf16 %v3526, %v3522
        %v3587 = vpack.c.bf16 %v3527, %v3523
        %v3588 = vpack.c.bf16 %v3528, %v3524
        %v3589 = vpack.c.bf16 %v3529, %v3525
        %v3590 = vpack.c.bf16 %v3534, %v3530
        %v3591 = vpack.c.bf16 %v3535, %v3531
        %v3592 = vpack.c.bf16 %v3536, %v3532
        %v3593 = vpack.c.bf16 %v3537, %v3533
        %v3594 = vpack.c.bf16 %v3542, %v3538
        %v3595 = vpack.c.bf16 %v3543, %v3539
        %v3596 = vpack.c.bf16 %v3544, %v3540
        %v3597 = vpack.c.bf16 %v3545, %v3541
        %v3598 = vpack.c.bf16 %v3550, %v3546
        %v3599 = vpack.c.bf16 %v3551, %v3547
        %v3600 = vpack.c.bf16 %v3552, %v3548
        %v3601 = vpack.c.bf16 %v3553, %v3549
        %v3602 = vld [vmem:[%s14] sm:$0xff]
        %v3603 = vld [vmem:[%s14 + $0x8] sm:$0xff]
        %v3604 = vld [vmem:[%s14 + $0x10] sm:$0xff]
        %v3605 = vld [vmem:[%s14 + $0x18] sm:$0xff]
        %v3606 = vld [vmem:[%s14 + $0x20] sm:$0xff]
        %v3607 = vld [vmem:[%s14 + $0x28] sm:$0xff]
        %v3608 = vld [vmem:[%s14 + $0x30] sm:$0xff]
        %v3609 = vld [vmem:[%s14 + $0x38] sm:$0xff]
        %v3610 = vld [vmem:[%s14 + $0x40] sm:$0xff]
        %v3611 = vld [vmem:[%s14 + $0x48] sm:$0xff]
        %v3612 = vld [vmem:[%s14 + $0x50] sm:$0xff]
        %v3613 = vld [vmem:[%s14 + $0x58] sm:$0xff]
        %v3614 = vld [vmem:[%s14 + $0x60] sm:$0xff]
        %v3615 = vld [vmem:[%s14 + $0x68] sm:$0xff]
        %v3616 = vld [vmem:[%s14 + $0x70] sm:$0xff]
        %v3617 = vld [vmem:[%s14 + $0x78] sm:$0xff]
        %3619 = vset.pattern.permute.xlu0 0
        %3620 = vperm.xlu0 %3619, %v3602
        %v3621 = vpop.permute.xlu0 %3620
        %3624 = vset.pattern.permute.xlu0 0
        %3625 = vperm.xlu0 %3624, %v3603
        %v3626 = vpop.permute.xlu0 %3625
        %3629 = vset.pattern.permute.xlu0 0
        %3630 = vperm.xlu0 %3629, %v3604
        %v3631 = vpop.permute.xlu0 %3630
        %3634 = vset.pattern.permute.xlu0 0
        %3635 = vperm.xlu0 %3634, %v3605
        %v3636 = vpop.permute.xlu0 %3635
        %3639 = vset.pattern.permute.xlu0 0
        %3640 = vperm.xlu0 %3639, %v3606
        %v3641 = vpop.permute.xlu0 %3640
        %3644 = vset.pattern.permute.xlu0 0
        %3645 = vperm.xlu0 %3644, %v3607
        %v3646 = vpop.permute.xlu0 %3645
        %3649 = vset.pattern.permute.xlu0 0
        %3650 = vperm.xlu0 %3649, %v3608
        %v3651 = vpop.permute.xlu0 %3650
        %3654 = vset.pattern.permute.xlu0 0
        %3655 = vperm.xlu0 %3654, %v3609
        %v3656 = vpop.permute.xlu0 %3655
        %3659 = vset.pattern.permute.xlu0 0
        %3660 = vperm.xlu0 %3659, %v3610
        %v3661 = vpop.permute.xlu0 %3660
        %3664 = vset.pattern.permute.xlu0 0
        %3665 = vperm.xlu0 %3664, %v3611
        %v3666 = vpop.permute.xlu0 %3665
        %3669 = vset.pattern.permute.xlu0 0
        %3670 = vperm.xlu0 %3669, %v3612
        %v3671 = vpop.permute.xlu0 %3670
        %3674 = vset.pattern.permute.xlu0 0
        %3675 = vperm.xlu0 %3674, %v3613
        %v3676 = vpop.permute.xlu0 %3675
        %3679 = vset.pattern.permute.xlu0 0
        %3680 = vperm.xlu0 %3679, %v3614
        %v3681 = vpop.permute.xlu0 %3680
        %3684 = vset.pattern.permute.xlu0 0
        %3685 = vperm.xlu0 %3684, %v3615
        %v3686 = vpop.permute.xlu0 %3685
        %3689 = vset.pattern.permute.xlu0 0
        %3690 = vperm.xlu0 %3689, %v3616
        %v3691 = vpop.permute.xlu0 %3690
        %3694 = vset.pattern.permute.xlu0 0
        %3695 = vperm.xlu0 %3694, %v3617
        %v3696 = vpop.permute.xlu0 %3695
        %v3714 = vunpack.c.l.b16 %v3554
        %v3715 = vunpack.c.l.b16 %v3555
        %v3716 = vunpack.c.l.b16 %v3556
        %v3717 = vunpack.c.l.b16 %v3557
        %v3718 = vunpack.c.l.b16 %v3558
        %v3719 = vunpack.c.l.b16 %v3559
        %v3720 = vunpack.c.l.b16 %v3560
        %v3721 = vunpack.c.l.b16 %v3561
        %v3722 = vunpack.c.l.b16 %v3562
        %v3723 = vunpack.c.l.b16 %v3563
        %v3724 = vunpack.c.l.b16 %v3564
        %v3725 = vunpack.c.l.b16 %v3565
        %v3726 = vunpack.c.l.b16 %v3566
        %v3727 = vunpack.c.l.b16 %v3567
        %v3728 = vunpack.c.l.b16 %v3568
        %v3729 = vunpack.c.l.b16 %v3569
        %v3730 = vpack.c.b16 %v3715, %v3714
        %v3731 = vpack.c.b16 %v3717, %v3716
        %v3732 = vpack.c.b16 %v3719, %v3718
        %v3733 = vpack.c.b16 %v3721, %v3720
        %v3734 = vpack.c.b16 %v3723, %v3722
        %v3735 = vpack.c.b16 %v3725, %v3724
        %v3736 = vpack.c.b16 %v3727, %v3726
        %v3737 = vpack.c.b16 %v3729, %v3728
        %3746 = vmatpush.bf16.msra.mxu0 %v3598
        %3747 = vmatpush.bf16.msra.mxu0 %v3594
        %3748 = vmatpush.bf16.msra.mxu0 %v3590
        %3749 = vmatpush.bf16.msra.mxu0 %v3586
        %3750 = vmatpush.bf16.msra.mxu0 %v3582
        %3751 = vmatpush.bf16.msra.mxu0 %v3578
        %3752 = vmatpush.bf16.msra.mxu0 %v3574
        %3753 = vmatpush.bf16.msra.mxu0 %v3570
        %3754 = vmatmul.bf16.gmra.mxu0 %v3730
        %v3755 = vpop.f32.mrf.mxu0
        %v3756 = vadd.f32 %v3621, %v3755
        %v3757 = vpop.f32.mrf.mxu0
        %v3758 = vadd.f32 %v3626, %v3757
        %3759 = vmatmul.bf16.gmra.mxu0 %v3731
        %v3760 = vpop.f32.mrf.mxu0
        %v3761 = vadd.f32 %v3631, %v3760
        %v3762 = vpop.f32.mrf.mxu0
        %v3763 = vadd.f32 %v3636, %v3762
        %3764 = vmatmul.bf16.gmra.mxu0 %v3732
        %v3765 = vpop.f32.mrf.mxu0
        %v3766 = vadd.f32 %v3641, %v3765
        %v3767 = vpop.f32.mrf.mxu0
        %v3768 = vadd.f32 %v3646, %v3767
        %3769 = vmatmul.bf16.gmra.mxu0 %v3733
        %v3770 = vpop.f32.mrf.mxu0
        %v3771 = vadd.f32 %v3651, %v3770
        %v3772 = vpop.f32.mrf.mxu0
        %v3773 = vadd.f32 %v3656, %v3772
        %3774 = vmatmul.bf16.gmra.mxu0 %v3734
        %v3775 = vpop.f32.mrf.mxu0
        %v3776 = vadd.f32 %v3661, %v3775
        %v3777 = vpop.f32.mrf.mxu0
        %v3778 = vadd.f32 %v3666, %v3777
        %3779 = vmatmul.bf16.gmra.mxu0 %v3735
        %v3780 = vpop.f32.mrf.mxu0
        %v3781 = vadd.f32 %v3671, %v3780
        %v3782 = vpop.f32.mrf.mxu0
        %v3783 = vadd.f32 %v3676, %v3782
        %3784 = vmatmul.bf16.gmra.mxu0 %v3736
        %v3785 = vpop.f32.mrf.mxu0
        %v3786 = vadd.f32 %v3681, %v3785
        %v3787 = vpop.f32.mrf.mxu0
        %v3788 = vadd.f32 %v3686, %v3787
        %3789 = vmatmul.bf16.gmra.mxu0 %v3737
        %v3790 = vpop.f32.mrf.mxu0
        %v3791 = vadd.f32 %v3691, %v3790
        %v3792 = vpop.f32.mrf.mxu0
        %v3793 = vadd.f32 %v3696, %v3792
        %3794 = vdwg.mxu0
        %3795 = vmatpush.bf16.msra.mxu0 %v3599
        %3796 = vmatpush.bf16.msra.mxu0 %v3595
        %3797 = vmatpush.bf16.msra.mxu0 %v3591
        %3798 = vmatpush.bf16.msra.mxu0 %v3587
        %3799 = vmatpush.bf16.msra.mxu0 %v3583
        %3800 = vmatpush.bf16.msra.mxu0 %v3579
        %3801 = vmatpush.bf16.msra.mxu0 %v3575
        %3802 = vmatpush.bf16.msra.mxu0 %v3571
        %3803 = vmatmul.bf16.gmra.mxu0 %v3730
        %v3804 = vpop.f32.mrf.mxu0
        %v3805 = vadd.f32 %v3621, %v3804
        %v3806 = vpop.f32.mrf.mxu0
        %v3807 = vadd.f32 %v3626, %v3806
        %3808 = vmatmul.bf16.gmra.mxu0 %v3731
        %v3809 = vpop.f32.mrf.mxu0
        %v3810 = vadd.f32 %v3631, %v3809
        %v3811 = vpop.f32.mrf.mxu0
        %v3812 = vadd.f32 %v3636, %v3811
        %3813 = vmatmul.bf16.gmra.mxu0 %v3732
        %v3814 = vpop.f32.mrf.mxu0
        %v3815 = vadd.f32 %v3641, %v3814
        %v3816 = vpop.f32.mrf.mxu0
        %v3817 = vadd.f32 %v3646, %v3816
        %3818 = vmatmul.bf16.gmra.mxu0 %v3733
        %v3819 = vpop.f32.mrf.mxu0
        %v3820 = vadd.f32 %v3651, %v3819
        %v3821 = vpop.f32.mrf.mxu0
        %v3822 = vadd.f32 %v3656, %v3821
        %3823 = vmatmul.bf16.gmra.mxu0 %v3734
        %v3824 = vpop.f32.mrf.mxu0
        %v3825 = vadd.f32 %v3661, %v3824
        %v3826 = vpop.f32.mrf.mxu0
        %v3827 = vadd.f32 %v3666, %v3826
        %3828 = vmatmul.bf16.gmra.mxu0 %v3735
        %v3829 = vpop.f32.mrf.mxu0
        %v3830 = vadd.f32 %v3671, %v3829
        %v3831 = vpop.f32.mrf.mxu0
        %v3832 = vadd.f32 %v3676, %v3831
        %3833 = vmatmul.bf16.gmra.mxu0 %v3736
        %v3834 = vpop.f32.mrf.mxu0
        %v3835 = vadd.f32 %v3681, %v3834
        %v3836 = vpop.f32.mrf.mxu0
        %v3837 = vadd.f32 %v3686, %v3836
        %3838 = vmatmul.bf16.gmra.mxu0 %v3737
        %v3839 = vpop.f32.mrf.mxu0
        %v3840 = vadd.f32 %v3691, %v3839
        %v3841 = vpop.f32.mrf.mxu0
        %v3842 = vadd.f32 %v3696, %v3841
        %3843 = vdwg.mxu0
        %3844 = vmatpush.bf16.msra.mxu0 %v3600
        %3845 = vmatpush.bf16.msra.mxu0 %v3596
        %3846 = vmatpush.bf16.msra.mxu0 %v3592
        %3847 = vmatpush.bf16.msra.mxu0 %v3588
        %3848 = vmatpush.bf16.msra.mxu0 %v3584
        %3849 = vmatpush.bf16.msra.mxu0 %v3580
        %3850 = vmatpush.bf16.msra.mxu0 %v3576
        %3851 = vmatpush.bf16.msra.mxu0 %v3572
        %3852 = vmatmul.bf16.gmra.mxu0 %v3730
        %v3853 = vpop.f32.mrf.mxu0
        %v3854 = vadd.f32 %v3621, %v3853
        %v3855 = vpop.f32.mrf.mxu0
        %v3856 = vadd.f32 %v3626, %v3855
        %3857 = vmatmul.bf16.gmra.mxu0 %v3731
        %v3858 = vpop.f32.mrf.mxu0
        %v3859 = vadd.f32 %v3631, %v3858
        %v3860 = vpop.f32.mrf.mxu0
        %v3861 = vadd.f32 %v3636, %v3860
        %3862 = vmatmul.bf16.gmra.mxu0 %v3732
        %v3863 = vpop.f32.mrf.mxu0
        %v3864 = vadd.f32 %v3641, %v3863
        %v3865 = vpop.f32.mrf.mxu0
        %v3866 = vadd.f32 %v3646, %v3865
        %3867 = vmatmul.bf16.gmra.mxu0 %v3733
        %v3868 = vpop.f32.mrf.mxu0
        %v3869 = vadd.f32 %v3651, %v3868
        %v3870 = vpop.f32.mrf.mxu0
        %v3871 = vadd.f32 %v3656, %v3870
        %3872 = vmatmul.bf16.gmra.mxu0 %v3734
        %v3873 = vpop.f32.mrf.mxu0
        %v3874 = vadd.f32 %v3661, %v3873
        %v3875 = vpop.f32.mrf.mxu0
        %v3876 = vadd.f32 %v3666, %v3875
        %3877 = vmatmul.bf16.gmra.mxu0 %v3735
        %v3878 = vpop.f32.mrf.mxu0
        %v3879 = vadd.f32 %v3671, %v3878
        %v3880 = vpop.f32.mrf.mxu0
        %v3881 = vadd.f32 %v3676, %v3880
        %3882 = vmatmul.bf16.gmra.mxu0 %v3736
        %v3883 = vpop.f32.mrf.mxu0
        %v3884 = vadd.f32 %v3681, %v3883
        %v3885 = vpop.f32.mrf.mxu0
        %v3886 = vadd.f32 %v3686, %v3885
        %3887 = vmatmul.bf16.gmra.mxu0 %v3737
        %v3888 = vpop.f32.mrf.mxu0
        %v3889 = vadd.f32 %v3691, %v3888
        %v3890 = vpop.f32.mrf.mxu0
        %v3891 = vadd.f32 %v3696, %v3890
        %3892 = vdwg.mxu0
        %3893 = vmatpush.bf16.msra.mxu0 %v3601
        %3894 = vmatpush.bf16.msra.mxu0 %v3597
        %3895 = vmatpush.bf16.msra.mxu0 %v3593
        %3896 = vmatpush.bf16.msra.mxu0 %v3589
        %3897 = vmatpush.bf16.msra.mxu0 %v3585
        %3898 = vmatpush.bf16.msra.mxu0 %v3581
        %3899 = vmatpush.bf16.msra.mxu0 %v3577
        %3900 = vmatpush.bf16.msra.mxu0 %v3573
        %3901 = vmatmul.bf16.gmra.mxu0 %v3730
        %v3902 = vpop.f32.mrf.mxu0
        %v3903 = vadd.f32 %v3621, %v3902
        %v3904 = vpop.f32.mrf.mxu0
        %v3905 = vadd.f32 %v3626, %v3904
        %3906 = vmatmul.bf16.gmra.mxu0 %v3731
        %v3907 = vpop.f32.mrf.mxu0
        %v3908 = vadd.f32 %v3631, %v3907
        %v3909 = vpop.f32.mrf.mxu0
        %v3910 = vadd.f32 %v3636, %v3909
        %3911 = vmatmul.bf16.gmra.mxu0 %v3732
        %v3912 = vpop.f32.mrf.mxu0
        %v3913 = vadd.f32 %v3641, %v3912
        %v3914 = vpop.f32.mrf.mxu0
        %v3915 = vadd.f32 %v3646, %v3914
        %3916 = vmatmul.bf16.gmra.mxu0 %v3733
        %v3917 = vpop.f32.mrf.mxu0
        %v3918 = vadd.f32 %v3651, %v3917
        %v3919 = vpop.f32.mrf.mxu0
        %v3920 = vadd.f32 %v3656, %v3919
        %3921 = vmatmul.bf16.gmra.mxu0 %v3734
        %v3922 = vpop.f32.mrf.mxu0
        %v3923 = vadd.f32 %v3661, %v3922
        %v3924 = vpop.f32.mrf.mxu0
        %v3925 = vadd.f32 %v3666, %v3924
        %3926 = vmatmul.bf16.gmra.mxu0 %v3735
        %v3927 = vpop.f32.mrf.mxu0
        %v3928 = vadd.f32 %v3671, %v3927
        %v3929 = vpop.f32.mrf.mxu0
        %v3930 = vadd.f32 %v3676, %v3929
        %3931 = vmatmul.bf16.gmra.mxu0 %v3736
        %v3932 = vpop.f32.mrf.mxu0
        %v3933 = vadd.f32 %v3681, %v3932
        %v3934 = vpop.f32.mrf.mxu0
        %v3935 = vadd.f32 %v3686, %v3934
        %3936 = vmatmul.bf16.gmra.mxu0 %v3737
        %v3937 = vpop.f32.mrf.mxu0
        %v3938 = vadd.f32 %v3691, %v3937
        %v3939 = vpop.f32.mrf.mxu0
        %v3940 = vadd.f32 %v3696, %v3939
        %3941 = vdwg.mxu0
        %v3942 = vmax.f32 %v3756, 0.0
        %v3943 = vmax.f32 %v3805, 0.0
        %v3944 = vmax.f32 %v3854, 0.0
        %v3945 = vmax.f32 %v3903, 0.0
        %v3946 = vmax.f32 %v3758, 0.0
        %v3947 = vmax.f32 %v3807, 0.0
        %v3948 = vmax.f32 %v3856, 0.0
        %v3949 = vmax.f32 %v3905, 0.0
        %v3950 = vmax.f32 %v3761, 0.0
        %v3951 = vmax.f32 %v3810, 0.0
        %v3952 = vmax.f32 %v3859, 0.0
        %v3953 = vmax.f32 %v3908, 0.0
        %v3954 = vmax.f32 %v3763, 0.0
        %v3955 = vmax.f32 %v3812, 0.0
        %v3956 = vmax.f32 %v3861, 0.0
        %v3957 = vmax.f32 %v3910, 0.0
        %v3958 = vmax.f32 %v3766, 0.0
        %v3959 = vmax.f32 %v3815, 0.0
        %v3960 = vmax.f32 %v3864, 0.0
        %v3961 = vmax.f32 %v3913, 0.0
        %v3962 = vmax.f32 %v3768, 0.0
        %v3963 = vmax.f32 %v3817, 0.0
        %v3964 = vmax.f32 %v3866, 0.0
        %v3965 = vmax.f32 %v3915, 0.0
        %v3966 = vmax.f32 %v3771, 0.0
        %v3967 = vmax.f32 %v3820, 0.0
        %v3968 = vmax.f32 %v3869, 0.0
        %v3969 = vmax.f32 %v3918, 0.0
        %v3970 = vmax.f32 %v3773, 0.0
        %v3971 = vmax.f32 %v3822, 0.0
        %v3972 = vmax.f32 %v3871, 0.0
        %v3973 = vmax.f32 %v3920, 0.0
        %v3974 = vmax.f32 %v3776, 0.0
        %v3975 = vmax.f32 %v3825, 0.0
        %v3976 = vmax.f32 %v3874, 0.0
        %v3977 = vmax.f32 %v3923, 0.0
        %v3978 = vmax.f32 %v3778, 0.0
        %v3979 = vmax.f32 %v3827, 0.0
        %v3980 = vmax.f32 %v3876, 0.0
        %v3981 = vmax.f32 %v3925, 0.0
        %v3982 = vmax.f32 %v3781, 0.0
        %v3983 = vmax.f32 %v3830, 0.0
        %v3984 = vmax.f32 %v3879, 0.0
        %v3985 = vmax.f32 %v3928, 0.0
        %v3986 = vmax.f32 %v3783, 0.0
        %v3987 = vmax.f32 %v3832, 0.0
        %v3988 = vmax.f32 %v3881, 0.0
        %v3989 = vmax.f32 %v3930, 0.0
        %v3990 = vmax.f32 %v3786, 0.0
        %v3991 = vmax.f32 %v3835, 0.0
        %v3992 = vmax.f32 %v3884, 0.0
        %v3993 = vmax.f32 %v3933, 0.0
        %v3994 = vmax.f32 %v3788, 0.0
        %v3995 = vmax.f32 %v3837, 0.0
        %v3996 = vmax.f32 %v3886, 0.0
        %v3997 = vmax.f32 %v3935, 0.0
        %v3998 = vmax.f32 %v3791, 0.0
        %v3999 = vmax.f32 %v3840, 0.0
        %v4000 = vmax.f32 %v3889, 0.0
        %v4001 = vmax.f32 %v3938, 0.0
        %v4002 = vmax.f32 %v3793, 0.0
        %v4003 = vmax.f32 %v3842, 0.0
        %v4004 = vmax.f32 %v3891, 0.0
        %v4005 = vmax.f32 %v3940, 0.0
        %v4006 = vld [vmem:[%s15] sm:$0xf]
        %v4007 = vld [vmem:[%s15 + $0x4] sm:$0xf]
        %v4008 = vld [vmem:[%s15 + $0x8] sm:$0xf]
        %v4009 = vld [vmem:[%s15 + $0xc] sm:$0xf]
        %v4010 = vld [vmem:[%s15 + $0x10] sm:$0xf]
        %v4011 = vld [vmem:[%s15 + $0x14] sm:$0xf]
        %v4012 = vld [vmem:[%s15 + $0x18] sm:$0xf]
        %v4013 = vld [vmem:[%s15 + $0x1c] sm:$0xf]
        %v4014 = vld [vmem:[%s15 + $0x20] sm:$0xf]
        %v4015 = vld [vmem:[%s15 + $0x24] sm:$0xf]
        %v4016 = vld [vmem:[%s15 + $0x28] sm:$0xf]
        %v4017 = vld [vmem:[%s15 + $0x2c] sm:$0xf]
        %v4018 = vld [vmem:[%s15 + $0x30] sm:$0xf]
        %v4019 = vld [vmem:[%s15 + $0x34] sm:$0xf]
        %v4020 = vld [vmem:[%s15 + $0x38] sm:$0xf]
        %v4021 = vld [vmem:[%s15 + $0x3c] sm:$0xf]
        %v4022 = vpack.c.bf16 %v3946, %v3942
        %v4023 = vpack.c.bf16 %v3947, %v3943
        %v4024 = vpack.c.bf16 %v3948, %v3944
        %v4025 = vpack.c.bf16 %v3949, %v3945
        %v4026 = vpack.c.bf16 %v3954, %v3950
        %v4027 = vpack.c.bf16 %v3955, %v3951
        %v4028 = vpack.c.bf16 %v3956, %v3952
        %v4029 = vpack.c.bf16 %v3957, %v3953
        %v4030 = vpack.c.bf16 %v3962, %v3958
        %v4031 = vpack.c.bf16 %v3963, %v3959
        %v4032 = vpack.c.bf16 %v3964, %v3960
        %v4033 = vpack.c.bf16 %v3965, %v3961
        %v4034 = vpack.c.bf16 %v3970, %v3966
        %v4035 = vpack.c.bf16 %v3971, %v3967
        %v4036 = vpack.c.bf16 %v3972, %v3968
        %v4037 = vpack.c.bf16 %v3973, %v3969
        %v4038 = vpack.c.bf16 %v3978, %v3974
        %v4039 = vpack.c.bf16 %v3979, %v3975
        %v4040 = vpack.c.bf16 %v3980, %v3976
        %v4041 = vpack.c.bf16 %v3981, %v3977
        %v4042 = vpack.c.bf16 %v3986, %v3982
        %v4043 = vpack.c.bf16 %v3987, %v3983
        %v4044 = vpack.c.bf16 %v3988, %v3984
        %v4045 = vpack.c.bf16 %v3989, %v3985
        %v4046 = vpack.c.bf16 %v3994, %v3990
        %v4047 = vpack.c.bf16 %v3995, %v3991
        %v4048 = vpack.c.bf16 %v3996, %v3992
        %v4049 = vpack.c.bf16 %v3997, %v3993
        %v4050 = vpack.c.bf16 %v4002, %v3998
        %v4051 = vpack.c.bf16 %v4003, %v3999
        %v4052 = vpack.c.bf16 %v4004, %v4000
        %v4053 = vpack.c.bf16 %v4005, %v4001
        %v4054 = vld [vmem:[%s16] sm:$0xff]
        %v4055 = vld [vmem:[%s16 + $0x8] sm:$0xff]
        %v4056 = vld [vmem:[%s16 + $0x10] sm:$0xff]
        %v4057 = vld [vmem:[%s16 + $0x18] sm:$0xff]
        %v4058 = vld [vmem:[%s16 + $0x20] sm:$0xff]
        %v4059 = vld [vmem:[%s16 + $0x28] sm:$0xff]
        %v4060 = vld [vmem:[%s16 + $0x30] sm:$0xff]
        %v4061 = vld [vmem:[%s16 + $0x38] sm:$0xff]
        %v4062 = vld [vmem:[%s16 + $0x40] sm:$0xff]
        %v4063 = vld [vmem:[%s16 + $0x48] sm:$0xff]
        %v4064 = vld [vmem:[%s16 + $0x50] sm:$0xff]
        %v4065 = vld [vmem:[%s16 + $0x58] sm:$0xff]
        %v4066 = vld [vmem:[%s16 + $0x60] sm:$0xff]
        %v4067 = vld [vmem:[%s16 + $0x68] sm:$0xff]
        %v4068 = vld [vmem:[%s16 + $0x70] sm:$0xff]
        %v4069 = vld [vmem:[%s16 + $0x78] sm:$0xff]
        %4071 = vset.pattern.permute.xlu0 0
        %4072 = vperm.xlu0 %4071, %v4054
        %v4073 = vpop.permute.xlu0 %4072
        %4076 = vset.pattern.permute.xlu0 0
        %4077 = vperm.xlu0 %4076, %v4055
        %v4078 = vpop.permute.xlu0 %4077
        %4081 = vset.pattern.permute.xlu0 0
        %4082 = vperm.xlu0 %4081, %v4056
        %v4083 = vpop.permute.xlu0 %4082
        %4086 = vset.pattern.permute.xlu0 0
        %4087 = vperm.xlu0 %4086, %v4057
        %v4088 = vpop.permute.xlu0 %4087
        %4091 = vset.pattern.permute.xlu0 0
        %4092 = vperm.xlu0 %4091, %v4058
        %v4093 = vpop.permute.xlu0 %4092
        %4096 = vset.pattern.permute.xlu0 0
        %4097 = vperm.xlu0 %4096, %v4059
        %v4098 = vpop.permute.xlu0 %4097
        %4101 = vset.pattern.permute.xlu0 0
        %4102 = vperm.xlu0 %4101, %v4060
        %v4103 = vpop.permute.xlu0 %4102
        %4106 = vset.pattern.permute.xlu0 0
        %4107 = vperm.xlu0 %4106, %v4061
        %v4108 = vpop.permute.xlu0 %4107
        %4111 = vset.pattern.permute.xlu0 0
        %4112 = vperm.xlu0 %4111, %v4062
        %v4113 = vpop.permute.xlu0 %4112
        %4116 = vset.pattern.permute.xlu0 0
        %4117 = vperm.xlu0 %4116, %v4063
        %v4118 = vpop.permute.xlu0 %4117
        %4121 = vset.pattern.permute.xlu0 0
        %4122 = vperm.xlu0 %4121, %v4064
        %v4123 = vpop.permute.xlu0 %4122
        %4126 = vset.pattern.permute.xlu0 0
        %4127 = vperm.xlu0 %4126, %v4065
        %v4128 = vpop.permute.xlu0 %4127
        %4131 = vset.pattern.permute.xlu0 0
        %4132 = vperm.xlu0 %4131, %v4066
        %v4133 = vpop.permute.xlu0 %4132
        %4136 = vset.pattern.permute.xlu0 0
        %4137 = vperm.xlu0 %4136, %v4067
        %v4138 = vpop.permute.xlu0 %4137
        %4141 = vset.pattern.permute.xlu0 0
        %4142 = vperm.xlu0 %4141, %v4068
        %v4143 = vpop.permute.xlu0 %4142
        %4146 = vset.pattern.permute.xlu0 0
        %4147 = vperm.xlu0 %4146, %v4069
        %v4148 = vpop.permute.xlu0 %4147
        %v4166 = vunpack.c.l.b16 %v4006
        %v4167 = vunpack.c.l.b16 %v4007
        %v4168 = vunpack.c.l.b16 %v4008
        %v4169 = vunpack.c.l.b16 %v4009
        %v4170 = vunpack.c.l.b16 %v4010
        %v4171 = vunpack.c.l.b16 %v4011
        %v4172 = vunpack.c.l.b16 %v4012
        %v4173 = vunpack.c.l.b16 %v4013
        %v4174 = vunpack.c.l.b16 %v4014
        %v4175 = vunpack.c.l.b16 %v4015
        %v4176 = vunpack.c.l.b16 %v4016
        %v4177 = vunpack.c.l.b16 %v4017
        %v4178 = vunpack.c.l.b16 %v4018
        %v4179 = vunpack.c.l.b16 %v4019
        %v4180 = vunpack.c.l.b16 %v4020
        %v4181 = vunpack.c.l.b16 %v4021
        %v4182 = vpack.c.b16 %v4167, %v4166
        %v4183 = vpack.c.b16 %v4169, %v4168
        %v4184 = vpack.c.b16 %v4171, %v4170
        %v4185 = vpack.c.b16 %v4173, %v4172
        %v4186 = vpack.c.b16 %v4175, %v4174
        %v4187 = vpack.c.b16 %v4177, %v4176
        %v4188 = vpack.c.b16 %v4179, %v4178
        %v4189 = vpack.c.b16 %v4181, %v4180
        %4198 = vmatpush.bf16.msra.mxu0 %v4050
        %4199 = vmatpush.bf16.msra.mxu0 %v4046
        %4200 = vmatpush.bf16.msra.mxu0 %v4042
        %4201 = vmatpush.bf16.msra.mxu0 %v4038
        %4202 = vmatpush.bf16.msra.mxu0 %v4034
        %4203 = vmatpush.bf16.msra.mxu0 %v4030
        %4204 = vmatpush.bf16.msra.mxu0 %v4026
        %4205 = vmatpush.bf16.msra.mxu0 %v4022
        %4206 = vmatmul.bf16.gmra.mxu0 %v4182
        %v4207 = vpop.f32.mrf.mxu0
        %v4208 = vadd.f32 %v4073, %v4207
        %v4209 = vpop.f32.mrf.mxu0
        %v4210 = vadd.f32 %v4078, %v4209
        %4211 = vmatmul.bf16.gmra.mxu0 %v4183
        %v4212 = vpop.f32.mrf.mxu0
        %v4213 = vadd.f32 %v4083, %v4212
        %v4214 = vpop.f32.mrf.mxu0
        %v4215 = vadd.f32 %v4088, %v4214
        %4216 = vmatmul.bf16.gmra.mxu0 %v4184
        %v4217 = vpop.f32.mrf.mxu0
        %v4218 = vadd.f32 %v4093, %v4217
        %v4219 = vpop.f32.mrf.mxu0
        %v4220 = vadd.f32 %v4098, %v4219
        %4221 = vmatmul.bf16.gmra.mxu0 %v4185
        %v4222 = vpop.f32.mrf.mxu0
        %v4223 = vadd.f32 %v4103, %v4222
        %v4224 = vpop.f32.mrf.mxu0
        %v4225 = vadd.f32 %v4108, %v4224
        %4226 = vmatmul.bf16.gmra.mxu0 %v4186
        %v4227 = vpop.f32.mrf.mxu0
        %v4228 = vadd.f32 %v4113, %v4227
        %v4229 = vpop.f32.mrf.mxu0
        %v4230 = vadd.f32 %v4118, %v4229
        %4231 = vmatmul.bf16.gmra.mxu0 %v4187
        %v4232 = vpop.f32.mrf.mxu0
        %v4233 = vadd.f32 %v4123, %v4232
        %v4234 = vpop.f32.mrf.mxu0
        %v4235 = vadd.f32 %v4128, %v4234
        %4236 = vmatmul.bf16.gmra.mxu0 %v4188
        %v4237 = vpop.f32.mrf.mxu0
        %v4238 = vadd.f32 %v4133, %v4237
        %v4239 = vpop.f32.mrf.mxu0
        %v4240 = vadd.f32 %v4138, %v4239
        %4241 = vmatmul.bf16.gmra.mxu0 %v4189
        %v4242 = vpop.f32.mrf.mxu0
        %v4243 = vadd.f32 %v4143, %v4242
        %v4244 = vpop.f32.mrf.mxu0
        %v4245 = vadd.f32 %v4148, %v4244
        %4246 = vdwg.mxu0
        %4247 = vmatpush.bf16.msra.mxu0 %v4051
        %4248 = vmatpush.bf16.msra.mxu0 %v4047
        %4249 = vmatpush.bf16.msra.mxu0 %v4043
        %4250 = vmatpush.bf16.msra.mxu0 %v4039
        %4251 = vmatpush.bf16.msra.mxu0 %v4035
        %4252 = vmatpush.bf16.msra.mxu0 %v4031
        %4253 = vmatpush.bf16.msra.mxu0 %v4027
        %4254 = vmatpush.bf16.msra.mxu0 %v4023
        %4255 = vmatmul.bf16.gmra.mxu0 %v4182
        %v4256 = vpop.f32.mrf.mxu0
        %v4257 = vadd.f32 %v4073, %v4256
        %v4258 = vpop.f32.mrf.mxu0
        %v4259 = vadd.f32 %v4078, %v4258
        %4260 = vmatmul.bf16.gmra.mxu0 %v4183
        %v4261 = vpop.f32.mrf.mxu0
        %v4262 = vadd.f32 %v4083, %v4261
        %v4263 = vpop.f32.mrf.mxu0
        %v4264 = vadd.f32 %v4088, %v4263
        %4265 = vmatmul.bf16.gmra.mxu0 %v4184
        %v4266 = vpop.f32.mrf.mxu0
        %v4267 = vadd.f32 %v4093, %v4266
        %v4268 = vpop.f32.mrf.mxu0
        %v4269 = vadd.f32 %v4098, %v4268
        %4270 = vmatmul.bf16.gmra.mxu0 %v4185
        %v4271 = vpop.f32.mrf.mxu0
        %v4272 = vadd.f32 %v4103, %v4271
        %v4273 = vpop.f32.mrf.mxu0
        %v4274 = vadd.f32 %v4108, %v4273
        %4275 = vmatmul.bf16.gmra.mxu0 %v4186
        %v4276 = vpop.f32.mrf.mxu0
        %v4277 = vadd.f32 %v4113, %v4276
        %v4278 = vpop.f32.mrf.mxu0
        %v4279 = vadd.f32 %v4118, %v4278
        %4280 = vmatmul.bf16.gmra.mxu0 %v4187
        %v4281 = vpop.f32.mrf.mxu0
        %v4282 = vadd.f32 %v4123, %v4281
        %v4283 = vpop.f32.mrf.mxu0
        %v4284 = vadd.f32 %v4128, %v4283
        %4285 = vmatmul.bf16.gmra.mxu0 %v4188
        %v4286 = vpop.f32.mrf.mxu0
        %v4287 = vadd.f32 %v4133, %v4286
        %v4288 = vpop.f32.mrf.mxu0
        %v4289 = vadd.f32 %v4138, %v4288
        %4290 = vmatmul.bf16.gmra.mxu0 %v4189
        %v4291 = vpop.f32.mrf.mxu0
        %v4292 = vadd.f32 %v4143, %v4291
        %v4293 = vpop.f32.mrf.mxu0
        %v4294 = vadd.f32 %v4148, %v4293
        %4295 = vdwg.mxu0
        %4296 = vmatpush.bf16.msra.mxu0 %v4052
        %4297 = vmatpush.bf16.msra.mxu0 %v4048
        %4298 = vmatpush.bf16.msra.mxu0 %v4044
        %4299 = vmatpush.bf16.msra.mxu0 %v4040
        %4300 = vmatpush.bf16.msra.mxu0 %v4036
        %4301 = vmatpush.bf16.msra.mxu0 %v4032
        %4302 = vmatpush.bf16.msra.mxu0 %v4028
        %4303 = vmatpush.bf16.msra.mxu0 %v4024
        %4304 = vmatmul.bf16.gmra.mxu0 %v4182
        %v4305 = vpop.f32.mrf.mxu0
        %v4306 = vadd.f32 %v4073, %v4305
        %v4307 = vpop.f32.mrf.mxu0
        %v4308 = vadd.f32 %v4078, %v4307
        %4309 = vmatmul.bf16.gmra.mxu0 %v4183
        %v4310 = vpop.f32.mrf.mxu0
        %v4311 = vadd.f32 %v4083, %v4310
        %v4312 = vpop.f32.mrf.mxu0
        %v4313 = vadd.f32 %v4088, %v4312
        %4314 = vmatmul.bf16.gmra.mxu0 %v4184
        %v4315 = vpop.f32.mrf.mxu0
        %v4316 = vadd.f32 %v4093, %v4315
        %v4317 = vpop.f32.mrf.mxu0
        %v4318 = vadd.f32 %v4098, %v4317
        %4319 = vmatmul.bf16.gmra.mxu0 %v4185
        %v4320 = vpop.f32.mrf.mxu0
        %v4321 = vadd.f32 %v4103, %v4320
        %v4322 = vpop.f32.mrf.mxu0
        %v4323 = vadd.f32 %v4108, %v4322
        %4324 = vmatmul.bf16.gmra.mxu0 %v4186
        %v4325 = vpop.f32.mrf.mxu0
        %v4326 = vadd.f32 %v4113, %v4325
        %v4327 = vpop.f32.mrf.mxu0
        %v4328 = vadd.f32 %v4118, %v4327
        %4329 = vmatmul.bf16.gmra.mxu0 %v4187
        %v4330 = vpop.f32.mrf.mxu0
        %v4331 = vadd.f32 %v4123, %v4330
        %v4332 = vpop.f32.mrf.mxu0
        %v4333 = vadd.f32 %v4128, %v4332
        %4334 = vmatmul.bf16.gmra.mxu0 %v4188
        %v4335 = vpop.f32.mrf.mxu0
        %v4336 = vadd.f32 %v4133, %v4335
        %v4337 = vpop.f32.mrf.mxu0
        %v4338 = vadd.f32 %v4138, %v4337
        %4339 = vmatmul.bf16.gmra.mxu0 %v4189
        %v4340 = vpop.f32.mrf.mxu0
        %v4341 = vadd.f32 %v4143, %v4340
        %v4342 = vpop.f32.mrf.mxu0
        %v4343 = vadd.f32 %v4148, %v4342
        %4344 = vdwg.mxu0
        %4345 = vmatpush.bf16.msra.mxu0 %v4053
        %4346 = vmatpush.bf16.msra.mxu0 %v4049
        %4347 = vmatpush.bf16.msra.mxu0 %v4045
        %4348 = vmatpush.bf16.msra.mxu0 %v4041
        %4349 = vmatpush.bf16.msra.mxu0 %v4037
        %4350 = vmatpush.bf16.msra.mxu0 %v4033
        %4351 = vmatpush.bf16.msra.mxu0 %v4029
        %4352 = vmatpush.bf16.msra.mxu0 %v4025
        %4353 = vmatmul.bf16.gmra.mxu0 %v4182
        %v4354 = vpop.f32.mrf.mxu0
        %v4355 = vadd.f32 %v4073, %v4354
        %v4356 = vpop.f32.mrf.mxu0
        %v4357 = vadd.f32 %v4078, %v4356
        %4358 = vmatmul.bf16.gmra.mxu0 %v4183
        %v4359 = vpop.f32.mrf.mxu0
        %v4360 = vadd.f32 %v4083, %v4359
        %v4361 = vpop.f32.mrf.mxu0
        %v4362 = vadd.f32 %v4088, %v4361
        %4363 = vmatmul.bf16.gmra.mxu0 %v4184
        %v4364 = vpop.f32.mrf.mxu0
        %v4365 = vadd.f32 %v4093, %v4364
        %v4366 = vpop.f32.mrf.mxu0
        %v4367 = vadd.f32 %v4098, %v4366
        %4368 = vmatmul.bf16.gmra.mxu0 %v4185
        %v4369 = vpop.f32.mrf.mxu0
        %v4370 = vadd.f32 %v4103, %v4369
        %v4371 = vpop.f32.mrf.mxu0
        %v4372 = vadd.f32 %v4108, %v4371
        %4373 = vmatmul.bf16.gmra.mxu0 %v4186
        %v4374 = vpop.f32.mrf.mxu0
        %v4375 = vadd.f32 %v4113, %v4374
        %v4376 = vpop.f32.mrf.mxu0
        %v4377 = vadd.f32 %v4118, %v4376
        %4378 = vmatmul.bf16.gmra.mxu0 %v4187
        %v4379 = vpop.f32.mrf.mxu0
        %v4380 = vadd.f32 %v4123, %v4379
        %v4381 = vpop.f32.mrf.mxu0
        %v4382 = vadd.f32 %v4128, %v4381
        %4383 = vmatmul.bf16.gmra.mxu0 %v4188
        %v4384 = vpop.f32.mrf.mxu0
        %v4385 = vadd.f32 %v4133, %v4384
        %v4386 = vpop.f32.mrf.mxu0
        %v4387 = vadd.f32 %v4138, %v4386
        %4388 = vmatmul.bf16.gmra.mxu0 %v4189
        %v4389 = vpop.f32.mrf.mxu0
        %v4390 = vadd.f32 %v4143, %v4389
        %v4391 = vpop.f32.mrf.mxu0
        %v4392 = vadd.f32 %v4148, %v4391
        %4393 = vdwg.mxu0
        %v4394 = vmax.f32 %v4208, 0.0
        %v4395 = vmax.f32 %v4257, 0.0
        %v4396 = vmax.f32 %v4306, 0.0
        %v4397 = vmax.f32 %v4355, 0.0
        %v4398 = vmax.f32 %v4210, 0.0
        %v4399 = vmax.f32 %v4259, 0.0
        %v4400 = vmax.f32 %v4308, 0.0
        %v4401 = vmax.f32 %v4357, 0.0
        %v4402 = vmax.f32 %v4213, 0.0
        %v4403 = vmax.f32 %v4262, 0.0
        %v4404 = vmax.f32 %v4311, 0.0
        %v4405 = vmax.f32 %v4360, 0.0
        %v4406 = vmax.f32 %v4215, 0.0
        %v4407 = vmax.f32 %v4264, 0.0
        %v4408 = vmax.f32 %v4313, 0.0
        %v4409 = vmax.f32 %v4362, 0.0
        %v4410 = vmax.f32 %v4218, 0.0
        %v4411 = vmax.f32 %v4267, 0.0
        %v4412 = vmax.f32 %v4316, 0.0
        %v4413 = vmax.f32 %v4365, 0.0
        %v4414 = vmax.f32 %v4220, 0.0
        %v4415 = vmax.f32 %v4269, 0.0
        %v4416 = vmax.f32 %v4318, 0.0
        %v4417 = vmax.f32 %v4367, 0.0
        %v4418 = vmax.f32 %v4223, 0.0
        %v4419 = vmax.f32 %v4272, 0.0
        %v4420 = vmax.f32 %v4321, 0.0
        %v4421 = vmax.f32 %v4370, 0.0
        %v4422 = vmax.f32 %v4225, 0.0
        %v4423 = vmax.f32 %v4274, 0.0
        %v4424 = vmax.f32 %v4323, 0.0
        %v4425 = vmax.f32 %v4372, 0.0
        %v4426 = vmax.f32 %v4228, 0.0
        %v4427 = vmax.f32 %v4277, 0.0
        %v4428 = vmax.f32 %v4326, 0.0
        %v4429 = vmax.f32 %v4375, 0.0
        %v4430 = vmax.f32 %v4230, 0.0
        %v4431 = vmax.f32 %v4279, 0.0
        %v4432 = vmax.f32 %v4328, 0.0
        %v4433 = vmax.f32 %v4377, 0.0
        %v4434 = vmax.f32 %v4233, 0.0
        %v4435 = vmax.f32 %v4282, 0.0
        %v4436 = vmax.f32 %v4331, 0.0
        %v4437 = vmax.f32 %v4380, 0.0
        %v4438 = vmax.f32 %v4235, 0.0
        %v4439 = vmax.f32 %v4284, 0.0
        %v4440 = vmax.f32 %v4333, 0.0
        %v4441 = vmax.f32 %v4382, 0.0
        %v4442 = vmax.f32 %v4238, 0.0
        %v4443 = vmax.f32 %v4287, 0.0
        %v4444 = vmax.f32 %v4336, 0.0
        %v4445 = vmax.f32 %v4385, 0.0
        %v4446 = vmax.f32 %v4240, 0.0
        %v4447 = vmax.f32 %v4289, 0.0
        %v4448 = vmax.f32 %v4338, 0.0
        %v4449 = vmax.f32 %v4387, 0.0
        %v4450 = vmax.f32 %v4243, 0.0
        %v4451 = vmax.f32 %v4292, 0.0
        %v4452 = vmax.f32 %v4341, 0.0
        %v4453 = vmax.f32 %v4390, 0.0
        %v4454 = vmax.f32 %v4245, 0.0
        %v4455 = vmax.f32 %v4294, 0.0
        %v4456 = vmax.f32 %v4343, 0.0
        %v4457 = vmax.f32 %v4392, 0.0
        %v4458 = vld [vmem:[%s17] sm:$0xf]
        %v4459 = vld [vmem:[%s17 + $0x4] sm:$0xf]
        %v4460 = vld [vmem:[%s17 + $0x8] sm:$0xf]
        %v4461 = vld [vmem:[%s17 + $0xc] sm:$0xf]
        %v4462 = vld [vmem:[%s17 + $0x10] sm:$0xf]
        %v4463 = vld [vmem:[%s17 + $0x14] sm:$0xf]
        %v4464 = vld [vmem:[%s17 + $0x18] sm:$0xf]
        %v4465 = vld [vmem:[%s17 + $0x1c] sm:$0xf]
        %v4466 = vld [vmem:[%s17 + $0x20] sm:$0xf]
        %v4467 = vld [vmem:[%s17 + $0x24] sm:$0xf]
        %v4468 = vld [vmem:[%s17 + $0x28] sm:$0xf]
        %v4469 = vld [vmem:[%s17 + $0x2c] sm:$0xf]
        %v4470 = vld [vmem:[%s17 + $0x30] sm:$0xf]
        %v4471 = vld [vmem:[%s17 + $0x34] sm:$0xf]
        %v4472 = vld [vmem:[%s17 + $0x38] sm:$0xf]
        %v4473 = vld [vmem:[%s17 + $0x3c] sm:$0xf]
        %v4474 = vpack.c.bf16 %v4398, %v4394
        %v4475 = vpack.c.bf16 %v4399, %v4395
        %v4476 = vpack.c.bf16 %v4400, %v4396
        %v4477 = vpack.c.bf16 %v4401, %v4397
        %v4478 = vpack.c.bf16 %v4406, %v4402
        %v4479 = vpack.c.bf16 %v4407, %v4403
        %v4480 = vpack.c.bf16 %v4408, %v4404
        %v4481 = vpack.c.bf16 %v4409, %v4405
        %v4482 = vpack.c.bf16 %v4414, %v4410
        %v4483 = vpack.c.bf16 %v4415, %v4411
        %v4484 = vpack.c.bf16 %v4416, %v4412
        %v4485 = vpack.c.bf16 %v4417, %v4413
        %v4486 = vpack.c.bf16 %v4422, %v4418
        %v4487 = vpack.c.bf16 %v4423, %v4419
        %v4488 = vpack.c.bf16 %v4424, %v4420
        %v4489 = vpack.c.bf16 %v4425, %v4421
        %v4490 = vpack.c.bf16 %v4430, %v4426
        %v4491 = vpack.c.bf16 %v4431, %v4427
        %v4492 = vpack.c.bf16 %v4432, %v4428
        %v4493 = vpack.c.bf16 %v4433, %v4429
        %v4494 = vpack.c.bf16 %v4438, %v4434
        %v4495 = vpack.c.bf16 %v4439, %v4435
        %v4496 = vpack.c.bf16 %v4440, %v4436
        %v4497 = vpack.c.bf16 %v4441, %v4437
        %v4498 = vpack.c.bf16 %v4446, %v4442
        %v4499 = vpack.c.bf16 %v4447, %v4443
        %v4500 = vpack.c.bf16 %v4448, %v4444
        %v4501 = vpack.c.bf16 %v4449, %v4445
        %v4502 = vpack.c.bf16 %v4454, %v4450
        %v4503 = vpack.c.bf16 %v4455, %v4451
        %v4504 = vpack.c.bf16 %v4456, %v4452
        %v4505 = vpack.c.bf16 %v4457, %v4453
        %v4506 = vld [vmem:[%s18] sm:$0xff]
        %v4507 = vld [vmem:[%s18 + $0x8] sm:$0xff]
        %v4508 = vld [vmem:[%s18 + $0x10] sm:$0xff]
        %v4509 = vld [vmem:[%s18 + $0x18] sm:$0xff]
        %v4510 = vld [vmem:[%s18 + $0x20] sm:$0xff]
        %v4511 = vld [vmem:[%s18 + $0x28] sm:$0xff]
        %v4512 = vld [vmem:[%s18 + $0x30] sm:$0xff]
        %v4513 = vld [vmem:[%s18 + $0x38] sm:$0xff]
        %v4514 = vld [vmem:[%s18 + $0x40] sm:$0xff]
        %v4515 = vld [vmem:[%s18 + $0x48] sm:$0xff]
        %v4516 = vld [vmem:[%s18 + $0x50] sm:$0xff]
        %v4517 = vld [vmem:[%s18 + $0x58] sm:$0xff]
        %v4518 = vld [vmem:[%s18 + $0x60] sm:$0xff]
        %v4519 = vld [vmem:[%s18 + $0x68] sm:$0xff]
        %v4520 = vld [vmem:[%s18 + $0x70] sm:$0xff]
        %v4521 = vld [vmem:[%s18 + $0x78] sm:$0xff]
        %4523 = vset.pattern.permute.xlu0 0
        %4524 = vperm.xlu0 %4523, %v4506
        %v4525 = vpop.permute.xlu0 %4524
        %4528 = vset.pattern.permute.xlu0 0
        %4529 = vperm.xlu0 %4528, %v4507
        %v4530 = vpop.permute.xlu0 %4529
        %4533 = vset.pattern.permute.xlu0 0
        %4534 = vperm.xlu0 %4533, %v4508
        %v4535 = vpop.permute.xlu0 %4534
        %4538 = vset.pattern.permute.xlu0 0
        %4539 = vperm.xlu0 %4538, %v4509
        %v4540 = vpop.permute.xlu0 %4539
        %4543 = vset.pattern.permute.xlu0 0
        %4544 = vperm.xlu0 %4543, %v4510
        %v4545 = vpop.permute.xlu0 %4544
        %4548 = vset.pattern.permute.xlu0 0
        %4549 = vperm.xlu0 %4548, %v4511
        %v4550 = vpop.permute.xlu0 %4549
        %4553 = vset.pattern.permute.xlu0 0
        %4554 = vperm.xlu0 %4553, %v4512
        %v4555 = vpop.permute.xlu0 %4554
        %4558 = vset.pattern.permute.xlu0 0
        %4559 = vperm.xlu0 %4558, %v4513
        %v4560 = vpop.permute.xlu0 %4559
        %4563 = vset.pattern.permute.xlu0 0
        %4564 = vperm.xlu0 %4563, %v4514
        %v4565 = vpop.permute.xlu0 %4564
        %4568 = vset.pattern.permute.xlu0 0
        %4569 = vperm.xlu0 %4568, %v4515
        %v4570 = vpop.permute.xlu0 %4569
        %4573 = vset.pattern.permute.xlu0 0
        %4574 = vperm.xlu0 %4573, %v4516
        %v4575 = vpop.permute.xlu0 %4574
        %4578 = vset.pattern.permute.xlu0 0
        %4579 = vperm.xlu0 %4578, %v4517
        %v4580 = vpop.permute.xlu0 %4579
        %4583 = vset.pattern.permute.xlu0 0
        %4584 = vperm.xlu0 %4583, %v4518
        %v4585 = vpop.permute.xlu0 %4584
        %4588 = vset.pattern.permute.xlu0 0
        %4589 = vperm.xlu0 %4588, %v4519
        %v4590 = vpop.permute.xlu0 %4589
        %4593 = vset.pattern.permute.xlu0 0
        %4594 = vperm.xlu0 %4593, %v4520
        %v4595 = vpop.permute.xlu0 %4594
        %4598 = vset.pattern.permute.xlu0 0
        %4599 = vperm.xlu0 %4598, %v4521
        %v4600 = vpop.permute.xlu0 %4599
        %v4618 = vunpack.c.l.b16 %v4458
        %v4619 = vunpack.c.l.b16 %v4459
        %v4620 = vunpack.c.l.b16 %v4460
        %v4621 = vunpack.c.l.b16 %v4461
        %v4622 = vunpack.c.l.b16 %v4462
        %v4623 = vunpack.c.l.b16 %v4463
        %v4624 = vunpack.c.l.b16 %v4464
        %v4625 = vunpack.c.l.b16 %v4465
        %v4626 = vunpack.c.l.b16 %v4466
        %v4627 = vunpack.c.l.b16 %v4467
        %v4628 = vunpack.c.l.b16 %v4468
        %v4629 = vunpack.c.l.b16 %v4469
        %v4630 = vunpack.c.l.b16 %v4470
        %v4631 = vunpack.c.l.b16 %v4471
        %v4632 = vunpack.c.l.b16 %v4472
        %v4633 = vunpack.c.l.b16 %v4473
        %v4634 = vpack.c.b16 %v4619, %v4618
        %v4635 = vpack.c.b16 %v4621, %v4620
        %v4636 = vpack.c.b16 %v4623, %v4622
        %v4637 = vpack.c.b16 %v4625, %v4624
        %v4638 = vpack.c.b16 %v4627, %v4626
        %v4639 = vpack.c.b16 %v4629, %v4628
        %v4640 = vpack.c.b16 %v4631, %v4630
        %v4641 = vpack.c.b16 %v4633, %v4632
        %4650 = vmatpush.bf16.msra.mxu0 %v4502
        %4651 = vmatpush.bf16.msra.mxu0 %v4498
        %4652 = vmatpush.bf16.msra.mxu0 %v4494
        %4653 = vmatpush.bf16.msra.mxu0 %v4490
        %4654 = vmatpush.bf16.msra.mxu0 %v4486
        %4655 = vmatpush.bf16.msra.mxu0 %v4482
        %4656 = vmatpush.bf16.msra.mxu0 %v4478
        %4657 = vmatpush.bf16.msra.mxu0 %v4474
        %4658 = vmatmul.bf16.gmra.mxu0 %v4634
        %v4659 = vpop.f32.mrf.mxu0
        %v4660 = vadd.f32 %v4525, %v4659
        %v4661 = vpop.f32.mrf.mxu0
        %v4662 = vadd.f32 %v4530, %v4661
        %4663 = vmatmul.bf16.gmra.mxu0 %v4635
        %v4664 = vpop.f32.mrf.mxu0
        %v4665 = vadd.f32 %v4535, %v4664
        %v4666 = vpop.f32.mrf.mxu0
        %v4667 = vadd.f32 %v4540, %v4666
        %4668 = vmatmul.bf16.gmra.mxu0 %v4636
        %v4669 = vpop.f32.mrf.mxu0
        %v4670 = vadd.f32 %v4545, %v4669
        %v4671 = vpop.f32.mrf.mxu0
        %v4672 = vadd.f32 %v4550, %v4671
        %4673 = vmatmul.bf16.gmra.mxu0 %v4637
        %v4674 = vpop.f32.mrf.mxu0
        %v4675 = vadd.f32 %v4555, %v4674
        %v4676 = vpop.f32.mrf.mxu0
        %v4677 = vadd.f32 %v4560, %v4676
        %4678 = vmatmul.bf16.gmra.mxu0 %v4638
        %v4679 = vpop.f32.mrf.mxu0
        %v4680 = vadd.f32 %v4565, %v4679
        %v4681 = vpop.f32.mrf.mxu0
        %v4682 = vadd.f32 %v4570, %v4681
        %4683 = vmatmul.bf16.gmra.mxu0 %v4639
        %v4684 = vpop.f32.mrf.mxu0
        %v4685 = vadd.f32 %v4575, %v4684
        %v4686 = vpop.f32.mrf.mxu0
        %v4687 = vadd.f32 %v4580, %v4686
        %4688 = vmatmul.bf16.gmra.mxu0 %v4640
        %v4689 = vpop.f32.mrf.mxu0
        %v4690 = vadd.f32 %v4585, %v4689
        %v4691 = vpop.f32.mrf.mxu0
        %v4692 = vadd.f32 %v4590, %v4691
        %4693 = vmatmul.bf16.gmra.mxu0 %v4641
        %v4694 = vpop.f32.mrf.mxu0
        %v4695 = vadd.f32 %v4595, %v4694
        %v4696 = vpop.f32.mrf.mxu0
        %v4697 = vadd.f32 %v4600, %v4696
        %4698 = vdwg.mxu0
        %4699 = vmatpush.bf16.msra.mxu0 %v4503
        %4700 = vmatpush.bf16.msra.mxu0 %v4499
        %4701 = vmatpush.bf16.msra.mxu0 %v4495
        %4702 = vmatpush.bf16.msra.mxu0 %v4491
        %4703 = vmatpush.bf16.msra.mxu0 %v4487
        %4704 = vmatpush.bf16.msra.mxu0 %v4483
        %4705 = vmatpush.bf16.msra.mxu0 %v4479
        %4706 = vmatpush.bf16.msra.mxu0 %v4475
        %4707 = vmatmul.bf16.gmra.mxu0 %v4634
        %v4708 = vpop.f32.mrf.mxu0
        %v4709 = vadd.f32 %v4525, %v4708
        %v4710 = vpop.f32.mrf.mxu0
        %v4711 = vadd.f32 %v4530, %v4710
        %4712 = vmatmul.bf16.gmra.mxu0 %v4635
        %v4713 = vpop.f32.mrf.mxu0
        %v4714 = vadd.f32 %v4535, %v4713
        %v4715 = vpop.f32.mrf.mxu0
        %v4716 = vadd.f32 %v4540, %v4715
        %4717 = vmatmul.bf16.gmra.mxu0 %v4636
        %v4718 = vpop.f32.mrf.mxu0
        %v4719 = vadd.f32 %v4545, %v4718
        %v4720 = vpop.f32.mrf.mxu0
        %v4721 = vadd.f32 %v4550, %v4720
        %4722 = vmatmul.bf16.gmra.mxu0 %v4637
        %v4723 = vpop.f32.mrf.mxu0
        %v4724 = vadd.f32 %v4555, %v4723
        %v4725 = vpop.f32.mrf.mxu0
        %v4726 = vadd.f32 %v4560, %v4725
        %4727 = vmatmul.bf16.gmra.mxu0 %v4638
        %v4728 = vpop.f32.mrf.mxu0
        %v4729 = vadd.f32 %v4565, %v4728
        %v4730 = vpop.f32.mrf.mxu0
        %v4731 = vadd.f32 %v4570, %v4730
        %4732 = vmatmul.bf16.gmra.mxu0 %v4639
        %v4733 = vpop.f32.mrf.mxu0
        %v4734 = vadd.f32 %v4575, %v4733
        %v4735 = vpop.f32.mrf.mxu0
        %v4736 = vadd.f32 %v4580, %v4735
        %4737 = vmatmul.bf16.gmra.mxu0 %v4640
        %v4738 = vpop.f32.mrf.mxu0
        %v4739 = vadd.f32 %v4585, %v4738
        %v4740 = vpop.f32.mrf.mxu0
        %v4741 = vadd.f32 %v4590, %v4740
        %4742 = vmatmul.bf16.gmra.mxu0 %v4641
        %v4743 = vpop.f32.mrf.mxu0
        %v4744 = vadd.f32 %v4595, %v4743
        %v4745 = vpop.f32.mrf.mxu0
        %v4746 = vadd.f32 %v4600, %v4745
        %4747 = vdwg.mxu0
        %4748 = vmatpush.bf16.msra.mxu0 %v4504
        %4749 = vmatpush.bf16.msra.mxu0 %v4500
        %4750 = vmatpush.bf16.msra.mxu0 %v4496
        %4751 = vmatpush.bf16.msra.mxu0 %v4492
        %4752 = vmatpush.bf16.msra.mxu0 %v4488
        %4753 = vmatpush.bf16.msra.mxu0 %v4484
        %4754 = vmatpush.bf16.msra.mxu0 %v4480
        %4755 = vmatpush.bf16.msra.mxu0 %v4476
        %4756 = vmatmul.bf16.gmra.mxu0 %v4634
        %v4757 = vpop.f32.mrf.mxu0
        %v4758 = vadd.f32 %v4525, %v4757
        %v4759 = vpop.f32.mrf.mxu0
        %v4760 = vadd.f32 %v4530, %v4759
        %4761 = vmatmul.bf16.gmra.mxu0 %v4635
        %v4762 = vpop.f32.mrf.mxu0
        %v4763 = vadd.f32 %v4535, %v4762
        %v4764 = vpop.f32.mrf.mxu0
        %v4765 = vadd.f32 %v4540, %v4764
        %4766 = vmatmul.bf16.gmra.mxu0 %v4636
        %v4767 = vpop.f32.mrf.mxu0
        %v4768 = vadd.f32 %v4545, %v4767
        %v4769 = vpop.f32.mrf.mxu0
        %v4770 = vadd.f32 %v4550, %v4769
        %4771 = vmatmul.bf16.gmra.mxu0 %v4637
        %v4772 = vpop.f32.mrf.mxu0
        %v4773 = vadd.f32 %v4555, %v4772
        %v4774 = vpop.f32.mrf.mxu0
        %v4775 = vadd.f32 %v4560, %v4774
        %4776 = vmatmul.bf16.gmra.mxu0 %v4638
        %v4777 = vpop.f32.mrf.mxu0
        %v4778 = vadd.f32 %v4565, %v4777
        %v4779 = vpop.f32.mrf.mxu0
        %v4780 = vadd.f32 %v4570, %v4779
        %4781 = vmatmul.bf16.gmra.mxu0 %v4639
        %v4782 = vpop.f32.mrf.mxu0
        %v4783 = vadd.f32 %v4575, %v4782
        %v4784 = vpop.f32.mrf.mxu0
        %v4785 = vadd.f32 %v4580, %v4784
        %4786 = vmatmul.bf16.gmra.mxu0 %v4640
        %v4787 = vpop.f32.mrf.mxu0
        %v4788 = vadd.f32 %v4585, %v4787
        %v4789 = vpop.f32.mrf.mxu0
        %v4790 = vadd.f32 %v4590, %v4789
        %4791 = vmatmul.bf16.gmra.mxu0 %v4641
        %v4792 = vpop.f32.mrf.mxu0
        %v4793 = vadd.f32 %v4595, %v4792
        %v4794 = vpop.f32.mrf.mxu0
        %v4795 = vadd.f32 %v4600, %v4794
        %4796 = vdwg.mxu0
        %4797 = vmatpush.bf16.msra.mxu0 %v4505
        %4798 = vmatpush.bf16.msra.mxu0 %v4501
        %4799 = vmatpush.bf16.msra.mxu0 %v4497
        %4800 = vmatpush.bf16.msra.mxu0 %v4493
        %4801 = vmatpush.bf16.msra.mxu0 %v4489
        %4802 = vmatpush.bf16.msra.mxu0 %v4485
        %4803 = vmatpush.bf16.msra.mxu0 %v4481
        %4804 = vmatpush.bf16.msra.mxu0 %v4477
        %4805 = vmatmul.bf16.gmra.mxu0 %v4634
        %v4806 = vpop.f32.mrf.mxu0
        %v4807 = vadd.f32 %v4525, %v4806
        %v4808 = vpop.f32.mrf.mxu0
        %v4809 = vadd.f32 %v4530, %v4808
        %4810 = vmatmul.bf16.gmra.mxu0 %v4635
        %v4811 = vpop.f32.mrf.mxu0
        %v4812 = vadd.f32 %v4535, %v4811
        %v4813 = vpop.f32.mrf.mxu0
        %v4814 = vadd.f32 %v4540, %v4813
        %4815 = vmatmul.bf16.gmra.mxu0 %v4636
        %v4816 = vpop.f32.mrf.mxu0
        %v4817 = vadd.f32 %v4545, %v4816
        %v4818 = vpop.f32.mrf.mxu0
        %v4819 = vadd.f32 %v4550, %v4818
        %4820 = vmatmul.bf16.gmra.mxu0 %v4637
        %v4821 = vpop.f32.mrf.mxu0
        %v4822 = vadd.f32 %v4555, %v4821
        %v4823 = vpop.f32.mrf.mxu0
        %v4824 = vadd.f32 %v4560, %v4823
        %4825 = vmatmul.bf16.gmra.mxu0 %v4638
        %v4826 = vpop.f32.mrf.mxu0
        %v4827 = vadd.f32 %v4565, %v4826
        %v4828 = vpop.f32.mrf.mxu0
        %v4829 = vadd.f32 %v4570, %v4828
        %4830 = vmatmul.bf16.gmra.mxu0 %v4639
        %v4831 = vpop.f32.mrf.mxu0
        %v4832 = vadd.f32 %v4575, %v4831
        %v4833 = vpop.f32.mrf.mxu0
        %v4834 = vadd.f32 %v4580, %v4833
        %4835 = vmatmul.bf16.gmra.mxu0 %v4640
        %v4836 = vpop.f32.mrf.mxu0
        %v4837 = vadd.f32 %v4585, %v4836
        %v4838 = vpop.f32.mrf.mxu0
        %v4839 = vadd.f32 %v4590, %v4838
        %4840 = vmatmul.bf16.gmra.mxu0 %v4641
        %v4841 = vpop.f32.mrf.mxu0
        %v4842 = vadd.f32 %v4595, %v4841
        %v4843 = vpop.f32.mrf.mxu0
        %v4844 = vadd.f32 %v4600, %v4843
        %4845 = vdwg.mxu0
        %v4846 = vld [vmem:[%s19] sm:$0xff]
        %v4847 = vld [vmem:[%s19 + $0x8] sm:$0xff]
        %v4848 = vld [vmem:[%s19 + $0x10] sm:$0xff]
        %v4849 = vld [vmem:[%s19 + $0x18] sm:$0xff]
        %v4850 = vld [vmem:[%s19 + $0x20] sm:$0xff]
        %v4851 = vld [vmem:[%s19 + $0x28] sm:$0xff]
        %v4852 = vld [vmem:[%s19 + $0x30] sm:$0xff]
        %v4853 = vld [vmem:[%s19 + $0x38] sm:$0xff]
        %v4854 = vld [vmem:[%s19 + $0x40] sm:$0xff]
        %v4855 = vld [vmem:[%s19 + $0x48] sm:$0xff]
        %v4856 = vld [vmem:[%s19 + $0x50] sm:$0xff]
        %v4857 = vld [vmem:[%s19 + $0x58] sm:$0xff]
        %v4858 = vld [vmem:[%s19 + $0x60] sm:$0xff]
        %v4859 = vld [vmem:[%s19 + $0x68] sm:$0xff]
        %v4860 = vld [vmem:[%s19 + $0x70] sm:$0xff]
        %v4861 = vld [vmem:[%s19 + $0x78] sm:$0xff]
        %4863 = vset.pattern.permute.xlu0 0
        %4864 = vperm.xlu0 %4863, %v4846
        %v4865 = vpop.permute.xlu0 %4864
        %4868 = vset.pattern.permute.xlu0 0
        %4869 = vperm.xlu0 %4868, %v4847
        %v4870 = vpop.permute.xlu0 %4869
        %4873 = vset.pattern.permute.xlu0 0
        %4874 = vperm.xlu0 %4873, %v4848
        %v4875 = vpop.permute.xlu0 %4874
        %4878 = vset.pattern.permute.xlu0 0
        %4879 = vperm.xlu0 %4878, %v4849
        %v4880 = vpop.permute.xlu0 %4879
        %4883 = vset.pattern.permute.xlu0 0
        %4884 = vperm.xlu0 %4883, %v4850
        %v4885 = vpop.permute.xlu0 %4884
        %4888 = vset.pattern.permute.xlu0 0
        %4889 = vperm.xlu0 %4888, %v4851
        %v4890 = vpop.permute.xlu0 %4889
        %4893 = vset.pattern.permute.xlu0 0
        %4894 = vperm.xlu0 %4893, %v4852
        %v4895 = vpop.permute.xlu0 %4894
        %4898 = vset.pattern.permute.xlu0 0
        %4899 = vperm.xlu0 %4898, %v4853
        %v4900 = vpop.permute.xlu0 %4899
        %4903 = vset.pattern.permute.xlu0 0
        %4904 = vperm.xlu0 %4903, %v4854
        %v4905 = vpop.permute.xlu0 %4904
        %4908 = vset.pattern.permute.xlu0 0
        %4909 = vperm.xlu0 %4908, %v4855
        %v4910 = vpop.permute.xlu0 %4909
        %4913 = vset.pattern.permute.xlu0 0
        %4914 = vperm.xlu0 %4913, %v4856
        %v4915 = vpop.permute.xlu0 %4914
        %4918 = vset.pattern.permute.xlu0 0
        %4919 = vperm.xlu0 %4918, %v4857
        %v4920 = vpop.permute.xlu0 %4919
        %4923 = vset.pattern.permute.xlu0 0
        %4924 = vperm.xlu0 %4923, %v4858
        %v4925 = vpop.permute.xlu0 %4924
        %4928 = vset.pattern.permute.xlu0 0
        %4929 = vperm.xlu0 %4928, %v4859
        %v4930 = vpop.permute.xlu0 %4929
        %4933 = vset.pattern.permute.xlu0 0
        %4934 = vperm.xlu0 %4933, %v4860
        %v4935 = vpop.permute.xlu0 %4934
        %4938 = vset.pattern.permute.xlu0 0
        %4939 = vperm.xlu0 %4938, %v4861
        %v4940 = vpop.permute.xlu0 %4939
        %v4942 = vmul.f32 %v4394, %v4865
        %v4943 = vmul.f32 %v4395, %v4865
        %v4944 = vmul.f32 %v4396, %v4865
        %v4945 = vmul.f32 %v4397, %v4865
        %v4946 = vmul.f32 %v4398, %v4870
        %v4947 = vmul.f32 %v4399, %v4870
        %v4948 = vmul.f32 %v4400, %v4870
        %v4949 = vmul.f32 %v4401, %v4870
        %v4950 = vmul.f32 %v4402, %v4875
        %v4951 = vmul.f32 %v4403, %v4875
        %v4952 = vmul.f32 %v4404, %v4875
        %v4953 = vmul.f32 %v4405, %v4875
        %v4954 = vmul.f32 %v4406, %v4880
        %v4955 = vmul.f32 %v4407, %v4880
        %v4956 = vmul.f32 %v4408, %v4880
        %v4957 = vmul.f32 %v4409, %v4880
        %v4958 = vmul.f32 %v4410, %v4885
        %v4959 = vmul.f32 %v4411, %v4885
        %v4960 = vmul.f32 %v4412, %v4885
        %v4961 = vmul.f32 %v4413, %v4885
        %v4962 = vmul.f32 %v4414, %v4890
        %v4963 = vmul.f32 %v4415, %v4890
        %v4964 = vmul.f32 %v4416, %v4890
        %v4965 = vmul.f32 %v4417, %v4890
        %v4966 = vmul.f32 %v4418, %v4895
        %v4967 = vmul.f32 %v4419, %v4895
        %v4968 = vmul.f32 %v4420, %v4895
        %v4969 = vmul.f32 %v4421, %v4895
        %v4970 = vmul.f32 %v4422, %v4900
        %v4971 = vmul.f32 %v4423, %v4900
        %v4972 = vmul.f32 %v4424, %v4900
        %v4973 = vmul.f32 %v4425, %v4900
        %v4974 = vmul.f32 %v4426, %v4905
        %v4975 = vmul.f32 %v4427, %v4905
        %v4976 = vmul.f32 %v4428, %v4905
        %v4977 = vmul.f32 %v4429, %v4905
        %v4978 = vmul.f32 %v4430, %v4910
        %v4979 = vmul.f32 %v4431, %v4910
        %v4980 = vmul.f32 %v4432, %v4910
        %v4981 = vmul.f32 %v4433, %v4910
        %v4982 = vmul.f32 %v4434, %v4915
        %v4983 = vmul.f32 %v4435, %v4915
        %v4984 = vmul.f32 %v4436, %v4915
        %v4985 = vmul.f32 %v4437, %v4915
        %v4986 = vmul.f32 %v4438, %v4920
        %v4987 = vmul.f32 %v4439, %v4920
        %v4988 = vmul.f32 %v4440, %v4920
        %v4989 = vmul.f32 %v4441, %v4920
        %v4990 = vmul.f32 %v4442, %v4925
        %v4991 = vmul.f32 %v4443, %v4925
        %v4992 = vmul.f32 %v4444, %v4925
        %v4993 = vmul.f32 %v4445, %v4925
        %v4994 = vmul.f32 %v4446, %v4930
        %v4995 = vmul.f32 %v4447, %v4930
        %v4996 = vmul.f32 %v4448, %v4930
        %v4997 = vmul.f32 %v4449, %v4930
        %v4998 = vmul.f32 %v4450, %v4935
        %v4999 = vmul.f32 %v4451, %v4935
        %v5000 = vmul.f32 %v4452, %v4935
        %v5001 = vmul.f32 %v4453, %v4935
        %v5002 = vmul.f32 %v4454, %v4940
        %v5003 = vmul.f32 %v4455, %v4940
        %v5004 = vmul.f32 %v4456, %v4940
        %v5005 = vmul.f32 %v4457, %v4940
        %v5006 = vadd.f32 %v4942, %v4946
        %v5007 = vadd.f32 %v5006, %v4950
        %v5008 = vadd.f32 %v5007, %v4954
        %v5009 = vadd.f32 %v5008, %v4958
        %v5010 = vadd.f32 %v5009, %v4962
        %v5011 = vadd.f32 %v5010, %v4966
        %v5012 = vadd.f32 %v5011, %v4970
        %v5013 = vadd.f32 %v5012, %v4974
        %v5014 = vadd.f32 %v5013, %v4978
        %v5015 = vadd.f32 %v5014, %v4982
        %v5016 = vadd.f32 %v5015, %v4986
        %v5017 = vadd.f32 %v5016, %v4990
        %v5018 = vadd.f32 %v5017, %v4994
        %v5019 = vadd.f32 %v5018, %v4998
        %v5020 = vadd.f32 %v5019, %v5002
        %v5021 = vrot.slane %v5020, 4
        %v5022 = vadd.f32 %v5020, %v5021
        %v5023 = vrot.slane %v5022, 2
        %v5024 = vadd.f32 %v5022, %v5023
        %v5025 = vrot.slane %v5024, 1
        %v5026 = vadd.f32 %v5024, %v5025
        %v5027 = vadd.f32 %v4943, %v4947
        %v5028 = vadd.f32 %v5027, %v4951
        %v5029 = vadd.f32 %v5028, %v4955
        %v5030 = vadd.f32 %v5029, %v4959
        %v5031 = vadd.f32 %v5030, %v4963
        %v5032 = vadd.f32 %v5031, %v4967
        %v5033 = vadd.f32 %v5032, %v4971
        %v5034 = vadd.f32 %v5033, %v4975
        %v5035 = vadd.f32 %v5034, %v4979
        %v5036 = vadd.f32 %v5035, %v4983
        %v5037 = vadd.f32 %v5036, %v4987
        %v5038 = vadd.f32 %v5037, %v4991
        %v5039 = vadd.f32 %v5038, %v4995
        %v5040 = vadd.f32 %v5039, %v4999
        %v5041 = vadd.f32 %v5040, %v5003
        %v5042 = vrot.slane %v5041, 4
        %v5043 = vadd.f32 %v5041, %v5042
        %v5044 = vrot.slane %v5043, 2
        %v5045 = vadd.f32 %v5043, %v5044
        %v5046 = vrot.slane %v5045, 1
        %v5047 = vadd.f32 %v5045, %v5046
        %v5048 = vadd.f32 %v4944, %v4948
        %v5049 = vadd.f32 %v5048, %v4952
        %v5050 = vadd.f32 %v5049, %v4956
        %v5051 = vadd.f32 %v5050, %v4960
        %v5052 = vadd.f32 %v5051, %v4964
        %v5053 = vadd.f32 %v5052, %v4968
        %v5054 = vadd.f32 %v5053, %v4972
        %v5055 = vadd.f32 %v5054, %v4976
        %v5056 = vadd.f32 %v5055, %v4980
        %v5057 = vadd.f32 %v5056, %v4984
        %v5058 = vadd.f32 %v5057, %v4988
        %v5059 = vadd.f32 %v5058, %v4992
        %v5060 = vadd.f32 %v5059, %v4996
        %v5061 = vadd.f32 %v5060, %v5000
        %v5062 = vadd.f32 %v5061, %v5004
        %v5063 = vrot.slane %v5062, 4
        %v5064 = vadd.f32 %v5062, %v5063
        %v5065 = vrot.slane %v5064, 2
        %v5066 = vadd.f32 %v5064, %v5065
        %v5067 = vrot.slane %v5066, 1
        %v5068 = vadd.f32 %v5066, %v5067
        %v5069 = vadd.f32 %v4945, %v4949
        %v5070 = vadd.f32 %v5069, %v4953
        %v5071 = vadd.f32 %v5070, %v4957
        %v5072 = vadd.f32 %v5071, %v4961
        %v5073 = vadd.f32 %v5072, %v4965
        %v5074 = vadd.f32 %v5073, %v4969
        %v5075 = vadd.f32 %v5074, %v4973
        %v5076 = vadd.f32 %v5075, %v4977
        %v5077 = vadd.f32 %v5076, %v4981
        %v5078 = vadd.f32 %v5077, %v4985
        %v5079 = vadd.f32 %v5078, %v4989
        %v5080 = vadd.f32 %v5079, %v4993
        %v5081 = vadd.f32 %v5080, %v4997
        %v5082 = vadd.f32 %v5081, %v5001
        %v5083 = vadd.f32 %v5082, %v5005
        %v5084 = vrot.slane %v5083, 4
        %v5085 = vadd.f32 %v5083, %v5084
        %v5086 = vrot.slane %v5085, 2
        %v5087 = vadd.f32 %v5085, %v5086
        %v5088 = vrot.slane %v5087, 1
        %v5089 = vadd.f32 %v5087, %v5088
        %v5090 = vld [vmem:[#allocation2] sm:$0x1]
        %5092 = vset.pattern.permute.xlu0 0
        %5093 = vperm.xlu0 %5092, %v5090
        %v5094 = vpop.permute.xlu0 %5093
        %v5096 = vperm.slane %v5094, 0
        %v5097 = vadd.f32 %v5026, %v5096
        %v5098 = vadd.f32 %v5047, %v5096
        %v5099 = vadd.f32 %v5068, %v5096
        %v5100 = vadd.f32 %v5089, %v5096
        %v5101 = vmax.f32 %v5097, 0.0
        %v5102 = vmax.f32 %v5098, 0.0
        %v5103 = vmax.f32 %v5099, 0.0
        %v5104 = vmax.f32 %v5100, 0.0
        %v5105 = vld [vmem:[%s21] sm:$0xf]
        %v5106 = vld [vmem:[%s21 + $0x4] sm:$0xf]
        %v5107 = vld [vmem:[%s21 + $0x8] sm:$0xf]
        %v5108 = vld [vmem:[%s21 + $0xc] sm:$0xf]
        %v5109 = vld [vmem:[%s21 + $0x10] sm:$0xf]
        %v5110 = vld [vmem:[%s21 + $0x14] sm:$0xf]
        %v5111 = vld [vmem:[%s21 + $0x18] sm:$0xf]
        %v5112 = vld [vmem:[%s21 + $0x1c] sm:$0xf]
        %v5113 = vpack.c.bf16 %v4662, %v4660
        %v5114 = vpack.c.bf16 %v4711, %v4709
        %v5115 = vpack.c.bf16 %v4760, %v4758
        %v5116 = vpack.c.bf16 %v4809, %v4807
        %v5117 = vpack.c.bf16 %v4667, %v4665
        %v5118 = vpack.c.bf16 %v4716, %v4714
        %v5119 = vpack.c.bf16 %v4765, %v4763
        %v5120 = vpack.c.bf16 %v4814, %v4812
        %v5121 = vpack.c.bf16 %v4672, %v4670
        %v5122 = vpack.c.bf16 %v4721, %v4719
        %v5123 = vpack.c.bf16 %v4770, %v4768
        %v5124 = vpack.c.bf16 %v4819, %v4817
        %v5125 = vpack.c.bf16 %v4677, %v4675
        %v5126 = vpack.c.bf16 %v4726, %v4724
        %v5127 = vpack.c.bf16 %v4775, %v4773
        %v5128 = vpack.c.bf16 %v4824, %v4822
        %v5129 = vpack.c.bf16 %v4682, %v4680
        %v5130 = vpack.c.bf16 %v4731, %v4729
        %v5131 = vpack.c.bf16 %v4780, %v4778
        %v5132 = vpack.c.bf16 %v4829, %v4827
        %v5133 = vpack.c.bf16 %v4687, %v4685
        %v5134 = vpack.c.bf16 %v4736, %v4734
        %v5135 = vpack.c.bf16 %v4785, %v4783
        %v5136 = vpack.c.bf16 %v4834, %v4832
        %v5137 = vpack.c.bf16 %v4692, %v4690
        %v5138 = vpack.c.bf16 %v4741, %v4739
        %v5139 = vpack.c.bf16 %v4790, %v4788
        %v5140 = vpack.c.bf16 %v4839, %v4837
        %v5141 = vpack.c.bf16 %v4697, %v4695
        %v5142 = vpack.c.bf16 %v4746, %v4744
        %v5143 = vpack.c.bf16 %v4795, %v4793
        %v5144 = vpack.c.bf16 %v4844, %v4842
        %v5145 = vld [vmem:[%s22] sm:$0xf]
        %v5146 = vld [vmem:[%s22 + $0x4] sm:$0xf]
        %v5147 = vld [vmem:[%s22 + $0x8] sm:$0xf]
        %v5148 = vld [vmem:[%s22 + $0xc] sm:$0xf]
        %v5149 = vld [vmem:[%s22 + $0x10] sm:$0xf]
        %v5150 = vld [vmem:[%s22 + $0x14] sm:$0xf]
        %v5151 = vld [vmem:[%s22 + $0x18] sm:$0xf]
        %v5152 = vld [vmem:[%s22 + $0x1c] sm:$0xf]
        %v5161 = vunpack.c.l.b16 %v5145
        %v5162 = vunpack.c.l.b16 %v5146
        %v5163 = vunpack.c.l.b16 %v5147
        %v5164 = vunpack.c.l.b16 %v5148
        %v5165 = vunpack.c.l.b16 %v5149
        %v5166 = vunpack.c.l.b16 %v5150
        %v5167 = vunpack.c.l.b16 %v5151
        %v5168 = vunpack.c.l.b16 %v5152
        %v5169 = vpack.c.b16 %v5162, %v5161
        %v5170 = vpack.c.b16 %v5164, %v5163
        %v5171 = vpack.c.b16 %v5166, %v5165
        %v5172 = vpack.c.b16 %v5168, %v5167
        %vm5173 = vcmask 121856
        %v5175 = vsel %vm5173, %v5169, 0
        %v5178 = vsel %vm5173, %v5170, 0
        %v5181 = vsel %vm5173, %v5171, 0
        %v5184 = vsel %vm5173, %v5172, 0
        %vm5186 = vcmask 1046528
        %vm5187 = vcmask 1047552
        %v5188 = vsel %vm5186, 4294967295, 65535
        %v5189 = vsel %vm5187, %v5188, 0
        %v5191 = vand.u32 %v950, %v5189
        %v5194 = vand.u32 %v951, %v5189
        %v5197 = vand.u32 %v952, %v5189
        %v5200 = vand.u32 %v953, %v5189
        %5202 = vmatpush.bf16.msra.mxu0 0
        %5203 = vmatpush.bf16.msra.mxu0 0
        %5204 = vmatpush.bf16.msra.mxu0 0
        %5205 = vmatpush.bf16.msra.mxu0 0
        %5206 = vmatpush.bf16.msra.mxu0 0
        %5207 = vmatpush.bf16.msra.mxu0 0
        %5208 = vmatpush.bf16.msra.mxu0 0
        %5209 = vmatpush.bf16.msra.mxu0 %v5191
        %5210 = vmatmul.bf16.gmra.mxu0 %v5175
        %v5211 = vpop.f32.mrf.mxu0
        %v5212 = vadd.f32 0.0, %v5211
        %v5213 = vpop.f32.mrf.mxu0
        %v5214 = vadd.f32 0.0, %v5213
        %5215 = vmatmul.bf16.gmra.mxu0 %v5178
        %v5216 = vpop.f32.mrf.mxu0
        %v5217 = vadd.f32 0.0, %v5216
        %v5218 = vpop.f32.mrf.mxu0
        %v5219 = vadd.f32 0.0, %v5218
        %5220 = vmatmul.bf16.gmra.mxu0 %v5181
        %v5221 = vpop.f32.mrf.mxu0
        %v5222 = vadd.f32 0.0, %v5221
        %v5223 = vpop.f32.mrf.mxu0
        %v5224 = vadd.f32 0.0, %v5223
        %5225 = vmatmul.bf16.gmra.mxu0 %v5184
        %v5226 = vpop.f32.mrf.mxu0
        %v5227 = vadd.f32 0.0, %v5226
        %v5228 = vpop.f32.mrf.mxu0
        %v5229 = vadd.f32 0.0, %v5228
        %5230 = vdwg.mxu0
        %5231 = vmatpush.bf16.msra.mxu0 0
        %5232 = vmatpush.bf16.msra.mxu0 0
        %5233 = vmatpush.bf16.msra.mxu0 0
        %5234 = vmatpush.bf16.msra.mxu0 0
        %5235 = vmatpush.bf16.msra.mxu0 0
        %5236 = vmatpush.bf16.msra.mxu0 0
        %5237 = vmatpush.bf16.msra.mxu0 0
        %5238 = vmatpush.bf16.msra.mxu0 %v5194
        %5239 = vmatmul.bf16.gmra.mxu0 %v5175
        %v5240 = vpop.f32.mrf.mxu0
        %v5241 = vadd.f32 0.0, %v5240
        %v5242 = vpop.f32.mrf.mxu0
        %v5243 = vadd.f32 0.0, %v5242
        %5244 = vmatmul.bf16.gmra.mxu0 %v5178
        %v5245 = vpop.f32.mrf.mxu0
        %v5246 = vadd.f32 0.0, %v5245
        %v5247 = vpop.f32.mrf.mxu0
        %v5248 = vadd.f32 0.0, %v5247
        %5249 = vmatmul.bf16.gmra.mxu0 %v5181
        %v5250 = vpop.f32.mrf.mxu0
        %v5251 = vadd.f32 0.0, %v5250
        %v5252 = vpop.f32.mrf.mxu0
        %v5253 = vadd.f32 0.0, %v5252
        %5254 = vmatmul.bf16.gmra.mxu0 %v5184
        %v5255 = vpop.f32.mrf.mxu0
        %v5256 = vadd.f32 0.0, %v5255
        %v5257 = vpop.f32.mrf.mxu0
        %v5258 = vadd.f32 0.0, %v5257
        %5259 = vdwg.mxu0
        %5260 = vmatpush.bf16.msra.mxu0 0
        %5261 = vmatpush.bf16.msra.mxu0 0
        %5262 = vmatpush.bf16.msra.mxu0 0
        %5263 = vmatpush.bf16.msra.mxu0 0
        %5264 = vmatpush.bf16.msra.mxu0 0
        %5265 = vmatpush.bf16.msra.mxu0 0
        %5266 = vmatpush.bf16.msra.mxu0 0
        %5267 = vmatpush.bf16.msra.mxu0 %v5197
        %5268 = vmatmul.bf16.gmra.mxu0 %v5175
        %v5269 = vpop.f32.mrf.mxu0
        %v5270 = vadd.f32 0.0, %v5269
        %v5271 = vpop.f32.mrf.mxu0
        %v5272 = vadd.f32 0.0, %v5271
        %5273 = vmatmul.bf16.gmra.mxu0 %v5178
        %v5274 = vpop.f32.mrf.mxu0
        %v5275 = vadd.f32 0.0, %v5274
        %v5276 = vpop.f32.mrf.mxu0
        %v5277 = vadd.f32 0.0, %v5276
        %5278 = vmatmul.bf16.gmra.mxu0 %v5181
        %v5279 = vpop.f32.mrf.mxu0
        %v5280 = vadd.f32 0.0, %v5279
        %v5281 = vpop.f32.mrf.mxu0
        %v5282 = vadd.f32 0.0, %v5281
        %5283 = vmatmul.bf16.gmra.mxu0 %v5184
        %v5284 = vpop.f32.mrf.mxu0
        %v5285 = vadd.f32 0.0, %v5284
        %v5286 = vpop.f32.mrf.mxu0
        %v5287 = vadd.f32 0.0, %v5286
        %5288 = vdwg.mxu0
        %5289 = vmatpush.bf16.msra.mxu0 0
        %5290 = vmatpush.bf16.msra.mxu0 0
        %5291 = vmatpush.bf16.msra.mxu0 0
        %5292 = vmatpush.bf16.msra.mxu0 0
        %5293 = vmatpush.bf16.msra.mxu0 0
        %5294 = vmatpush.bf16.msra.mxu0 0
        %5295 = vmatpush.bf16.msra.mxu0 0
        %5296 = vmatpush.bf16.msra.mxu0 %v5200
        %5297 = vmatmul.bf16.gmra.mxu0 %v5175
        %v5298 = vpop.f32.mrf.mxu0
        %v5299 = vadd.f32 0.0, %v5298
        %v5300 = vpop.f32.mrf.mxu0
        %v5301 = vadd.f32 0.0, %v5300
        %5302 = vmatmul.bf16.gmra.mxu0 %v5178
        %v5303 = vpop.f32.mrf.mxu0
        %v5304 = vadd.f32 0.0, %v5303
        %v5305 = vpop.f32.mrf.mxu0
        %v5306 = vadd.f32 0.0, %v5305
        %5307 = vmatmul.bf16.gmra.mxu0 %v5181
        %v5308 = vpop.f32.mrf.mxu0
        %v5309 = vadd.f32 0.0, %v5308
        %v5310 = vpop.f32.mrf.mxu0
        %v5311 = vadd.f32 0.0, %v5310
        %5312 = vmatmul.bf16.gmra.mxu0 %v5184
        %v5313 = vpop.f32.mrf.mxu0
        %v5314 = vadd.f32 0.0, %v5313
        %v5315 = vpop.f32.mrf.mxu0
        %v5316 = vadd.f32 0.0, %v5315
        %5317 = vdwg.mxu0
        %v5326 = vunpack.c.l.b16 %v5105
        %v5327 = vunpack.c.l.b16 %v5106
        %v5328 = vunpack.c.l.b16 %v5107
        %v5329 = vunpack.c.l.b16 %v5108
        %v5330 = vunpack.c.l.b16 %v5109
        %v5331 = vunpack.c.l.b16 %v5110
        %v5332 = vunpack.c.l.b16 %v5111
        %v5333 = vunpack.c.l.b16 %v5112
        %v5334 = vpack.c.b16 %v5327, %v5326
        %v5335 = vpack.c.b16 %v5329, %v5328
        %v5336 = vpack.c.b16 %v5331, %v5330
        %v5337 = vpack.c.b16 %v5333, %v5332
        %5342 = vmatpush.bf16.msra.mxu0 %v5141
        %5343 = vmatpush.bf16.msra.mxu0 %v5137
        %5344 = vmatpush.bf16.msra.mxu0 %v5133
        %5345 = vmatpush.bf16.msra.mxu0 %v5129
        %5346 = vmatpush.bf16.msra.mxu0 %v5125
        %5347 = vmatpush.bf16.msra.mxu0 %v5121
        %5348 = vmatpush.bf16.msra.mxu0 %v5117
        %5349 = vmatpush.bf16.msra.mxu0 %v5113
        %5350 = vmatmul.bf16.gmra.mxu0 %v5334
        %v5351 = vpop.f32.mrf.mxu0
        %v5352 = vadd.f32 %v5212, %v5351
        %v5353 = vpop.f32.mrf.mxu0
        %v5354 = vadd.f32 %v5214, %v5353
        %5355 = vmatmul.bf16.gmra.mxu0 %v5335
        %v5356 = vpop.f32.mrf.mxu0
        %v5357 = vadd.f32 %v5217, %v5356
        %v5358 = vpop.f32.mrf.mxu0
        %v5359 = vadd.f32 %v5219, %v5358
        %5360 = vmatmul.bf16.gmra.mxu0 %v5336
        %v5361 = vpop.f32.mrf.mxu0
        %v5362 = vadd.f32 %v5222, %v5361
        %v5363 = vpop.f32.mrf.mxu0
        %v5364 = vadd.f32 %v5224, %v5363
        %5365 = vmatmul.bf16.gmra.mxu0 %v5337
        %v5366 = vpop.f32.mrf.mxu0
        %v5367 = vadd.f32 %v5227, %v5366
        %v5368 = vpop.f32.mrf.mxu0
        %v5369 = vadd.f32 %v5229, %v5368
        %5370 = vdwg.mxu0
        %5371 = vmatpush.bf16.msra.mxu0 %v5142
        %5372 = vmatpush.bf16.msra.mxu0 %v5138
        %5373 = vmatpush.bf16.msra.mxu0 %v5134
        %5374 = vmatpush.bf16.msra.mxu0 %v5130
        %5375 = vmatpush.bf16.msra.mxu0 %v5126
        %5376 = vmatpush.bf16.msra.mxu0 %v5122
        %5377 = vmatpush.bf16.msra.mxu0 %v5118
        %5378 = vmatpush.bf16.msra.mxu0 %v5114
        %5379 = vmatmul.bf16.gmra.mxu0 %v5334
        %v5380 = vpop.f32.mrf.mxu0
        %v5381 = vadd.f32 %v5241, %v5380
        %v5382 = vpop.f32.mrf.mxu0
        %v5383 = vadd.f32 %v5243, %v5382
        %5384 = vmatmul.bf16.gmra.mxu0 %v5335
        %v5385 = vpop.f32.mrf.mxu0
        %v5386 = vadd.f32 %v5246, %v5385
        %v5387 = vpop.f32.mrf.mxu0
        %v5388 = vadd.f32 %v5248, %v5387
        %5389 = vmatmul.bf16.gmra.mxu0 %v5336
        %v5390 = vpop.f32.mrf.mxu0
        %v5391 = vadd.f32 %v5251, %v5390
        %v5392 = vpop.f32.mrf.mxu0
        %v5393 = vadd.f32 %v5253, %v5392
        %5394 = vmatmul.bf16.gmra.mxu0 %v5337
        %v5395 = vpop.f32.mrf.mxu0
        %v5396 = vadd.f32 %v5256, %v5395
        %v5397 = vpop.f32.mrf.mxu0
        %v5398 = vadd.f32 %v5258, %v5397
        %5399 = vdwg.mxu0
        %5400 = vmatpush.bf16.msra.mxu0 %v5143
        %5401 = vmatpush.bf16.msra.mxu0 %v5139
        %5402 = vmatpush.bf16.msra.mxu0 %v5135
        %5403 = vmatpush.bf16.msra.mxu0 %v5131
        %5404 = vmatpush.bf16.msra.mxu0 %v5127
        %5405 = vmatpush.bf16.msra.mxu0 %v5123
        %5406 = vmatpush.bf16.msra.mxu0 %v5119
        %5407 = vmatpush.bf16.msra.mxu0 %v5115
        %5408 = vmatmul.bf16.gmra.mxu0 %v5334
        %v5409 = vpop.f32.mrf.mxu0
        %v5410 = vadd.f32 %v5270, %v5409
        %v5411 = vpop.f32.mrf.mxu0
        %v5412 = vadd.f32 %v5272, %v5411
        %5413 = vmatmul.bf16.gmra.mxu0 %v5335
        %v5414 = vpop.f32.mrf.mxu0
        %v5415 = vadd.f32 %v5275, %v5414
        %v5416 = vpop.f32.mrf.mxu0
        %v5417 = vadd.f32 %v5277, %v5416
        %5418 = vmatmul.bf16.gmra.mxu0 %v5336
        %v5419 = vpop.f32.mrf.mxu0
        %v5420 = vadd.f32 %v5280, %v5419
        %v5421 = vpop.f32.mrf.mxu0
        %v5422 = vadd.f32 %v5282, %v5421
        %5423 = vmatmul.bf16.gmra.mxu0 %v5337
        %v5424 = vpop.f32.mrf.mxu0
        %v5425 = vadd.f32 %v5285, %v5424
        %v5426 = vpop.f32.mrf.mxu0
        %v5427 = vadd.f32 %v5287, %v5426
        %5428 = vdwg.mxu0
        %5429 = vmatpush.bf16.msra.mxu0 %v5144
        %5430 = vmatpush.bf16.msra.mxu0 %v5140
        %5431 = vmatpush.bf16.msra.mxu0 %v5136
        %5432 = vmatpush.bf16.msra.mxu0 %v5132
        %5433 = vmatpush.bf16.msra.mxu0 %v5128
        %5434 = vmatpush.bf16.msra.mxu0 %v5124
        %5435 = vmatpush.bf16.msra.mxu0 %v5120
        %5436 = vmatpush.bf16.msra.mxu0 %v5116
        %5437 = vmatmul.bf16.gmra.mxu0 %v5334
        %v5438 = vpop.f32.mrf.mxu0
        %v5439 = vadd.f32 %v5299, %v5438
        %v5440 = vpop.f32.mrf.mxu0
        %v5441 = vadd.f32 %v5301, %v5440
        %5442 = vmatmul.bf16.gmra.mxu0 %v5335
        %v5443 = vpop.f32.mrf.mxu0
        %v5444 = vadd.f32 %v5304, %v5443
        %v5445 = vpop.f32.mrf.mxu0
        %v5446 = vadd.f32 %v5306, %v5445
        %5447 = vmatmul.bf16.gmra.mxu0 %v5336
        %v5448 = vpop.f32.mrf.mxu0
        %v5449 = vadd.f32 %v5309, %v5448
        %v5450 = vpop.f32.mrf.mxu0
        %v5451 = vadd.f32 %v5311, %v5450
        %5452 = vmatmul.bf16.gmra.mxu0 %v5337
        %v5453 = vpop.f32.mrf.mxu0
        %v5454 = vadd.f32 %v5314, %v5453
        %v5455 = vpop.f32.mrf.mxu0
        %v5456 = vadd.f32 %v5316, %v5455
        %5457 = vdwg.mxu0
        %v5458 = vld [vmem:[%s23] sm:$0xff]
        %v5459 = vld [vmem:[%s23 + $0x8] sm:$0xff]
        %v5460 = vld [vmem:[%s23 + $0x10] sm:$0xff]
        %v5461 = vld [vmem:[%s23 + $0x18] sm:$0xff]
        %v5462 = vld [vmem:[%s23 + $0x20] sm:$0xff]
        %v5463 = vld [vmem:[%s23 + $0x28] sm:$0xff]
        %v5464 = vld [vmem:[%s23 + $0x30] sm:$0xff]
        %v5465 = vld [vmem:[%s23 + $0x38] sm:$0xff]
        %5467 = vset.pattern.permute.xlu0 0
        %5468 = vperm.xlu0 %5467, %v5458
        %v5469 = vpop.permute.xlu0 %5468
        %5472 = vset.pattern.permute.xlu0 0
        %5473 = vperm.xlu0 %5472, %v5459
        %v5474 = vpop.permute.xlu0 %5473
        %5477 = vset.pattern.permute.xlu0 0
        %5478 = vperm.xlu0 %5477, %v5460
        %v5479 = vpop.permute.xlu0 %5478
        %5482 = vset.pattern.permute.xlu0 0
        %5483 = vperm.xlu0 %5482, %v5461
        %v5484 = vpop.permute.xlu0 %5483
        %5487 = vset.pattern.permute.xlu0 0
        %5488 = vperm.xlu0 %5487, %v5462
        %v5489 = vpop.permute.xlu0 %5488
        %5492 = vset.pattern.permute.xlu0 0
        %5493 = vperm.xlu0 %5492, %v5463
        %v5494 = vpop.permute.xlu0 %5493
        %5497 = vset.pattern.permute.xlu0 0
        %5498 = vperm.xlu0 %5497, %v5464
        %v5499 = vpop.permute.xlu0 %5498
        %5502 = vset.pattern.permute.xlu0 0
        %5503 = vperm.xlu0 %5502, %v5465
        %v5504 = vpop.permute.xlu0 %5503
        %v5506 = vadd.f32 %v5352, %v5469
        %v5507 = vadd.f32 %v5381, %v5469
        %v5508 = vadd.f32 %v5410, %v5469
        %v5509 = vadd.f32 %v5439, %v5469
        %v5510 = vadd.f32 %v5354, %v5474
        %v5511 = vadd.f32 %v5383, %v5474
        %v5512 = vadd.f32 %v5412, %v5474
        %v5513 = vadd.f32 %v5441, %v5474
        %v5514 = vadd.f32 %v5357, %v5479
        %v5515 = vadd.f32 %v5386, %v5479
        %v5516 = vadd.f32 %v5415, %v5479
        %v5517 = vadd.f32 %v5444, %v5479
        %v5518 = vadd.f32 %v5359, %v5484
        %v5519 = vadd.f32 %v5388, %v5484
        %v5520 = vadd.f32 %v5417, %v5484
        %v5521 = vadd.f32 %v5446, %v5484
        %v5522 = vadd.f32 %v5362, %v5489
        %v5523 = vadd.f32 %v5391, %v5489
        %v5524 = vadd.f32 %v5420, %v5489
        %v5525 = vadd.f32 %v5449, %v5489
        %v5526 = vadd.f32 %v5364, %v5494
        %v5527 = vadd.f32 %v5393, %v5494
        %v5528 = vadd.f32 %v5422, %v5494
        %v5529 = vadd.f32 %v5451, %v5494
        %v5530 = vadd.f32 %v5367, %v5499
        %v5531 = vadd.f32 %v5396, %v5499
        %v5532 = vadd.f32 %v5425, %v5499
        %v5533 = vadd.f32 %v5454, %v5499
        %v5534 = vadd.f32 %v5369, %v5504
        %v5535 = vadd.f32 %v5398, %v5504
        %v5536 = vadd.f32 %v5427, %v5504
        %v5537 = vadd.f32 %v5456, %v5504
        %v5538 = vmax.f32 %v5506, 0.0
        %v5539 = vmax.f32 %v5507, 0.0
        %v5540 = vmax.f32 %v5508, 0.0
        %v5541 = vmax.f32 %v5509, 0.0
        %v5542 = vmax.f32 %v5510, 0.0
        %v5543 = vmax.f32 %v5511, 0.0
        %v5544 = vmax.f32 %v5512, 0.0
        %v5545 = vmax.f32 %v5513, 0.0
        %v5546 = vmax.f32 %v5514, 0.0
        %v5547 = vmax.f32 %v5515, 0.0
        %v5548 = vmax.f32 %v5516, 0.0
        %v5549 = vmax.f32 %v5517, 0.0
        %v5550 = vmax.f32 %v5518, 0.0
        %v5551 = vmax.f32 %v5519, 0.0
        %v5552 = vmax.f32 %v5520, 0.0
        %v5553 = vmax.f32 %v5521, 0.0
        %v5554 = vmax.f32 %v5522, 0.0
        %v5555 = vmax.f32 %v5523, 0.0
        %v5556 = vmax.f32 %v5524, 0.0
        %v5557 = vmax.f32 %v5525, 0.0
        %v5558 = vmax.f32 %v5526, 0.0
        %v5559 = vmax.f32 %v5527, 0.0
        %v5560 = vmax.f32 %v5528, 0.0
        %v5561 = vmax.f32 %v5529, 0.0
        %v5562 = vmax.f32 %v5530, 0.0
        %v5563 = vmax.f32 %v5531, 0.0
        %v5564 = vmax.f32 %v5532, 0.0
        %v5565 = vmax.f32 %v5533, 0.0
        %v5566 = vmax.f32 %v5534, 0.0
        %v5567 = vmax.f32 %v5535, 0.0
        %v5568 = vmax.f32 %v5536, 0.0
        %v5569 = vmax.f32 %v5537, 0.0
        %v5570 = vld [vmem:[%s24] sm:$0x3]
        %v5571 = vpack.c.bf16 %v5542, %v5538
        %v5572 = vpack.c.bf16 %v5543, %v5539
        %v5573 = vpack.c.bf16 %v5544, %v5540
        %v5574 = vpack.c.bf16 %v5545, %v5541
        %v5575 = vpack.c.bf16 %v5550, %v5546
        %v5576 = vpack.c.bf16 %v5551, %v5547
        %v5577 = vpack.c.bf16 %v5552, %v5548
        %v5578 = vpack.c.bf16 %v5553, %v5549
        %v5579 = vpack.c.bf16 %v5558, %v5554
        %v5580 = vpack.c.bf16 %v5559, %v5555
        %v5581 = vpack.c.bf16 %v5560, %v5556
        %v5582 = vpack.c.bf16 %v5561, %v5557
        %v5583 = vpack.c.bf16 %v5566, %v5562
        %v5584 = vpack.c.bf16 %v5567, %v5563
        %v5585 = vpack.c.bf16 %v5568, %v5564
        %v5586 = vpack.c.bf16 %v5569, %v5565
        %v5587 = vld [vmem:[%s25] sm:$0x7]
        %5589 = vset.pattern.permute.xlu0 0
        %5590 = vperm.xlu0 %5589, %v5587
        %v5591 = vpop.permute.xlu0 %5590
        %vm5593 = vcmask 523264
        %v5595 = vsel %vm5593, %v5570, 0
        %5597 = vmatpush.bf16.msra.mxu0 0
        %5598 = vmatpush.bf16.msra.mxu0 0
        %5599 = vmatpush.bf16.msra.mxu0 0
        %5600 = vmatpush.bf16.msra.mxu0 0
        %5601 = vmatpush.bf16.msra.mxu0 %v5583
        %5602 = vmatpush.bf16.msra.mxu0 %v5579
        %5603 = vmatpush.bf16.msra.mxu0 %v5575
        %5604 = vmatpush.bf16.msra.mxu0 %v5571
        %5605 = vmatmul.bf16.gmra.mxu0 %v5595
        %v5606 = vpop.f32.mrf.mxu0
        %v5607 = vadd.f32 %v5591, %v5606
        %v5608 = vpop.f32.mrf.mxu0
        %5609 = vdwg.mxu0
        %5610 = vmatpush.bf16.msra.mxu0 0
        %5611 = vmatpush.bf16.msra.mxu0 0
        %5612 = vmatpush.bf16.msra.mxu0 0
        %5613 = vmatpush.bf16.msra.mxu0 0
        %5614 = vmatpush.bf16.msra.mxu0 %v5584
        %5615 = vmatpush.bf16.msra.mxu0 %v5580
        %5616 = vmatpush.bf16.msra.mxu0 %v5576
        %5617 = vmatpush.bf16.msra.mxu0 %v5572
        %5618 = vmatmul.bf16.gmra.mxu0 %v5595
        %v5619 = vpop.f32.mrf.mxu0
        %v5620 = vadd.f32 %v5591, %v5619
        %v5621 = vpop.f32.mrf.mxu0
        %5622 = vdwg.mxu0
        %5623 = vmatpush.bf16.msra.mxu0 0
        %5624 = vmatpush.bf16.msra.mxu0 0
        %5625 = vmatpush.bf16.msra.mxu0 0
        %5626 = vmatpush.bf16.msra.mxu0 0
        %5627 = vmatpush.bf16.msra.mxu0 %v5585
        %5628 = vmatpush.bf16.msra.mxu0 %v5581
        %5629 = vmatpush.bf16.msra.mxu0 %v5577
        %5630 = vmatpush.bf16.msra.mxu0 %v5573
        %5631 = vmatmul.bf16.gmra.mxu0 %v5595
        %v5632 = vpop.f32.mrf.mxu0
        %v5633 = vadd.f32 %v5591, %v5632
        %v5634 = vpop.f32.mrf.mxu0
        %5635 = vdwg.mxu0
        %5636 = vmatpush.bf16.msra.mxu0 0
        %5637 = vmatpush.bf16.msra.mxu0 0
        %5638 = vmatpush.bf16.msra.mxu0 0
        %5639 = vmatpush.bf16.msra.mxu0 0
        %5640 = vmatpush.bf16.msra.mxu0 %v5586
        %5641 = vmatpush.bf16.msra.mxu0 %v5582
        %5642 = vmatpush.bf16.msra.mxu0 %v5578
        %5643 = vmatpush.bf16.msra.mxu0 %v5574
        %5644 = vmatmul.bf16.gmra.mxu0 %v5595
        %v5645 = vpop.f32.mrf.mxu0
        %v5646 = vadd.f32 %v5591, %v5645
        %v5647 = vpop.f32.mrf.mxu0
        %5648 = vdwg.mxu0
        %v5649 = vxor.u32 %v5607, 2147483648
        %v5650 = vxor.u32 %v5620, 2147483648
        %v5651 = vxor.u32 %v5633, 2147483648
        %v5652 = vxor.u32 %v5646, 2147483648
        %v5653 = vmul.f32 %v5649, 1.442695
        %v5654 = vpow.pop %v5653
        %v5655 = vmul.f32 %v5650, 1.442695
        %v5656 = vpow.pop %v5655
        %v5657 = vmul.f32 %v5651, 1.442695
        %v5658 = vpow.pop %v5657
        %v5659 = vmul.f32 %v5652, 1.442695
        %v5660 = vpow.pop %v5659
        %v5661 = vadd.f32 %v5654, 1.0
        %v5662 = vadd.f32 %v5656, 1.0
        %v5663 = vadd.f32 %v5658, 1.0
        %v5664 = vadd.f32 %v5660, 1.0
        %v5665 = vrcp.pop %v5661
        %v5666 = vmul.f32 %v5661, %v5665
        %v5667 = vsub.f32 1.0, %v5666
        %v5668 = vmul.f32 %v5665, %v5667
        %v5669 = vadd.f32 %v5665, %v5668
        %vm5670 = vweird.f32 %v5661
        %vm5671 = vweird.f32 %v5665
        %vm5672 = vmor %vm5670, %vm5671
        %v5673 = vsel %vm5672, %v5665, %v5669
        %v5674 = vand.u32 2147483647, %v5661
        %vm5675 = vcmp.eq.f32.partialorder %v5674, 8.507059e+37
        %v5676 = vand.u32 %v5661, 2147483648
        %v5677 = vor.u32 1.1754944e-38, %v5676
        %v5678 = vsel %vm5675, %v5677, %v5673
        %v5679 = vmul.f32 1.0, %v5678
        %v5680 = vrcp.pop %v5662
        %v5681 = vmul.f32 %v5662, %v5680
        %v5682 = vsub.f32 1.0, %v5681
        %v5683 = vmul.f32 %v5680, %v5682
        %v5684 = vadd.f32 %v5680, %v5683
        %vm5685 = vweird.f32 %v5662
        %vm5686 = vweird.f32 %v5680
        %vm5687 = vmor %vm5685, %vm5686
        %v5688 = vsel %vm5687, %v5680, %v5684
        %v5689 = vand.u32 2147483647, %v5662
        %vm5690 = vcmp.eq.f32.partialorder %v5689, 8.507059e+37
        %v5691 = vand.u32 %v5662, 2147483648
        %v5692 = vor.u32 1.1754944e-38, %v5691
        %v5693 = vsel %vm5690, %v5692, %v5688
        %v5694 = vmul.f32 1.0, %v5693
        %v5695 = vrcp.pop %v5663
        %v5696 = vmul.f32 %v5663, %v5695
        %v5697 = vsub.f32 1.0, %v5696
        %v5698 = vmul.f32 %v5695, %v5697
        %v5699 = vadd.f32 %v5695, %v5698
        %vm5700 = vweird.f32 %v5663
        %vm5701 = vweird.f32 %v5695
        %vm5702 = vmor %vm5700, %vm5701
        %v5703 = vsel %vm5702, %v5695, %v5699
        %v5704 = vand.u32 2147483647, %v5663
        %vm5705 = vcmp.eq.f32.partialorder %v5704, 8.507059e+37
        %v5706 = vand.u32 %v5663, 2147483648
        %v5707 = vor.u32 1.1754944e-38, %v5706
        %v5708 = vsel %vm5705, %v5707, %v5703
        %v5709 = vmul.f32 1.0, %v5708
        %v5710 = vrcp.pop %v5664
        %v5711 = vmul.f32 %v5664, %v5710
        %v5712 = vsub.f32 1.0, %v5711
        %v5713 = vmul.f32 %v5710, %v5712
        %v5714 = vadd.f32 %v5710, %v5713
        %vm5715 = vweird.f32 %v5664
        %vm5716 = vweird.f32 %v5710
        %vm5717 = vmor %vm5715, %vm5716
        %v5718 = vsel %vm5717, %v5710, %v5714
        %v5719 = vand.u32 2147483647, %v5664
        %vm5720 = vcmp.eq.f32.partialorder %v5719, 8.507059e+37
        %v5721 = vand.u32 %v5664, 2147483648
        %v5722 = vor.u32 1.1754944e-38, %v5721
        %v5723 = vsel %vm5720, %v5722, %v5718
        %v5724 = vmul.f32 1.0, %v5723
        %v5729 = vrot.slane %v5694, 4
        %v5730 = vrot.slane %v5724, 4
        %vm5731 = vcmask 1043456
        %v5732 = vsel %vm5731, %v5679, %v5729
        %v5733 = vsel %vm5731, %v5709, %v5730
        %5736 = vst [vmem:[%s907] sm:$0x77] %v5732
        %5737 = vst [vmem:[%s907 + $0x8] sm:$0x77] %v5733
        %v5742 = vrot.slane %v5102, 7
        %v5743 = vrot.slane %v5103, 6
        %v5744 = vrot.slane %v5104, 5
        %v5745 = vsel %vm1131, %v5101, %v5742
        %vm5746 = vcmask 1042434
        %v5747 = vsel %vm5746, %v5743, %v5744
        %vm5748 = vcmask 1041408
        %v5749 = vsel %vm5748, %v5745, %v5747
        %v5751 = vlaneseq
        %vm5752 = vcmp.ge.s32.totalorder %v5751, 0
        %vm5753 = vcmp.lt.s32.totalorder %v5751, 512
        %vm5754 = vmand %vm5752, %vm5753
        %s5755 = scalar_lea.vmem %s907, 3
        %5756 = vst.msk [vmem:[%s5755] ss:$4 sm:$0xf] %vm5754, %v5749
        %s5757 = smul.u32 4, %s39
        %p5758 = scmp.lt.s32.totalorder %s5757, 7
        %s5759 = scalar_select %p5758, %s5757, 7
        %s5760 = smul.addr %s5759, 4
        %s5761 = scalar_lea.vmem %s26, %s5760
        // Predicated region
        $region171: #{nerf_forward.1} parent=161 // pred_check
          %p5762 = pneg %p613
        $region172: #{nerf_forward.1} parent=161 // pred_check_branch
          %5764 = sbr.rel (%p5762) target = $region174
        $region173: #{nerf_forward.1} parent=161 // pred_region
          %s5765 = smul.u32 4, %s39
        $region174: #{nerf_forward.1} parent=161 // pred_fallthru
          _
      $region162: #{nerf_forward.1} parent=5 // pred_fallthru
        _
      %p5766 = scmp.le.s32.totalorder 2, %s34
      // Predicated region
      $region175: #{nerf_forward.1} parent=5 // pred_check
        %p5767 = pneg %p5766
      $region176: #{nerf_forward.1} parent=5 // pred_check_branch
        %5769 = sbr.rel (%p5767) target = $region178
      $region177: #{nerf_forward.1} parent=5 // pred_region
        %s5770 = ssub.s32 %s34, 2
        // Predicated region
        $region179: #{nerf_forward.1} parent=177 // pred_check
          %p5771 = pneg %p619
        $region180: #{nerf_forward.1} parent=177 // pred_check_branch
          %5773 = sbr.rel (%p5771) target = $region182
        $region181: #{nerf_forward.1} parent=177 // pred_region
          %s5774 = smul.u32 4, %s40
          %p5775 = scmp.lt.s32.totalorder %s5774, 7
          %s5776 = scalar_select %p5775, %s5774, 7
          %s5777 = smul.addr %s5776, 4
          %s5778 = scalar_lea.vmem %s26, %s5777
        $region182: #{nerf_forward.1} parent=177 // pred_fallthru
          _
      $region178: #{nerf_forward.1} parent=5 // pred_fallthru
        _
    $region6: #{nerf_forward.1} parent=1 // loop_footer
      %s38 = sadd.s32 1, %s34
    $region7: #{nerf_forward.1} parent=1 // loop_footer_branch
      %33 = sbr.rel target = $region3
    $region8: #{nerf_forward.1} parent=1 // loop_exit
      _

</llo_original>
